<compile_context>
chip_gen: v6e
topology: v6e:2x2x1
jax: 0.10.0
libtpu: 0.0.40
codegen_flags: <defaults>
</compile_context>

<pallas_src>
import math
import functools

import jax
import jax.numpy as jnp
from jax import lax
from jax.experimental import pallas as pl
from jax.experimental.pallas import tpu as pltpu


# 64 MiB scoped-VMEM budget: tile prefs below keep per-kernel working sets
# under ~48 MiB (v7x has 64 MiB physical VMEM); v5e/v6e (128 MiB) have
# additional headroom for deeper buffering.
_VMEM_LIMIT = 64 * 1024 * 1024
_WDTYPE = jnp.bfloat16        # weight / activation storage dtype (f32 accumulate)


def _pick_tile(dim, pref, align):
    """Largest tile <= pref that divides `dim` and is `align`-aligned, falling
    back to the full dimension (which is always a legal block)."""
    if dim <= pref:
        return dim
    t = (min(pref, dim) // align) * align
    while t >= align:
        if dim % t == 0:
            return t
        t -= align
    return dim


# ----------------------------------------------------------------------------
# Generic matmul (x @ w), K-reduction grid, f32 accumulator
# ----------------------------------------------------------------------------

def _matmul_kernel(x_ref, w_ref, o_ref, acc_ref):
    @pl.when(pl.program_id(2) == 0)
    def _():
        acc_ref[...] = jnp.zeros_like(acc_ref)

    acc_ref[...] += jnp.dot(x_ref[...], w_ref[...],
                            preferred_element_type=jnp.float32)

    @pl.when(pl.program_id(2) == pl.num_programs(2) - 1)
    def _():
        o_ref[...] = acc_ref[...].astype(o_ref.dtype)


def pallas_matmul(x, w, *, tm_pref=256, tn_pref=256, tk_pref=512, out_dtype=None):
    """x: (M, K) bf16, w: (K, N) bf16 (pre-transposed)  ->  (M, N)."""
    M, K = x.shape
    K2, N = w.shape
    assert K == K2
    out_dtype = out_dtype or x.dtype
    tm = _pick_tile(M, tm_pref, 128)
    tn = _pick_tile(N, tn_pref, 128)
    tk = _pick_tile(K, tk_pref, 128)
    grid = (M // tm, N // tn, K // tk)
    return pl.pallas_call(
        _matmul_kernel,
        out_shape=jax.ShapeDtypeStruct((M, N), out_dtype),
        grid=grid,
        in_specs=[
            pl.BlockSpec((tm, tk), lambda i, j, k: (i, k)),
            pl.BlockSpec((tk, tn), lambda i, j, k: (k, j)),
        ],
        out_specs=pl.BlockSpec((tm, tn), lambda i, j, k: (i, j)),
        scratch_shapes=[pltpu.VMEM((tm, tn), jnp.float32)],
        compiler_params=pltpu.CompilerParams(
            dimension_semantics=("parallel", "parallel", "arbitrary"),
            vmem_limit_bytes=_VMEM_LIMIT,
        ),
    )(x, w)


# ----------------------------------------------------------------------------
# RMSNorm
# ----------------------------------------------------------------------------

def _rmsnorm_kernel(x_ref, w_ref, o_ref, *, eps):
    x = x_ref[...].astype(jnp.float32)
    ms = jnp.mean(x * x, axis=-1, keepdims=True)
    o_ref[...] = (x * lax.rsqrt(ms + eps) * w_ref[...]).astype(o_ref.dtype)


def pallas_rmsnorm(x2d, weight, eps):
    """x2d: (M, D) bf16, weight: (D,) f32."""
    M, D = x2d.shape
    tm = _pick_tile(M, 512, 128)
    w2d = weight.reshape(1, D).astype(jnp.float32)
    return pl.pallas_call(
        functools.partial(_rmsnorm_kernel, eps=eps),
        out_shape=jax.ShapeDtypeStruct((M, D), x2d.dtype),
        grid=(M // tm,),
        in_specs=[
            pl.BlockSpec((tm, D), lambda i: (i, 0)),
            pl.BlockSpec((1, D), lambda i: (0, 0)),
        ],
        out_specs=pl.BlockSpec((tm, D), lambda i: (i, 0)),
        compiler_params=pltpu.CompilerParams(
            dimension_semantics=("parallel",),
            vmem_limit_bytes=_VMEM_LIMIT,
        ),
    )(x2d, w2d)


# ----------------------------------------------------------------------------
# Fused QKV projection (three outputs) + RoPE epilogue
# ----------------------------------------------------------------------------

def _qkv_rope_kernel(x_ref, w_ref, cos_ref, sin_ref, oq_ref, ok_ref, ov_ref,
                     acc_ref, *, n_heads, n_kv_heads, head_dim):
    k_id = pl.program_id(1)

    @pl.when(k_id == 0)
    def _():
        acc_ref[...] = jnp.zeros_like(acc_ref)

    acc_ref[...] += jnp.dot(x_ref[...], w_ref[...],
                            preferred_element_type=jnp.float32)

    @pl.when(k_id == pl.num_programs(1) - 1)
    def _():
        dh = head_dim
        dh2 = dh // 2
        hd = n_heads * dh
        kd = n_kv_heads * dh
        cos_t = cos_ref[...]          # (tm, Dh) f32, duplicated-half layout
        sin_t = sin_ref[...]

        def rope(z):                  # z: (tm, Dh) f32 in half layout
            z_rot = jnp.concatenate([-z[:, dh2:], z[:, :dh2]], axis=-1)
            return z * cos_t + z_rot * sin_t

        # RoPE(q); the 1/sqrt(head_dim) score scale is already folded into wq.
        for h in range(n_heads):
            qh = acc_ref[:, pl.ds(h * dh, dh)]
            oq_ref[:, pl.ds(h * dh, dh)] = rope(qh).astype(oq_ref.dtype)
        # RoPE(k)
        for h in range(n_kv_heads):
            kh = acc_ref[:, pl.ds(hd + h * dh, dh)]
            ok_ref[:, pl.ds(h * dh, dh)] = rope(kh).astype(ok_ref.dtype)
        # v passes through unrotated
        ov_ref[...] = acc_ref[:, pl.ds(hd + kd, kd)].astype(ov_ref.dtype)


def pallas_qkv_rope(x2d, wqkv_t, cos_bs, sin_bs, *, n_heads, n_kv_heads, head_dim):
    """Fused QKV projection with RoPE applied to q/k in the epilogue.
    x2d: (M, D) bf16; wqkv_t: (D, HD + 2*KD) bf16 (wq half-layout + scaled,
    wk half-layout); cos_bs/sin_bs: (M, head_dim) f32 duplicated-half layout.
    Returns (q, k, v) -- no HBM re-slicing of a fused QKV activation."""
    M, D = x2d.shape
    ntot = wqkv_t.shape[1]
    hd, kd = n_heads * head_dim, n_kv_heads * head_dim
    assert ntot == hd + 2 * kd
    tm = _pick_tile(M, 256, 128)
    tk = _pick_tile(D, 512, 128)
    grid = (M // tm, D // tk)
    kernel = functools.partial(_qkv_rope_kernel, n_heads=n_heads,
                               n_kv_heads=n_kv_heads, head_dim=head_dim)
    return pl.pallas_call(
        kernel,
        out_shape=(jax.ShapeDtypeStruct((M, hd), x2d.dtype),
                   jax.ShapeDtypeStruct((M, kd), x2d.dtype),
                   jax.ShapeDtypeStruct((M, kd), x2d.dtype)),
        grid=grid,
        in_specs=[
            pl.BlockSpec((tm, tk), lambda i, k: (i, k)),
            pl.BlockSpec((tk, ntot), lambda i, k: (k, 0)),
            pl.BlockSpec((tm, head_dim), lambda i, k: (i, 0)),
            pl.BlockSpec((tm, head_dim), lambda i, k: (i, 0)),
        ],
        out_specs=(
            pl.BlockSpec((tm, hd), lambda i, k: (i, 0)),
            pl.BlockSpec((tm, kd), lambda i, k: (i, 0)),
            pl.BlockSpec((tm, kd), lambda i, k: (i, 0)),
        ),
        scratch_shapes=[pltpu.VMEM((tm, ntot), jnp.float32)],
        compiler_params=pltpu.CompilerParams(
            dimension_semantics=("parallel", "arbitrary"),
            vmem_limit_bytes=_VMEM_LIMIT,
        ),
    )(x2d, wqkv_t, cos_bs, sin_bs)


# ----------------------------------------------------------------------------
# Causal GQA attention: Q-tiled flash-style online softmax
# ----------------------------------------------------------------------------

def _attention_kernel(q_ref, k_ref, v_ref, o_ref, m_scr, l_scr, acc_scr, q_scr,
                      *, n_heads, n_kv_heads, head_dim, q_tile, kv_tile):
    qi = pl.program_id(1)
    j = pl.program_id(2)
    n_rep = n_heads // n_kv_heads
    rows = n_rep * q_tile
    dh = head_dim

    @pl.when(j == 0)
    def _():
        m_scr[...] = jnp.full_like(m_scr, -1e30)
        l_scr[...] = jnp.zeros_like(l_scr)
        acc_scr[...] = jnp.zeros_like(acc_scr)
        # Stack the n_rep query heads of each KV group along the sublane axis
        # once per (batch, Q-tile); reused by every KV step.  Rows
        # [r*q_tile, (r+1)*q_tile) of group g hold query head g*n_rep + r.
        for g in range(n_kv_heads):
            for r in range(n_rep):
                h = g * n_rep + r
                q_scr[g, pl.ds(r * q_tile, q_tile), :] = (
                    q_ref[0, :, pl.ds(h * dh, dh)])

    # Skip KV tiles that are entirely in the causal future of this Q tile.
    @pl.when(j * kv_tile < (qi + 1) * q_tile)
    def _():
        seq_row = (qi * q_tile +
                   lax.broadcasted_iota(jnp.int32, (rows, kv_tile), 0) % q_tile)
        seq_col = (j * kv_tile +
                   lax.broadcasted_iota(jnp.int32, (rows, kv_tile), 1))
        neg = jnp.float32(-1e30)
        for g in range(n_kv_heads):
            kg = k_ref[0, :, pl.ds(g * dh, dh)]                     # (tkv, Dh)
            vg = v_ref[0, :, pl.ds(g * dh, dh)]                     # (tkv, Dh)
            s = lax.dot_general(q_scr[g], kg, (((1,), (1,)), ((), ())),
                                preferred_element_type=jnp.float32)  # (rows, tkv)
            s = jnp.where(seq_col <= seq_row, s, neg)                # causal mask
            m_prev = m_scr[g]                                        # (rows, 1)
            m_new = jnp.maximum(m_prev, jnp.max(s, axis=-1, keepdims=True))
            alpha = jnp.exp(m_prev - m_new)
            p = jnp.exp(s - m_new)
            l_scr[g] = alpha * l_scr[g] + jnp.sum(p, axis=-1, keepdims=True)
            acc_scr[g] = alpha * acc_scr[g] + jnp.dot(
                p.astype(vg.dtype), vg, preferred_element_type=jnp.float32)
            m_scr[g] = m_new

    @pl.when(j == pl.num_programs(2) - 1)
    def _():
        for h in range(n_heads):
            g, r = h // n_rep, h % n_rep
            acc_h = acc_scr[g, pl.ds(r * q_tile, q_tile), :]         # (tq, Dh)
            l_h = l_scr[g, pl.ds(r * q_tile, q_tile), :]             # (tq, 1)
            inv_l = pl.reciprocal(l_h, approx=True)                  # EUP slot
            o_ref[0, :, pl.ds(h * dh, dh)] = (acc_h * inv_l).astype(o_ref.dtype)


def pallas_attention(q, k, v, *, n_heads, n_kv_heads, head_dim):
    """q: (B, S, H*Dh); k, v: (B, S, KVH*Dh) (all bf16).  Causal GQA."""
    B, S, HD = q.shape
    KD = k.shape[-1]
    q_tile = _pick_tile(S, 128, 128)
    kv_tile = _pick_tile(S, 512, 128)
    num_q = S // q_tile
    num_kv = S // kv_tile
    n_rep = n_heads // n_kv_heads
    rows = n_rep * q_tile
    kernel = functools.partial(
        _attention_kernel, n_heads=n_heads, n_kv_heads=n_kv_heads,
        head_dim=head_dim, q_tile=q_tile, kv_tile=kv_tile)
    return pl.pallas_call(
        kernel,
        out_shape=jax.ShapeDtypeStruct((B, S, HD), q.dtype),
        grid=(B, num_q, num_kv),
        in_specs=[
            pl.BlockSpec((1, q_tile, HD), lambda b, qi, j: (b, qi, 0)),
            pl.BlockSpec((1, kv_tile, KD), lambda b, qi, j: (b, j, 0)),
            pl.BlockSpec((1, kv_tile, KD), lambda b, qi, j: (b, j, 0)),
        ],
        out_specs=pl.BlockSpec((1, q_tile, HD), lambda b, qi, j: (b, qi, 0)),
        scratch_shapes=[
            pltpu.VMEM((n_kv_heads, rows, 1), jnp.float32),          # running max
            pltpu.VMEM((n_kv_heads, rows, 1), jnp.float32),          # running sum
            pltpu.VMEM((n_kv_heads, rows, head_dim), jnp.float32),   # output acc
            pltpu.VMEM((n_kv_heads, rows, head_dim), q.dtype),       # stacked q
        ],
        compiler_params=pltpu.CompilerParams(
            dimension_semantics=("parallel", "parallel", "arbitrary"),
            vmem_limit_bytes=_VMEM_LIMIT,
        ),
    )(q, k, v)


# ----------------------------------------------------------------------------
# Fused SwiGLU FFN (hidden dim as grid reduction axis)
# ----------------------------------------------------------------------------

def _ffn_kernel(x_ref, w1_ref, w3_ref, w2_ref, o_ref, acc_ref):
    j = pl.program_id(1)

    @pl.when(j == 0)
    def _():
        acc_ref[...] = jnp.zeros_like(acc_ref)

    x = x_ref[...]                                            # bf16 for the MXU
    h1 = jnp.dot(x, w1_ref[...], preferred_element_type=jnp.float32)
    h3 = jnp.dot(x, w3_ref[...], preferred_element_type=jnp.float32)
    h = (h1 * jax.nn.sigmoid(h1)) * h3                        # SwiGLU in f32
    acc_ref[...] += jnp.dot(h.astype(w2_ref.dtype), w2_ref[...],
                            preferred_element_type=jnp.float32)

    @pl.when(j == pl.num_programs(1) - 1)
    def _():
        o_ref[...] = acc_ref[...].astype(o_ref.dtype)


def pallas_ffn(x2d, w1t, w3t, w2t):
    """x2d: (M, D); w1t/w3t: (D, H); w2t: (H, D) -- all bf16."""
    M, D = x2d.shape
    Hd = w1t.shape[1]
    tm = _pick_tile(M, 256, 128)
    th = _pick_tile(Hd, 512, 128)
    grid = (M // tm, Hd // th)
    return pl.pallas_call(
        _ffn_kernel,
        out_shape=jax.ShapeDtypeStruct((M, D), x2d.dtype),
        grid=grid,
        in_specs=[
            pl.BlockSpec((tm, D), lambda i, j: (i, 0)),
            pl.BlockSpec((D, th), lambda i, j: (0, j)),
            pl.BlockSpec((D, th), lambda i, j: (0, j)),
            pl.BlockSpec((th, D), lambda i, j: (j, 0)),
        ],
        out_specs=pl.BlockSpec((tm, D), lambda i, j: (i, 0)),
        scratch_shapes=[pltpu.VMEM((tm, D), jnp.float32)],
        compiler_params=pltpu.CompilerParams(
            dimension_semantics=("parallel", "arbitrary"),
            vmem_limit_bytes=_VMEM_LIMIT,
        ),
    )(x2d, w1t, w3t, w2t)


# ----------------------------------------------------------------------------
# Plain-JAX glue (RoPE tables, weight permutation, embedding gather, loss)
# ----------------------------------------------------------------------------

def precompute_freqs(dim, end, theta=10000.0):
    freqs = 1.0 / (theta ** (jnp.arange(0, dim, 2)[: dim // 2].astype(jnp.float32) / dim))
    t = jnp.arange(end, dtype=jnp.float32)
    freqs = jnp.outer(t, freqs)                         # (end, dim//2)
    return jnp.cos(freqs), jnp.sin(freqs)


def rope_tables(cos, sin, batch):
    """Duplicated-half-layout cos/sin, tiled over batch: (B*S, Dh) f32."""
    cos_h = jnp.concatenate([cos, cos], axis=-1)
    sin_h = jnp.concatenate([sin, sin], axis=-1)
    return jnp.tile(cos_h, (batch, 1)), jnp.tile(sin_h, (batch, 1))


def _interleaved_to_half(w_t, n_heads, head_dim):
    """Permute per-head output columns from interleaved (r0,i0,r1,i1,...) to
    half layout (r0,r1,...,i0,i1,...).  q.k dot products are invariant under
    the (identical) permutation of q and k, so attention scores match the
    interleaved torch reference while enabling cheap half-rotation RoPE."""
    D, N = w_t.shape
    w = w_t.reshape(D, n_heads, head_dim // 2, 2)
    w = jnp.swapaxes(w, 2, 3)
    return w.reshape(D, N)


# ----------------------------------------------------------------------------
# Model
# ----------------------------------------------------------------------------

def init_params(key, cfg):
    V, D = cfg["vocab_size"], cfg["dim"]
    H, KVH = cfg["n_heads"], cfg["n_kv_heads"]
    Dh = D // H
    # FeedForward hidden size (matches the PyTorch arithmetic)
    hidden = 4 * D
    hidden = int(2 * hidden / 3)
    if cfg["ffn_dim_multiplier"] is not None:
        hidden = int(cfg["ffn_dim_multiplier"] * hidden)
    mult = cfg["multiple_of"]
    hidden = mult * ((hidden + mult - 1) // mult)
    cfg["ffn_hidden"] = hidden

    keys = jax.random.split(key, 2 + cfg["n_layers"] * 7)
    kiter = iter(keys)

    def nrm(k, shape):
        return 0.02 * jax.random.normal(k, shape, jnp.float32)

    scale = 1.0 / math.sqrt(Dh)
    params = {
        "tok_embeddings": jax.random.normal(next(kiter), (V, D), jnp.float32).astype(_WDTYPE),
        "norm_w": jnp.ones((D,), jnp.float32),
        "output_t": nrm(next(kiter), (D, V)).astype(_WDTYPE),
        "layers": [],
    }
    for _ in range(cfg["n_layers"]):
        # Pre-transposed (in, out) weights; wq columns permuted to half layout
        # and pre-scaled by 1/sqrt(Dh); wk permuted; wq/wk/wv fused.
        wq_t = _interleaved_to_half(nrm(next(kiter), (D, H * Dh)), H, Dh) * scale
        wk_t = _interleaved_to_half(nrm(next(kiter), (D, KVH * Dh)), KVH, Dh)
        wv_t = nrm(next(kiter), (D, KVH * Dh))
        layer = {
            "wqkv_t": jnp.concatenate([wq_t, wk_t, wv_t], axis=1).astype(_WDTYPE),
            "wo_t": nrm(next(kiter), (H * Dh, D)).astype(_WDTYPE),
            "w1_t": nrm(next(kiter), (D, hidden)).astype(_WDTYPE),
            "w2_t": nrm(next(kiter), (hidden, D)).astype(_WDTYPE),
            "w3_t": nrm(next(kiter), (D, hidden)).astype(_WDTYPE),
            "attn_norm_w": jnp.ones((D,), jnp.float32),
            "ffn_norm_w": jnp.ones((D,), jnp.float32),
        }
        params["layers"].append(layer)
    return params


def attention_forward(x, layer, cos_bs, sin_bs, cfg):
    B, S, D = x.shape
    H, KVH = cfg["n_heads"], cfg["n_kv_heads"]
    Dh = D // H

    x2d = x.reshape(B * S, D)
    q2d, k2d, v2d = pallas_qkv_rope(
        x2d, layer["wqkv_t"], cos_bs, sin_bs,
        n_heads=H, n_kv_heads=KVH, head_dim=Dh)

    xq = q2d.reshape(B, S, H * Dh)
    xk = k2d.reshape(B, S, KVH * Dh)
    xv = v2d.reshape(B, S, KVH * Dh)

    out = pallas_attention(xq, xk, xv, n_heads=H, n_kv_heads=KVH, head_dim=Dh)
    out2d = out.reshape(B * S, H * Dh)
    return pallas_matmul(out2d, layer["wo_t"]).reshape(B, S, D)


def transformer_block(x, layer, cos_bs, sin_bs, cfg):
    B, S, D = x.shape
    eps = cfg["norm_eps"]
    xn = pallas_rmsnorm(x.reshape(B * S, D), layer["attn_norm_w"], eps).reshape(B, S, D)
    h = x + attention_forward(xn, layer, cos_bs, sin_bs, cfg)
    hn = pallas_rmsnorm(h.reshape(B * S, D), layer["ffn_norm_w"], eps)
    ffn_out = pallas_ffn(hn, layer["w1_t"], layer["w3_t"], layer["w2_t"]).reshape(B, S, D)
    return h + ffn_out


def llama_forward(params, tokens, targets, cfg):
    """Training-path forward (targets given -> causal mask, returns (logits, loss))."""
    B, S = tokens.shape
    D, V = cfg["dim"], cfg["vocab_size"]
    H = cfg["n_heads"]
    Dh = D // H

    # token embedding (gather -- plain-JAX glue), bf16 residual stream
    h = jnp.take(params["tok_embeddings"], tokens, axis=0)       # (B, S, D)

    # RoPE tables (half layout, batch-tiled), computed once per forward
    cos, sin = precompute_freqs(Dh, cfg["max_seq_len"], cfg["rope_theta"])
    cos_bs, sin_bs = rope_tables(cos[:S], sin[:S], B)            # (B*S, Dh)

    for layer in params["layers"]:
        h = transformer_block(h, layer, cos_bs, sin_bs, cfg)

    h2d = pallas_rmsnorm(h.reshape(B * S, D), params["norm_w"], cfg["norm_eps"])
    logits = pallas_matmul(h2d, params["output_t"], out_dtype=jnp.float32)   # (B*S, V)

    # cross-entropy (mean over all tokens) -- plain-JAX glue on small logits
    logp = jax.nn.log_softmax(logits, axis=-1)
    tgt = targets.reshape(-1, 1)
    loss = -jnp.mean(jnp.take_along_axis(logp, tgt, axis=-1))

    return logits.reshape(B, S, V), loss


# ----------------------------------------------------------------------------
# Main
# ----------------------------------------------------------------------------

if __name__ == "__main__":
    cfg = {
        "vocab_size": 256,
        "dim": 64,
        "n_layers": 2,
        "n_heads": 4,
        "n_kv_heads": 2,
        "max_seq_len": 16,
        "multiple_of": 32,
        "ffn_dim_multiplier": None,
        "norm_eps": 1e-6,
        "rope_theta": 10000.0,
    }
    B, S = 2, cfg["max_seq_len"]

    root = jax.random.PRNGKey(0)
    k_params, k_tok, k_tgt = jax.random.split(root, 3)
    params = init_params(k_params, cfg)
    tokens = jax.random.randint(k_tok, (B, S), 0, cfg["vocab_size"], dtype=jnp.int32)
    targets = jax.random.randint(k_tgt, (B, S), 0, cfg["vocab_size"], dtype=jnp.int32)

    fwd = jax.jit(functools.partial(llama_forward, cfg=cfg))
    logits, loss = fwd(params, tokens, targets)
    jax.block_until_ready((logits, loss))

    assert logits.shape == (B, S, cfg["vocab_size"])
    assert logits.dtype == jnp.float32
    assert jnp.isfinite(loss)
    print("KERNEL_OK")
</pallas_src>

<mosaic_0001>
module attributes {stable_mosaic.version = 11 : i64} {
  func.func @_rmsnorm_kernel(%arg0: i32, %arg1: memref<32x64xbf16, #tpu.memory_space<vmem>>, %arg2: memref<1x64xf32, #tpu.memory_space<vmem>>, %arg3: memref<32x64xbf16, #tpu.memory_space<vmem>>) attributes {dimension_semantics = [#tpu.dimension_semantics<parallel>], iteration_bounds = array<i64: 1>, scalar_prefetch = 0 : i64, scratch_operands = 0 : i64, tpu.core_type = #tpu.core_type<tc>, window_params = [{transform_indices = @transform_0, window_bounds = array<i64: 32, 64>}, {pipeline_mode = #tpu.pipeline_mode<synchronous>, transform_indices = @transform_1, window_bounds = array<i64: 1, 64>}, {transform_indices = @transform_2, window_bounds = array<i64: 32, 64>}]} {
    %c0 = arith.constant 0 : index
    %c0_0 = arith.constant 0 : index
    %0 = vector.load %arg1[%c0, %c0_0] : memref<32x64xbf16, #tpu.memory_space<vmem>>, vector<32x64xbf16>
    %1 = arith.extf %0 : vector<32x64xbf16> to vector<32x64xf32>
    %2 = arith.mulf %1, %1 : vector<32x64xf32>
    %cst = arith.constant dense<0.000000e+00> : vector<32xf32>
    %3 = vector.multi_reduction <add>, %2, %cst [1] : vector<32x64xf32> to vector<32xf32>
    %4 = vector.shape_cast %3 : vector<32xf32> to vector<32x1xf32>
    %cst_1 = arith.constant 6.400000e+01 : f32
    %5 = vector.broadcast %cst_1 : f32 to vector<32x1xf32>
    %6 = arith.divf %4, %5 : vector<32x1xf32>
    %cst_2 = arith.constant 9.99999997E-7 : f32
    %7 = vector.broadcast %cst_2 : f32 to vector<32x1xf32>
    %8 = arith.addf %6, %7 : vector<32x1xf32>
    %9 = math.rsqrt %8 : vector<32x1xf32>
    %10 = vector.broadcast %9 : vector<32x1xf32> to vector<32x64xf32>
    %11 = arith.mulf %1, %10 : vector<32x64xf32>
    %c0_3 = arith.constant 0 : index
    %c0_4 = arith.constant 0 : index
    %12 = vector.load %arg2[%c0_3, %c0_4] : memref<1x64xf32, #tpu.memory_space<vmem>>, vector<1x64xf32>
    %13 = vector.broadcast %12 : vector<1x64xf32> to vector<32x64xf32>
    %14 = arith.mulf %11, %13 : vector<32x64xf32>
    %15 = arith.truncf %14 : vector<32x64xf32> to vector<32x64xbf16>
    %c0_5 = arith.constant 0 : index
    %c0_6 = arith.constant 0 : index
    %16 = vector.load %arg3[%c0_5, %c0_6] : memref<32x64xbf16, #tpu.memory_space<vmem>>, vector<32x64xbf16>
    tpu.vector_store %arg3[%c0_5, %c0_6], %15 {strides = array<i32>} : memref<32x64xbf16, #tpu.memory_space<vmem>>, vector<32x64xbf16>,
    return
  }
  func.func @transform_0(%arg0: i32) -> (i32, i32) {
    %c0_i32 = arith.constant 0 : i32
    %c0_i32_0 = arith.constant 0 : i32
    return %arg0, %c0_i32 : i32, i32
  }
  func.func @transform_1(%arg0: i32) -> (i32, i32) {
    %c0_i32 = arith.constant 0 : i32
    %c0_i32_0 = arith.constant 0 : i32
    %c0_i32_1 = arith.constant 0 : i32
    return %c0_i32, %c0_i32_0 : i32, i32
  }
  func.func @transform_2(%arg0: i32) -> (i32, i32) {
    %c0_i32 = arith.constant 0 : i32
    %c0_i32_0 = arith.constant 0 : i32
    return %arg0, %c0_i32 : i32, i32
  }
}

module attributes {stable_mosaic.version = 11 : i64} {
  func.func @_qkv_rope_kernel(%arg0: i32, %arg1: i32, %arg2: memref<32x64xbf16, #tpu.memory_space<vmem>>, %arg3: memref<64x128xbf16, #tpu.memory_space<vmem>>, %arg4: memref<32x16xf32, #tpu.memory_space<vmem>>, %arg5: memref<32x16xf32, #tpu.memory_space<vmem>>, %arg6: memref<32x64xbf16, #tpu.memory_space<vmem>>, %arg7: memref<32x32xbf16, #tpu.memory_space<vmem>>, %arg8: memref<32x32xbf16, #tpu.memory_space<vmem>>, %arg9: memref<32x128xf32, #tpu.memory_space<vmem>>) attributes {dimension_semantics = [#tpu.dimension_semantics<parallel>, #tpu.dimension_semantics<arbitrary>], iteration_bounds = array<i64: 1, 1>, scalar_prefetch = 0 : i64, scratch_operands = 1 : i64, tpu.core_type = #tpu.core_type<tc>, window_params = [{transform_indices = @transform_0, window_bounds = array<i64: 32, 64>}, {transform_indices = @transform_1, window_bounds = array<i64: 64, 128>}, {transform_indices = @transform_2, window_bounds = array<i64: 32, 16>}, {transform_indices = @transform_3, window_bounds = array<i64: 32, 16>}, {transform_indices = @transform_4, window_bounds = array<i64: 32, 64>}, {transform_indices = @transform_5, window_bounds = array<i64: 32, 32>}, {transform_indices = @transform_6, window_bounds = array<i64: 32, 32>}]} {
    %c0_i32 = arith.constant 0 : i32
    %0 = arith.cmpi eq, %arg1, %c0_i32 : i32
    %1 = arith.extui %0 : i1 to i32
    %c0_i32_0 = arith.constant 0 : i32
    %2 = arith.cmpi ne, %1, %c0_i32_0 : i32
    scf.if %2 {
      %cst_10 = arith.constant 0.000000e+00 : f32
      %12 = vector.broadcast %cst_10 : f32 to vector<32x128xf32>
      %c0_11 = arith.constant 0 : index
      %c0_12 = arith.constant 0 : index
      %13 = vector.load %arg9[%c0_11, %c0_12] : memref<32x128xf32, #tpu.memory_space<vmem>>, vector<32x128xf32>
      tpu.vector_store %arg9[%c0_11, %c0_12], %12 {strides = array<i32>} : memref<32x128xf32, #tpu.memory_space<vmem>>, vector<32x128xf32>,
    } else {
    }
    %c0 = arith.constant 0 : index
    %c0_1 = arith.constant 0 : index
    %3 = vector.load %arg9[%c0, %c0_1] : memref<32x128xf32, #tpu.memory_space<vmem>>, vector<32x128xf32>
    %c0_2 = arith.constant 0 : index
    %c0_3 = arith.constant 0 : index
    %4 = vector.load %arg2[%c0_2, %c0_3] : memref<32x64xbf16, #tpu.memory_space<vmem>>, vector<32x64xbf16>
    %c0_4 = arith.constant 0 : index
    %c0_5 = arith.constant 0 : index
    %5 = vector.load %arg3[%c0_4, %c0_5] : memref<64x128xbf16, #tpu.memory_space<vmem>>, vector<64x128xbf16>
    %cst = arith.constant dense<0.000000e+00> : vector<32x128xf32>
    %6 = tpu.matmul %4, %5, %cst {dimension_numbers = #tpu.dot_dimension_numbers<[1], [0], [0], [1], [0, 0, 1, 1], [], []>} : vector<32x64xbf16>, vector<64x128xbf16>, vector<32x128xf32> -> vector<32x128xf32>
    %7 = arith.addf %3, %6 : vector<32x128xf32>
    %c0_6 = arith.constant 0 : index
    %c0_7 = arith.constant 0 : index
    %8 = vector.load %arg9[%c0_6, %c0_7] : memref<32x128xf32, #tpu.memory_space<vmem>>, vector<32x128xf32>
    tpu.vector_store %arg9[%c0_6, %c0_7], %7 {strides = array<i32>} : memref<32x128xf32, #tpu.memory_space<vmem>>, vector<32x128xf32>,
    %c0_i32_8 = arith.constant 0 : i32
    %9 = arith.cmpi eq, %arg1, %c0_i32_8 : i32
    %10 = arith.extui %9 : i1 to i32
    %c0_i32_9 = arith.constant 0 : i32
    %11 = arith.cmpi ne, %10, %c0_i32_9 : i32
    scf.if %11 {
      %c0_10 = arith.constant 0 : index
      %c0_11 = arith.constant 0 : index
      %12 = vector.load %arg4[%c0_10, %c0_11] : memref<32x16xf32, #tpu.memory_space<vmem>>, vector<32x16xf32>
      %c0_12 = arith.constant 0 : index
      %c0_13 = arith.constant 0 : index
      %13 = vector.load %arg5[%c0_12, %c0_13] : memref<32x16xf32, #tpu.memory_space<vmem>>, vector<32x16xf32>
      %c0_14 = arith.constant 0 : index
      %c0_15 = arith.constant 0 : index
      %14 = vector.load %arg9[%c0_14, %c0_15] : memref<32x128xf32, #tpu.memory_space<vmem>>, vector<32x16xf32>
      %15 = vector.extract_strided_slice %14 {offsets = [0, 8], sizes = [32, 8], strides = [1, 1]} : vector<32x16xf32> to vector<32x8xf32>
      %cst_16 = arith.constant 0.000000e+00 : f32
      %16 = vector.broadcast %cst_16 : f32 to vector<32x8xf32>
      %17 = arith.subf %16, %15 : vector<32x8xf32>
      %18 = vector.extract_strided_slice %14 {offsets = [0, 0], sizes = [32, 8], strides = [1, 1]} : vector<32x16xf32> to vector<32x8xf32>
      %19 = tpu.concatenate %17, %18 in 1 : vector<32x8xf32>, vector<32x8xf32> -> vector<32x16xf32>
      %20 = arith.mulf %14, %12 : vector<32x16xf32>
      %21 = arith.mulf %19, %13 : vector<32x16xf32>
      %22 = arith.addf %20, %21 : vector<32x16xf32>
      %23 = arith.truncf %22 : vector<32x16xf32> to vector<32x16xbf16>
      %c0_17 = arith.constant 0 : index
      %c0_18 = arith.constant 0 : index
      %24 = vector.load %arg6[%c0_17, %c0_18] : memref<32x64xbf16, #tpu.memory_space<vmem>>, vector<32x16xbf16>
      tpu.vector_store %arg6[%c0_17, %c0_18], %23 {strides = array<i32>} : memref<32x64xbf16, #tpu.memory_space<vmem>>, vector<32x16xbf16>,
      %c0_19 = arith.constant 0 : index
      %c16 = arith.constant 16 : index
      %25 = vector.load %arg9[%c0_19, %c16] : memref<32x128xf32, #tpu.memory_space<vmem>>, vector<32x16xf32>
      %26 = vector.extract_strided_slice %25 {offsets = [0, 8], sizes = [32, 8], strides = [1, 1]} : vector<32x16xf32> to vector<32x8xf32>
      %cst_20 = arith.constant 0.000000e+00 : f32
      %27 = vector.broadcast %cst_20 : f32 to vector<32x8xf32>
      %28 = arith.subf %27, %26 : vector<32x8xf32>
      %29 = vector.extract_strided_slice %25 {offsets = [0, 0], sizes = [32, 8], strides = [1, 1]} : vector<32x16xf32> to vector<32x8xf32>
      %30 = tpu.concatenate %28, %29 in 1 : vector<32x8xf32>, vector<32x8xf32> -> vector<32x16xf32>
      %31 = arith.mulf %25, %12 : vector<32x16xf32>
      %32 = arith.mulf %30, %13 : vector<32x16xf32>
      %33 = arith.addf %31, %32 : vector<32x16xf32>
      %34 = arith.truncf %33 : vector<32x16xf32> to vector<32x16xbf16>
      %c0_21 = arith.constant 0 : index
      %c16_22 = arith.constant 16 : index
      %35 = vector.load %arg6[%c0_21, %c16_22] : memref<32x64xbf16, #tpu.memory_space<vmem>>, vector<32x16xbf16>
      tpu.vector_store %arg6[%c0_21, %c16_22], %34 {strides = array<i32>} : memref<32x64xbf16, #tpu.memory_space<vmem>>, vector<32x16xbf16>,
      %c0_23 = arith.constant 0 : index
      %c32 = arith.constant 32 : index
      %36 = vector.load %arg9[%c0_23, %c32] : memref<32x128xf32, #tpu.memory_space<vmem>>, vector<32x16xf32>
      %37 = vector.extract_strided_slice %36 {offsets = [0, 8], sizes = [32, 8], strides = [1, 1]} : vector<32x16xf32> to vector<32x8xf32>
      %cst_24 = arith.constant 0.000000e+00 : f32
      %38 = vector.broadcast %cst_24 : f32 to vector<32x8xf32>
      %39 = arith.subf %38, %37 : vector<32x8xf32>
      %40 = vector.extract_strided_slice %36 {offsets = [0, 0], sizes = [32, 8], strides = [1, 1]} : vector<32x16xf32> to vector<32x8xf32>
      %41 = tpu.concatenate %39, %40 in 1 : vector<32x8xf32>, vector<32x8xf32> -> vector<32x16xf32>
      %42 = arith.mulf %36, %12 : vector<32x16xf32>
      %43 = arith.mulf %41, %13 : vector<32x16xf32>
      %44 = arith.addf %42, %43 : vector<32x16xf32>
      %45 = arith.truncf %44 : vector<32x16xf32> to vector<32x16xbf16>
      %c0_25 = arith.constant 0 : index
      %c32_26 = arith.constant 32 : index
      %46 = vector.load %arg6[%c0_25, %c32_26] : memref<32x64xbf16, #tpu.memory_space<vmem>>, vector<32x16xbf16>
      tpu.vector_store %arg6[%c0_25, %c32_26], %45 {strides = array<i32>} : memref<32x64xbf16, #tpu.memory_space<vmem>>, vector<32x16xbf16>,
      %c0_27 = arith.constant 0 : index
      %c48 = arith.constant 48 : index
      %47 = vector.load %arg9[%c0_27, %c48] : memref<32x128xf32, #tpu.memory_space<vmem>>, vector<32x16xf32>
      %48 = vector.extract_strided_slice %47 {offsets = [0, 8], sizes = [32, 8], strides = [1, 1]} : vector<32x16xf32> to vector<32x8xf32>
      %cst_28 = arith.constant 0.000000e+00 : f32
      %49 = vector.broadcast %cst_28 : f32 to vector<32x8xf32>
      %50 = arith.subf %49, %48 : vector<32x8xf32>
      %51 = vector.extract_strided_slice %47 {offsets = [0, 0], sizes = [32, 8], strides = [1, 1]} : vector<32x16xf32> to vector<32x8xf32>
      %52 = tpu.concatenate %50, %51 in 1 : vector<32x8xf32>, vector<32x8xf32> -> vector<32x16xf32>
      %53 = arith.mulf %47, %12 : vector<32x16xf32>
      %54 = arith.mulf %52, %13 : vector<32x16xf32>
      %55 = arith.addf %53, %54 : vector<32x16xf32>
      %56 = arith.truncf %55 : vector<32x16xf32> to vector<32x16xbf16>
      %c0_29 = arith.constant 0 : index
      %c48_30 = arith.constant 48 : index
      %57 = vector.load %arg6[%c0_29, %c48_30] : memref<32x64xbf16, #tpu.memory_space<vmem>>, vector<32x16xbf16>
      tpu.vector_store %arg6[%c0_29, %c48_30], %56 {strides = array<i32>} : memref<32x64xbf16, #tpu.memory_space<vmem>>, vector<32x16xbf16>,
      %c0_31 = arith.constant 0 : index
      %c64 = arith.constant 64 : index
      %58 = vector.load %arg9[%c0_31, %c64] : memref<32x128xf32, #tpu.memory_space<vmem>>, vector<32x16xf32>
      %59 = vector.extract_strided_slice %58 {offsets = [0, 8], sizes = [32, 8], strides = [1, 1]} : vector<32x16xf32> to vector<32x8xf32>
      %cst_32 = arith.constant 0.000000e+00 : f32
      %60 = vector.broadcast %cst_32 : f32 to vector<32x8xf32>
      %61 = arith.subf %60, %59 : vector<32x8xf32>
      %62 = vector.extract_strided_slice %58 {offsets = [0, 0], sizes = [32, 8], strides = [1, 1]} : vector<32x16xf32> to vector<32x8xf32>
      %63 = tpu.concatenate %61, %62 in 1 : vector<32x8xf32>, vector<32x8xf32> -> vector<32x16xf32>
      %64 = arith.mulf %58, %12 : vector<32x16xf32>
      %65 = arith.mulf %63, %13 : vector<32x16xf32>
      %66 = arith.addf %64, %65 : vector<32x16xf32>
      %67 = arith.truncf %66 : vector<32x16xf32> to vector<32x16xbf16>
      %c0_33 = arith.constant 0 : index
      %c0_34 = arith.constant 0 : index
      %68 = vector.load %arg7[%c0_33, %c0_34] : memref<32x32xbf16, #tpu.memory_space<vmem>>, vector<32x16xbf16>
      tpu.vector_store %arg7[%c0_33, %c0_34], %67 {strides = array<i32>} : memref<32x32xbf16, #tpu.memory_space<vmem>>, vector<32x16xbf16>,
      %c0_35 = arith.constant 0 : index
      %c80 = arith.constant 80 : index
      %69 = vector.load %arg9[%c0_35, %c80] : memref<32x128xf32, #tpu.memory_space<vmem>>, vector<32x16xf32>
      %70 = vector.extract_strided_slice %69 {offsets = [0, 8], sizes = [32, 8], strides = [1, 1]} : vector<32x16xf32> to vector<32x8xf32>
      %cst_36 = arith.constant 0.000000e+00 : f32
      %71 = vector.broadcast %cst_36 : f32 to vector<32x8xf32>
      %72 = arith.subf %71, %70 : vector<32x8xf32>
      %73 = vector.extract_strided_slice %69 {offsets = [0, 0], sizes = [32, 8], strides = [1, 1]} : vector<32x16xf32> to vector<32x8xf32>
      %74 = tpu.concatenate %72, %73 in 1 : vector<32x8xf32>, vector<32x8xf32> -> vector<32x16xf32>
      %75 = arith.mulf %69, %12 : vector<32x16xf32>
      %76 = arith.mulf %74, %13 : vector<32x16xf32>
      %77 = arith.addf %75, %76 : vector<32x16xf32>
      %78 = arith.truncf %77 : vector<32x16xf32> to vector<32x16xbf16>
      %c0_37 = arith.constant 0 : index
      %c16_38 = arith.constant 16 : index
      %79 = vector.load %arg7[%c0_37, %c16_38] : memref<32x32xbf16, #tpu.memory_space<vmem>>, vector<32x16xbf16>
      tpu.vector_store %arg7[%c0_37, %c16_38], %78 {strides = array<i32>} : memref<32x32xbf16, #tpu.memory_space<vmem>>, vector<32x16xbf16>,
      %c0_39 = arith.constant 0 : index
      %c96 = arith.constant 96 : index
      %80 = vector.load %arg9[%c0_39, %c96] : memref<32x128xf32, #tpu.memory_space<vmem>>, vector<32x32xf32>
      %81 = arith.truncf %80 : vector<32x32xf32> to vector<32x32xbf16>
      %c0_40 = arith.constant 0 : index
      %c0_41 = arith.constant 0 : index
      %82 = vector.load %arg8[%c0_40, %c0_41] : memref<32x32xbf16, #tpu.memory_space<vmem>>, vector<32x32xbf16>
      tpu.vector_store %arg8[%c0_40, %c0_41], %81 {strides = array<i32>} : memref<32x32xbf16, #tpu.memory_space<vmem>>, vector<32x32xbf16>,
    } else {
    }
    return
  }
  func.func @transform_0(%arg0: i32, %arg1: i32) -> (i32, i32) {
    %c0_i32 = arith.constant 0 : i32
    return %arg0, %arg1 : i32, i32
  }
  func.func @transform_1(%arg0: i32, %arg1: i32) -> (i32, i32) {
    %c0_i32 = arith.constant 0 : i32
    %c0_i32_0 = arith.constant 0 : i32
    return %arg1, %c0_i32 : i32, i32
  }
  func.func @transform_2(%arg0: i32, %arg1: i32) -> (i32, i32) {
    %c0_i32 = arith.constant 0 : i32
    %c0_i32_0 = arith.constant 0 : i32
    return %arg0, %c0_i32 : i32, i32
  }
  func.func @transform_3(%arg0: i32, %arg1: i32) -> (i32, i32) {
    %c0_i32 = arith.constant 0 : i32
    %c0_i32_0 = arith.constant 0 : i32
    return %arg0, %c0_i32 : i32, i32
  }
  func.func @transform_4(%arg0: i32, %arg1: i32) -> (i32, i32) {
    %c0_i32 = arith.constant 0 : i32
    %c0_i32_0 = arith.constant 0 : i32
    return %arg0, %c0_i32 : i32, i32
  }
  func.func @transform_5(%arg0: i32, %arg1: i32) -> (i32, i32) {
    %c0_i32 = arith.constant 0 : i32
    %c0_i32_0 = arith.constant 0 : i32
    return %arg0, %c0_i32 : i32, i32
  }
  func.func @transform_6(%arg0: i32, %arg1: i32) -> (i32, i32) {
    %c0_i32 = arith.constant 0 : i32
    %c0_i32_0 = arith.constant 0 : i32
    return %arg0, %c0_i32 : i32, i32
  }
}

module attributes {stable_mosaic.version = 11 : i64} {
  func.func @_attention_kernel(%arg0: i32, %arg1: i32, %arg2: i32, %arg3: memref<1x16x64xbf16, #tpu.memory_space<vmem>>, %arg4: memref<1x16x32xbf16, #tpu.memory_space<vmem>>, %arg5: memref<1x16x32xbf16, #tpu.memory_space<vmem>>, %arg6: memref<1x16x64xbf16, #tpu.memory_space<vmem>>, %arg7: memref<2x32x1xf32, #tpu.memory_space<vmem>>, %arg8: memref<2x32x1xf32, #tpu.memory_space<vmem>>, %arg9: memref<2x32x16xf32, #tpu.memory_space<vmem>>, %arg10: memref<2x32x16xbf16, #tpu.memory_space<vmem>>) attributes {dimension_semantics = [#tpu.dimension_semantics<parallel>, #tpu.dimension_semantics<parallel>, #tpu.dimension_semantics<arbitrary>], iteration_bounds = array<i64: 2, 1, 1>, scalar_prefetch = 0 : i64, scratch_operands = 4 : i64, tpu.core_type = #tpu.core_type<tc>, window_params = [{transform_indices = @transform_0, window_bounds = array<i64: 1, 16, 64>}, {transform_indices = @transform_1, window_bounds = array<i64: 1, 16, 32>}, {transform_indices = @transform_2, window_bounds = array<i64: 1, 16, 32>}, {transform_indices = @transform_3, window_bounds = array<i64: 1, 16, 64>}]} {
    %c0_i32 = arith.constant 0 : i32
    %0 = arith.cmpi eq, %arg2, %c0_i32 : i32
    %1 = arith.extui %0 : i1 to i32
    %c0_i32_0 = arith.constant 0 : i32
    %2 = arith.cmpi ne, %1, %c0_i32_0 : i32
    scf.if %2 {
      %cst = arith.constant -1.000000e+30 : f32
      %12 = vector.broadcast %cst : f32 to vector<2x32x1xf32>
      %c0 = arith.constant 0 : index
      %c0_5 = arith.constant 0 : index
      %c0_6 = arith.constant 0 : index
      %13 = vector.load %arg7[%c0, %c0_5, %c0_6] : memref<2x32x1xf32, #tpu.memory_space<vmem>>, vector<2x32x1xf32>
      tpu.vector_store %arg7[%c0, %c0_5, %c0_6], %12 {strides = array<i32>} : memref<2x32x1xf32, #tpu.memory_space<vmem>>, vector<2x32x1xf32>,
      %cst_7 = arith.constant 0.000000e+00 : f32
      %14 = vector.broadcast %cst_7 : f32 to vector<2x32x1xf32>
      %c0_8 = arith.constant 0 : index
      %c0_9 = arith.constant 0 : index
      %c0_10 = arith.constant 0 : index
      %15 = vector.load %arg8[%c0_8, %c0_9, %c0_10] : memref<2x32x1xf32, #tpu.memory_space<vmem>>, vector<2x32x1xf32>
      tpu.vector_store %arg8[%c0_8, %c0_9, %c0_10], %14 {strides = array<i32>} : memref<2x32x1xf32, #tpu.memory_space<vmem>>, vector<2x32x1xf32>,
      %cst_11 = arith.constant 0.000000e+00 : f32
      %16 = vector.broadcast %cst_11 : f32 to vector<2x32x16xf32>
      %c0_12 = arith.constant 0 : index
      %c0_13 = arith.constant 0 : index
      %c0_14 = arith.constant 0 : index
      %17 = vector.load %arg9[%c0_12, %c0_13, %c0_14] : memref<2x32x16xf32, #tpu.memory_space<vmem>>, vector<2x32x16xf32>
      tpu.vector_store %arg9[%c0_12, %c0_13, %c0_14], %16 {strides = array<i32>} : memref<2x32x16xf32, #tpu.memory_space<vmem>>, vector<2x32x16xf32>,
      %c0_15 = arith.constant 0 : index
      %c0_16 = arith.constant 0 : index
      %c0_17 = arith.constant 0 : index
      %18 = vector.load %arg3[%c0_15, %c0_16, %c0_17] : memref<1x16x64xbf16, #tpu.memory_space<vmem>>, vector<1x16x16xbf16>
      %19 = vector.shape_cast %18 : vector<1x16x16xbf16> to vector<16x16xbf16>
      %c0_18 = arith.constant 0 : index
      %c0_19 = arith.constant 0 : index
      %c0_20 = arith.constant 0 : index
      %20 = vector.load %arg10[%c0_18, %c0_19, %c0_20] : memref<2x32x16xbf16, #tpu.memory_space<vmem>>, vector<1x16x16xbf16>
      %21 = vector.shape_cast %20 : vector<1x16x16xbf16> to vector<16x16xbf16>
      %22 = vector.shape_cast %19 : vector<16x16xbf16> to vector<1x16x16xbf16>
      tpu.vector_store %arg10[%c0_18, %c0_19, %c0_20], %22 {strides = array<i32>} : memref<2x32x16xbf16, #tpu.memory_space<vmem>>, vector<1x16x16xbf16>,
      %c0_21 = arith.constant 0 : index
      %c0_22 = arith.constant 0 : index
      %c16 = arith.constant 16 : index
      %23 = vector.load %arg3[%c0_21, %c0_22, %c16] : memref<1x16x64xbf16, #tpu.memory_space<vmem>>, vector<1x16x16xbf16>
      %24 = vector.shape_cast %23 : vector<1x16x16xbf16> to vector<16x16xbf16>
      %c0_23 = arith.constant 0 : index
      %c16_24 = arith.constant 16 : index
      %c0_25 = arith.constant 0 : index
      %25 = vector.load %arg10[%c0_23, %c16_24, %c0_25] : memref<2x32x16xbf16, #tpu.memory_space<vmem>>, vector<1x16x16xbf16>
      %26 = vector.shape_cast %25 : vector<1x16x16xbf16> to vector<16x16xbf16>
      %27 = vector.shape_cast %24 : vector<16x16xbf16> to vector<1x16x16xbf16>
      tpu.vector_store %arg10[%c0_23, %c16_24, %c0_25], %27 {strides = array<i32>} : memref<2x32x16xbf16, #tpu.memory_space<vmem>>, vector<1x16x16xbf16>,
      %c0_26 = arith.constant 0 : index
      %c0_27 = arith.constant 0 : index
      %c32 = arith.constant 32 : index
      %28 = vector.load %arg3[%c0_26, %c0_27, %c32] : memref<1x16x64xbf16, #tpu.memory_space<vmem>>, vector<1x16x16xbf16>
      %29 = vector.shape_cast %28 : vector<1x16x16xbf16> to vector<16x16xbf16>
      %c1 = arith.constant 1 : index
      %c0_28 = arith.constant 0 : index
      %c0_29 = arith.constant 0 : index
      %30 = vector.load %arg10[%c1, %c0_28, %c0_29] : memref<2x32x16xbf16, #tpu.memory_space<vmem>>, vector<1x16x16xbf16>
      %31 = vector.shape_cast %30 : vector<1x16x16xbf16> to vector<16x16xbf16>
      %32 = vector.shape_cast %29 : vector<16x16xbf16> to vector<1x16x16xbf16>
      tpu.vector_store %arg10[%c1, %c0_28, %c0_29], %32 {strides = array<i32>} : memref<2x32x16xbf16, #tpu.memory_space<vmem>>, vector<1x16x16xbf16>,
      %c0_30 = arith.constant 0 : index
      %c0_31 = arith.constant 0 : index
      %c48 = arith.constant 48 : index
      %33 = vector.load %arg3[%c0_30, %c0_31, %c48] : memref<1x16x64xbf16, #tpu.memory_space<vmem>>, vector<1x16x16xbf16>
      %34 = vector.shape_cast %33 : vector<1x16x16xbf16> to vector<16x16xbf16>
      %c1_32 = arith.constant 1 : index
      %c16_33 = arith.constant 16 : index
      %c0_34 = arith.constant 0 : index
      %35 = vector.load %arg10[%c1_32, %c16_33, %c0_34] : memref<2x32x16xbf16, #tpu.memory_space<vmem>>, vector<1x16x16xbf16>
      %36 = vector.shape_cast %35 : vector<1x16x16xbf16> to vector<16x16xbf16>
      %37 = vector.shape_cast %34 : vector<16x16xbf16> to vector<1x16x16xbf16>
      tpu.vector_store %arg10[%c1_32, %c16_33, %c0_34], %37 {strides = array<i32>} : memref<2x32x16xbf16, #tpu.memory_space<vmem>>, vector<1x16x16xbf16>,
    } else {
    }
    %c16_i32 = arith.constant 16 : i32
    %3 = arith.muli %arg2, %c16_i32 : i32
    %c1_i32 = arith.constant 1 : i32
    %4 = arith.addi %arg1, %c1_i32 : i32
    %c16_i32_1 = arith.constant 16 : i32
    %5 = arith.muli %4, %c16_i32_1 : i32
    %6 = arith.cmpi slt, %3, %5 : i32
    %7 = arith.extui %6 : i1 to i32
    %c0_i32_2 = arith.constant 0 : i32
    %8 = arith.cmpi ne, %7, %c0_i32_2 : i32
    scf.if %8 {
      %c16_i32_5 = arith.constant 16 : i32
      %12 = arith.muli %arg1, %c16_i32_5 : i32
      %13 = tpu.iota {dimensions = array<i32: 0>} : vector<32x16xi32>
      %c16_i32_6 = arith.constant 16 : i32
      %c0_i32_7 = arith.constant 0 : i32
      %14 = arith.cmpi eq, %c16_i32_6, %c0_i32_7 : i32
      %c1_i32_8 = arith.constant 1 : i32
      %15 = arith.select %14, %c1_i32_8, %c16_i32_6 : i32
      %16 = vector.broadcast %15 : i32 to vector<32x16xi32>
      %17 = arith.remsi %13, %16 : vector<32x16xi32>
      %c0_i32_9 = arith.constant 0 : i32
      %18 = vector.broadcast %c0_i32_9 : i32 to vector<32x16xi32>
      %19 = arith.cmpi ne, %17, %18 : vector<32x16xi32>
      %c0_i32_10 = arith.constant 0 : i32
      %20 = vector.broadcast %c0_i32_10 : i32 to vector<32x16xi32>
      %21 = arith.cmpi slt, %17, %20 : vector<32x16xi32>
      %c0_i32_11 = arith.constant 0 : i32
      %22 = arith.cmpi slt, %15, %c0_i32_11 : i32
      %23 = vector.broadcast %22 : i1 to vector<32x16xi1>
      %24 = vector.broadcast %23 : vector<32x16xi1> to vector<32x16xi1>
      %25 = arith.xori %21, %24 : vector<32x16xi1>
      %26 = arith.andi %25, %19 : vector<32x16xi1>
      %27 = vector.broadcast %15 : i32 to vector<32x16xi32>
      %28 = arith.addi %17, %27 : vector<32x16xi32>
      %29 = arith.select %26, %28, %17 : vector<32x16xi1>, vector<32x16xi32>
      %30 = vector.broadcast %12 : i32 to vector<32x16xi32>
      %31 = arith.addi %30, %29 : vector<32x16xi32>
      %c16_i32_12 = arith.constant 16 : i32
      %32 = arith.muli %arg2, %c16_i32_12 : i32
      %33 = tpu.iota {dimensions = array<i32: 1>} : vector<32x16xi32>
      %34 = vector.broadcast %32 : i32 to vector<32x16xi32>
      %35 = arith.addi %34, %33 : vector<32x16xi32>
      %c0 = arith.constant 0 : index
      %c0_13 = arith.constant 0 : index
      %c0_14 = arith.constant 0 : index
      %36 = vector.load %arg4[%c0, %c0_13, %c0_14] : memref<1x16x32xbf16, #tpu.memory_space<vmem>>, vector<1x16x16xbf16>
      %37 = vector.shape_cast %36 : vector<1x16x16xbf16> to vector<16x16xbf16>
      %c0_15 = arith.constant 0 : index
      %c0_16 = arith.constant 0 : index
      %c0_17 = arith.constant 0 : index
      %38 = vector.load %arg5[%c0_15, %c0_16, %c0_17] : memref<1x16x32xbf16, #tpu.memory_space<vmem>>, vector<1x16x16xbf16>
      %39 = vector.shape_cast %38 : vector<1x16x16xbf16> to vector<16x16xbf16>
      %c0_18 = arith.constant 0 : index
      %c0_19 = arith.constant 0 : index
      %c0_20 = arith.constant 0 : index
      %40 = vector.load %arg10[%c0_18, %c0_19, %c0_20] : memref<2x32x16xbf16, #tpu.memory_space<vmem>>, vector<1x32x16xbf16>
      %41 = vector.shape_cast %40 : vector<1x32x16xbf16> to vector<32x16xbf16>
      %cst = arith.constant dense<0.000000e+00> : vector<32x16xf32>
      %42 = tpu.matmul %41, %37, %cst {dimension_numbers = #tpu.dot_dimension_numbers<[1], [1], [0], [0], [0, 0, 1, 0], [], []>} : vector<32x16xbf16>, vector<16x16xbf16>, vector<32x16xf32> -> vector<32x16xf32>
      %43 = arith.cmpi sle, %35, %31 : vector<32x16xi32>
      %cst_21 = arith.constant -1.000000e+30 : f32
      %44 = vector.broadcast %cst_21 : f32 to vector<32x16xf32>
      %45 = arith.select %43, %42, %44 : vector<32x16xi1>, vector<32x16xf32>
      %c0_22 = arith.constant 0 : index
      %c0_23 = arith.constant 0 : index
      %c0_24 = arith.constant 0 : index
      %46 = vector.load %arg7[%c0_22, %c0_23, %c0_24] : memref<2x32x1xf32, #tpu.memory_space<vmem>>, vector<1x32x1xf32>
      %47 = vector.shape_cast %46 : vector<1x32x1xf32> to vector<32x1xf32>
      %cst_25 = arith.constant dense<0xFF800000> : vector<32xf32>
      %48 = vector.multi_reduction <maximumf>, %45, %cst_25 [1] : vector<32x16xf32> to vector<32xf32>
      %49 = vector.shape_cast %48 : vector<32xf32> to vector<32x1xf32>
      %50 = arith.maximumf %47, %49 : vector<32x1xf32>
      %51 = arith.subf %47, %50 : vector<32x1xf32>
      %52 = math.exp %51 : vector<32x1xf32>
      %53 = vector.broadcast %50 : vector<32x1xf32> to vector<32x16xf32>
      %54 = arith.subf %45, %53 : vector<32x16xf32>
      %55 = math.exp %54 : vector<32x16xf32>
      %c0_26 = arith.constant 0 : index
      %c0_27 = arith.constant 0 : index
      %c0_28 = arith.constant 0 : index
      %56 = vector.load %arg8[%c0_26, %c0_27, %c0_28] : memref<2x32x1xf32, #tpu.memory_space<vmem>>, vector<1x32x1xf32>
      %57 = vector.shape_cast %56 : vector<1x32x1xf32> to vector<32x1xf32>
      %58 = arith.mulf %52, %57 : vector<32x1xf32>
      %cst_29 = arith.constant dense<0.000000e+00> : vector<32xf32>
      %59 = vector.multi_reduction <add>, %55, %cst_29 [1] : vector<32x16xf32> to vector<32xf32>
      %60 = vector.shape_cast %59 : vector<32xf32> to vector<32x1xf32>
      %61 = arith.addf %58, %60 : vector<32x1xf32>
      %c0_30 = arith.constant 0 : index
      %c0_31 = arith.constant 0 : index
      %c0_32 = arith.constant 0 : index
      %62 = vector.load %arg8[%c0_30, %c0_31, %c0_32] : memref<2x32x1xf32, #tpu.memory_space<vmem>>, vector<1x32x1xf32>
      %63 = vector.shape_cast %62 : vector<1x32x1xf32> to vector<32x1xf32>
      %64 = vector.shape_cast %61 : vector<32x1xf32> to vector<1x32x1xf32>
      tpu.vector_store %arg8[%c0_30, %c0_31, %c0_32], %64 {strides = array<i32>} : memref<2x32x1xf32, #tpu.memory_space<vmem>>, vector<1x32x1xf32>,
      %c0_33 = arith.constant 0 : index
      %c0_34 = arith.constant 0 : index
      %c0_35 = arith.constant 0 : index
      %65 = vector.load %arg9[%c0_33, %c0_34, %c0_35] : memref<2x32x16xf32, #tpu.memory_space<vmem>>, vector<1x32x16xf32>
      %66 = vector.shape_cast %65 : vector<1x32x16xf32> to vector<32x16xf32>
      %67 = vector.broadcast %52 : vector<32x1xf32> to vector<32x16xf32>
      %68 = arith.mulf %67, %66 : vector<32x16xf32>
      %69 = arith.truncf %55 : vector<32x16xf32> to vector<32x16xbf16>
      %cst_36 = arith.constant dense<0.000000e+00> : vector<32x16xf32>
      %70 = tpu.matmul %69, %39, %cst_36 {dimension_numbers = #tpu.dot_dimension_numbers<[1], [0], [0], [1], [0, 0, 1, 1], [], []>} : vector<32x16xbf16>, vector<16x16xbf16>, vector<32x16xf32> -> vector<32x16xf32>
      %71 = arith.addf %68, %70 : vector<32x16xf32>
      %c0_37 = arith.constant 0 : index
      %c0_38 = arith.constant 0 : index
      %c0_39 = arith.constant 0 : index
      %72 = vector.load %arg9[%c0_37, %c0_38, %c0_39] : memref<2x32x16xf32, #tpu.memory_space<vmem>>, vector<1x32x16xf32>
      %73 = vector.shape_cast %72 : vector<1x32x16xf32> to vector<32x16xf32>
      %74 = vector.shape_cast %71 : vector<32x16xf32> to vector<1x32x16xf32>
      tpu.vector_store %arg9[%c0_37, %c0_38, %c0_39], %74 {strides = array<i32>} : memref<2x32x16xf32, #tpu.memory_space<vmem>>, vector<1x32x16xf32>,
      %c0_40 = arith.constant 0 : index
      %c0_41 = arith.constant 0 : index
      %c0_42 = arith.constant 0 : index
      %75 = vector.load %arg7[%c0_40, %c0_41, %c0_42] : memref<2x32x1xf32, #tpu.memory_space<vmem>>, vector<1x32x1xf32>
      %76 = vector.shape_cast %75 : vector<1x32x1xf32> to vector<32x1xf32>
      %77 = vector.shape_cast %50 : vector<32x1xf32> to vector<1x32x1xf32>
      tpu.vector_store %arg7[%c0_40, %c0_41, %c0_42], %77 {strides = array<i32>} : memref<2x32x1xf32, #tpu.memory_space<vmem>>, vector<1x32x1xf32>,
      %c0_43 = arith.constant 0 : index
      %c0_44 = arith.constant 0 : index
      %c16 = arith.constant 16 : index
      %78 = vector.load %arg4[%c0_43, %c0_44, %c16] : memref<1x16x32xbf16, #tpu.memory_space<vmem>>, vector<1x16x16xbf16>
      %79 = vector.shape_cast %78 : vector<1x16x16xbf16> to vector<16x16xbf16>
      %c0_45 = arith.constant 0 : index
      %c0_46 = arith.constant 0 : index
      %c16_47 = arith.constant 16 : index
      %80 = vector.load %arg5[%c0_45, %c0_46, %c16_47] : memref<1x16x32xbf16, #tpu.memory_space<vmem>>, vector<1x16x16xbf16>
      %81 = vector.shape_cast %80 : vector<1x16x16xbf16> to vector<16x16xbf16>
      %c1 = arith.constant 1 : index
      %c0_48 = arith.constant 0 : index
      %c0_49 = arith.constant 0 : index
      %82 = vector.load %arg10[%c1, %c0_48, %c0_49] : memref<2x32x16xbf16, #tpu.memory_space<vmem>>, vector<1x32x16xbf16>
      %83 = vector.shape_cast %82 : vector<1x32x16xbf16> to vector<32x16xbf16>
      %cst_50 = arith.constant dense<0.000000e+00> : vector<32x16xf32>
      %84 = tpu.matmul %83, %79, %cst_50 {dimension_numbers = #tpu.dot_dimension_numbers<[1], [1], [0], [0], [0, 0, 1, 0], [], []>} : vector<32x16xbf16>, vector<16x16xbf16>, vector<32x16xf32> -> vector<32x16xf32>
      %85 = arith.cmpi sle, %35, %31 : vector<32x16xi32>
      %cst_51 = arith.constant -1.000000e+30 : f32
      %86 = vector.broadcast %cst_51 : f32 to vector<32x16xf32>
      %87 = arith.select %85, %84, %86 : vector<32x16xi1>, vector<32x16xf32>
      %c1_52 = arith.constant 1 : index
      %c0_53 = arith.constant 0 : index
      %c0_54 = arith.constant 0 : index
      %88 = vector.load %arg7[%c1_52, %c0_53, %c0_54] : memref<2x32x1xf32, #tpu.memory_space<vmem>>, vector<1x32x1xf32>
      %89 = vector.shape_cast %88 : vector<1x32x1xf32> to vector<32x1xf32>
      %cst_55 = arith.constant dense<0xFF800000> : vector<32xf32>
      %90 = vector.multi_reduction <maximumf>, %87, %cst_55 [1] : vector<32x16xf32> to vector<32xf32>
      %91 = vector.shape_cast %90 : vector<32xf32> to vector<32x1xf32>
      %92 = arith.maximumf %89, %91 : vector<32x1xf32>
      %93 = arith.subf %89, %92 : vector<32x1xf32>
      %94 = math.exp %93 : vector<32x1xf32>
      %95 = vector.broadcast %92 : vector<32x1xf32> to vector<32x16xf32>
      %96 = arith.subf %87, %95 : vector<32x16xf32>
      %97 = math.exp %96 : vector<32x16xf32>
      %c1_56 = arith.constant 1 : index
      %c0_57 = arith.constant 0 : index
      %c0_58 = arith.constant 0 : index
      %98 = vector.load %arg8[%c1_56, %c0_57, %c0_58] : memref<2x32x1xf32, #tpu.memory_space<vmem>>, vector<1x32x1xf32>
      %99 = vector.shape_cast %98 : vector<1x32x1xf32> to vector<32x1xf32>
      %100 = arith.mulf %94, %99 : vector<32x1xf32>
      %cst_59 = arith.constant dense<0.000000e+00> : vector<32xf32>
      %101 = vector.multi_reduction <add>, %97, %cst_59 [1] : vector<32x16xf32> to vector<32xf32>
      %102 = vector.shape_cast %101 : vector<32xf32> to vector<32x1xf32>
      %103 = arith.addf %100, %102 : vector<32x1xf32>
      %c1_60 = arith.constant 1 : index
      %c0_61 = arith.constant 0 : index
      %c0_62 = arith.constant 0 : index
      %104 = vector.load %arg8[%c1_60, %c0_61, %c0_62] : memref<2x32x1xf32, #tpu.memory_space<vmem>>, vector<1x32x1xf32>
      %105 = vector.shape_cast %104 : vector<1x32x1xf32> to vector<32x1xf32>
      %106 = vector.shape_cast %103 : vector<32x1xf32> to vector<1x32x1xf32>
      tpu.vector_store %arg8[%c1_60, %c0_61, %c0_62], %106 {strides = array<i32>} : memref<2x32x1xf32, #tpu.memory_space<vmem>>, vector<1x32x1xf32>,
      %c1_63 = arith.constant 1 : index
      %c0_64 = arith.constant 0 : index
      %c0_65 = arith.constant 0 : index
      %107 = vector.load %arg9[%c1_63, %c0_64, %c0_65] : memref<2x32x16xf32, #tpu.memory_space<vmem>>, vector<1x32x16xf32>
      %108 = vector.shape_cast %107 : vector<1x32x16xf32> to vector<32x16xf32>
      %109 = vector.broadcast %94 : vector<32x1xf32> to vector<32x16xf32>
      %110 = arith.mulf %109, %108 : vector<32x16xf32>
      %111 = arith.truncf %97 : vector<32x16xf32> to vector<32x16xbf16>
      %cst_66 = arith.constant dense<0.000000e+00> : vector<32x16xf32>
      %112 = tpu.matmul %111, %81, %cst_66 {dimension_numbers = #tpu.dot_dimension_numbers<[1], [0], [0], [1], [0, 0, 1, 1], [], []>} : vector<32x16xbf16>, vector<16x16xbf16>, vector<32x16xf32> -> vector<32x16xf32>
      %113 = arith.addf %110, %112 : vector<32x16xf32>
      %c1_67 = arith.constant 1 : index
      %c0_68 = arith.constant 0 : index
      %c0_69 = arith.constant 0 : index
      %114 = vector.load %arg9[%c1_67, %c0_68, %c0_69] : memref<2x32x16xf32, #tpu.memory_space<vmem>>, vector<1x32x16xf32>
      %115 = vector.shape_cast %114 : vector<1x32x16xf32> to vector<32x16xf32>
      %116 = vector.shape_cast %113 : vector<32x16xf32> to vector<1x32x16xf32>
      tpu.vector_store %arg9[%c1_67, %c0_68, %c0_69], %116 {strides = array<i32>} : memref<2x32x16xf32, #tpu.memory_space<vmem>>, vector<1x32x16xf32>,
      %c1_70 = arith.constant 1 : index
      %c0_71 = arith.constant 0 : index
      %c0_72 = arith.constant 0 : index
      %117 = vector.load %arg7[%c1_70, %c0_71, %c0_72] : memref<2x32x1xf32, #tpu.memory_space<vmem>>, vector<1x32x1xf32>
      %118 = vector.shape_cast %117 : vector<1x32x1xf32> to vector<32x1xf32>
      %119 = vector.shape_cast %92 : vector<32x1xf32> to vector<1x32x1xf32>
      tpu.vector_store %arg7[%c1_70, %c0_71, %c0_72], %119 {strides = array<i32>} : memref<2x32x1xf32, #tpu.memory_space<vmem>>, vector<1x32x1xf32>,
    } else {
    }
    %c0_i32_3 = arith.constant 0 : i32
    %9 = arith.cmpi eq, %arg2, %c0_i32_3 : i32
    %10 = arith.extui %9 : i1 to i32
    %c0_i32_4 = arith.constant 0 : i32
    %11 = arith.cmpi ne, %10, %c0_i32_4 : i32
    scf.if %11 {
      %c0 = arith.constant 0 : index
      %c0_5 = arith.constant 0 : index
      %c0_6 = arith.constant 0 : index
      %12 = vector.load %arg9[%c0, %c0_5, %c0_6] : memref<2x32x16xf32, #tpu.memory_space<vmem>>, vector<1x16x16xf32>
      %13 = vector.shape_cast %12 : vector<1x16x16xf32> to vector<16x16xf32>
      %c0_7 = arith.constant 0 : index
      %c0_8 = arith.constant 0 : index
      %c0_9 = arith.constant 0 : index
      %14 = vector.load %arg8[%c0_7, %c0_8, %c0_9] : memref<2x32x1xf32, #tpu.memory_space<vmem>>, vector<1x16x1xf32>
      %15 = vector.shape_cast %14 : vector<1x16x1xf32> to vector<16x1xf32>
      %16 = tpu.reciprocal %15 {approx = true} : vector<16x1xf32> -> vector<16x1xf32>
      %17 = vector.broadcast %16 : vector<16x1xf32> to vector<16x16xf32>
      %18 = arith.mulf %13, %17 : vector<16x16xf32>
      %19 = arith.truncf %18 : vector<16x16xf32> to vector<16x16xbf16>
      %c0_10 = arith.constant 0 : index
      %c0_11 = arith.constant 0 : index
      %c0_12 = arith.constant 0 : index
      %20 = vector.load %arg6[%c0_10, %c0_11, %c0_12] : memref<1x16x64xbf16, #tpu.memory_space<vmem>>, vector<1x16x16xbf16>
      %21 = vector.shape_cast %20 : vector<1x16x16xbf16> to vector<16x16xbf16>
      %22 = vector.shape_cast %19 : vector<16x16xbf16> to vector<1x16x16xbf16>
      tpu.vector_store %arg6[%c0_10, %c0_11, %c0_12], %22 {strides = array<i32>} : memref<1x16x64xbf16, #tpu.memory_space<vmem>>, vector<1x16x16xbf16>,
      %c0_13 = arith.constant 0 : index
      %c16 = arith.constant 16 : index
      %c0_14 = arith.constant 0 : index
      %23 = vector.load %arg9[%c0_13, %c16, %c0_14] : memref<2x32x16xf32, #tpu.memory_space<vmem>>, vector<1x16x16xf32>
      %24 = vector.shape_cast %23 : vector<1x16x16xf32> to vector<16x16xf32>
      %c0_15 = arith.constant 0 : index
      %c16_16 = arith.constant 16 : index
      %c0_17 = arith.constant 0 : index
      %25 = vector.load %arg8[%c0_15, %c16_16, %c0_17] : memref<2x32x1xf32, #tpu.memory_space<vmem>>, vector<1x16x1xf32>
      %26 = vector.shape_cast %25 : vector<1x16x1xf32> to vector<16x1xf32>
      %27 = tpu.reciprocal %26 {approx = true} : vector<16x1xf32> -> vector<16x1xf32>
      %28 = vector.broadcast %27 : vector<16x1xf32> to vector<16x16xf32>
      %29 = arith.mulf %24, %28 : vector<16x16xf32>
      %30 = arith.truncf %29 : vector<16x16xf32> to vector<16x16xbf16>
      %c0_18 = arith.constant 0 : index
      %c0_19 = arith.constant 0 : index
      %c16_20 = arith.constant 16 : index
      %31 = vector.load %arg6[%c0_18, %c0_19, %c16_20] : memref<1x16x64xbf16, #tpu.memory_space<vmem>>, vector<1x16x16xbf16>
      %32 = vector.shape_cast %31 : vector<1x16x16xbf16> to vector<16x16xbf16>
      %33 = vector.shape_cast %30 : vector<16x16xbf16> to vector<1x16x16xbf16>
      tpu.vector_store %arg6[%c0_18, %c0_19, %c16_20], %33 {strides = array<i32>} : memref<1x16x64xbf16, #tpu.memory_space<vmem>>, vector<1x16x16xbf16>,
      %c1 = arith.constant 1 : index
      %c0_21 = arith.constant 0 : index
      %c0_22 = arith.constant 0 : index
      %34 = vector.load %arg9[%c1, %c0_21, %c0_22] : memref<2x32x16xf32, #tpu.memory_space<vmem>>, vector<1x16x16xf32>
      %35 = vector.shape_cast %34 : vector<1x16x16xf32> to vector<16x16xf32>
      %c1_23 = arith.constant 1 : index
      %c0_24 = arith.constant 0 : index
      %c0_25 = arith.constant 0 : index
      %36 = vector.load %arg8[%c1_23, %c0_24, %c0_25] : memref<2x32x1xf32, #tpu.memory_space<vmem>>, vector<1x16x1xf32>
      %37 = vector.shape_cast %36 : vector<1x16x1xf32> to vector<16x1xf32>
      %38 = tpu.reciprocal %37 {approx = true} : vector<16x1xf32> -> vector<16x1xf32>
      %39 = vector.broadcast %38 : vector<16x1xf32> to vector<16x16xf32>
      %40 = arith.mulf %35, %39 : vector<16x16xf32>
      %41 = arith.truncf %40 : vector<16x16xf32> to vector<16x16xbf16>
      %c0_26 = arith.constant 0 : index
      %c0_27 = arith.constant 0 : index
      %c32 = arith.constant 32 : index
      %42 = vector.load %arg6[%c0_26, %c0_27, %c32] : memref<1x16x64xbf16, #tpu.memory_space<vmem>>, vector<1x16x16xbf16>
      %43 = vector.shape_cast %42 : vector<1x16x16xbf16> to vector<16x16xbf16>
      %44 = vector.shape_cast %41 : vector<16x16xbf16> to vector<1x16x16xbf16>
      tpu.vector_store %arg6[%c0_26, %c0_27, %c32], %44 {strides = array<i32>} : memref<1x16x64xbf16, #tpu.memory_space<vmem>>, vector<1x16x16xbf16>,
      %c1_28 = arith.constant 1 : index
      %c16_29 = arith.constant 16 : index
      %c0_30 = arith.constant 0 : index
      %45 = vector.load %arg9[%c1_28, %c16_29, %c0_30] : memref<2x32x16xf32, #tpu.memory_space<vmem>>, vector<1x16x16xf32>
      %46 = vector.shape_cast %45 : vector<1x16x16xf32> to vector<16x16xf32>
      %c1_31 = arith.constant 1 : index
      %c16_32 = arith.constant 16 : index
      %c0_33 = arith.constant 0 : index
      %47 = vector.load %arg8[%c1_31, %c16_32, %c0_33] : memref<2x32x1xf32, #tpu.memory_space<vmem>>, vector<1x16x1xf32>
      %48 = vector.shape_cast %47 : vector<1x16x1xf32> to vector<16x1xf32>
      %49 = tpu.reciprocal %48 {approx = true} : vector<16x1xf32> -> vector<16x1xf32>
      %50 = vector.broadcast %49 : vector<16x1xf32> to vector<16x16xf32>
      %51 = arith.mulf %46, %50 : vector<16x16xf32>
      %52 = arith.truncf %51 : vector<16x16xf32> to vector<16x16xbf16>
      %c0_34 = arith.constant 0 : index
      %c0_35 = arith.constant 0 : index
      %c48 = arith.constant 48 : index
      %53 = vector.load %arg6[%c0_34, %c0_35, %c48] : memref<1x16x64xbf16, #tpu.memory_space<vmem>>, vector<1x16x16xbf16>
      %54 = vector.shape_cast %53 : vector<1x16x16xbf16> to vector<16x16xbf16>
      %55 = vector.shape_cast %52 : vector<16x16xbf16> to vector<1x16x16xbf16>
      tpu.vector_store %arg6[%c0_34, %c0_35, %c48], %55 {strides = array<i32>} : memref<1x16x64xbf16, #tpu.memory_space<vmem>>, vector<1x16x16xbf16>,
    } else {
    }
    return
  }
  func.func @transform_0(%arg0: i32, %arg1: i32, %arg2: i32) -> (i32, i32, i32) {
    %c0_i32 = arith.constant 0 : i32
    %c0_i32_0 = arith.constant 0 : i32
    return %arg0, %arg1, %c0_i32 : i32, i32, i32
  }
  func.func @transform_1(%arg0: i32, %arg1: i32, %arg2: i32) -> (i32, i32, i32) {
    %c0_i32 = arith.constant 0 : i32
    %c0_i32_0 = arith.constant 0 : i32
    return %arg0, %arg2, %c0_i32 : i32, i32, i32
  }
  func.func @transform_2(%arg0: i32, %arg1: i32, %arg2: i32) -> (i32, i32, i32) {
    %c0_i32 = arith.constant 0 : i32
    %c0_i32_0 = arith.constant 0 : i32
    return %arg0, %arg2, %c0_i32 : i32, i32, i32
  }
  func.func @transform_3(%arg0: i32, %arg1: i32, %arg2: i32) -> (i32, i32, i32) {
    %c0_i32 = arith.constant 0 : i32
    %c0_i32_0 = arith.constant 0 : i32
    return %arg0, %arg1, %c0_i32 : i32, i32, i32
  }
}

module attributes {stable_mosaic.version = 11 : i64} {
  func.func @_matmul_kernel(%arg0: i32, %arg1: i32, %arg2: i32, %arg3: memref<32x64xbf16, #tpu.memory_space<vmem>>, %arg4: memref<64x64xbf16, #tpu.memory_space<vmem>>, %arg5: memref<32x64xbf16, #tpu.memory_space<vmem>>, %arg6: memref<32x64xf32, #tpu.memory_space<vmem>>) attributes {dimension_semantics = [#tpu.dimension_semantics<parallel>, #tpu.dimension_semantics<parallel>, #tpu.dimension_semantics<arbitrary>], iteration_bounds = array<i64: 1, 1, 1>, scalar_prefetch = 0 : i64, scratch_operands = 1 : i64, tpu.core_type = #tpu.core_type<tc>, window_params = [{transform_indices = @transform_0, window_bounds = array<i64: 32, 64>}, {transform_indices = @transform_1, window_bounds = array<i64: 64, 64>}, {transform_indices = @transform_2, window_bounds = array<i64: 32, 64>}]} {
    %c0_i32 = arith.constant 0 : i32
    %0 = arith.cmpi eq, %arg2, %c0_i32 : i32
    %1 = arith.extui %0 : i1 to i32
    %c0_i32_0 = arith.constant 0 : i32
    %2 = arith.cmpi ne, %1, %c0_i32_0 : i32
    scf.if %2 {
      %cst_10 = arith.constant 0.000000e+00 : f32
      %12 = vector.broadcast %cst_10 : f32 to vector<32x64xf32>
      %c0_11 = arith.constant 0 : index
      %c0_12 = arith.constant 0 : index
      %13 = vector.load %arg6[%c0_11, %c0_12] : memref<32x64xf32, #tpu.memory_space<vmem>>, vector<32x64xf32>
      tpu.vector_store %arg6[%c0_11, %c0_12], %12 {strides = array<i32>} : memref<32x64xf32, #tpu.memory_space<vmem>>, vector<32x64xf32>,
    } else {
    }
    %c0 = arith.constant 0 : index
    %c0_1 = arith.constant 0 : index
    %3 = vector.load %arg6[%c0, %c0_1] : memref<32x64xf32, #tpu.memory_space<vmem>>, vector<32x64xf32>
    %c0_2 = arith.constant 0 : index
    %c0_3 = arith.constant 0 : index
    %4 = vector.load %arg3[%c0_2, %c0_3] : memref<32x64xbf16, #tpu.memory_space<vmem>>, vector<32x64xbf16>
    %c0_4 = arith.constant 0 : index
    %c0_5 = arith.constant 0 : index
    %5 = vector.load %arg4[%c0_4, %c0_5] : memref<64x64xbf16, #tpu.memory_space<vmem>>, vector<64x64xbf16>
    %cst = arith.constant dense<0.000000e+00> : vector<32x64xf32>
    %6 = tpu.matmul %4, %5, %cst {dimension_numbers = #tpu.dot_dimension_numbers<[1], [0], [0], [1], [0, 0, 1, 1], [], []>} : vector<32x64xbf16>, vector<64x64xbf16>, vector<32x64xf32> -> vector<32x64xf32>
    %7 = arith.addf %3, %6 : vector<32x64xf32>
    %c0_6 = arith.constant 0 : index
    %c0_7 = arith.constant 0 : index
    %8 = vector.load %arg6[%c0_6, %c0_7] : memref<32x64xf32, #tpu.memory_space<vmem>>, vector<32x64xf32>
    tpu.vector_store %arg6[%c0_6, %c0_7], %7 {strides = array<i32>} : memref<32x64xf32, #tpu.memory_space<vmem>>, vector<32x64xf32>,
    %c0_i32_8 = arith.constant 0 : i32
    %9 = arith.cmpi eq, %arg2, %c0_i32_8 : i32
    %10 = arith.extui %9 : i1 to i32
    %c0_i32_9 = arith.constant 0 : i32
    %11 = arith.cmpi ne, %10, %c0_i32_9 : i32
    scf.if %11 {
      %c0_10 = arith.constant 0 : index
      %c0_11 = arith.constant 0 : index
      %12 = vector.load %arg6[%c0_10, %c0_11] : memref<32x64xf32, #tpu.memory_space<vmem>>, vector<32x64xf32>
      %13 = arith.truncf %12 : vector<32x64xf32> to vector<32x64xbf16>
      %c0_12 = arith.constant 0 : index
      %c0_13 = arith.constant 0 : index
      %14 = vector.load %arg5[%c0_12, %c0_13] : memref<32x64xbf16, #tpu.memory_space<vmem>>, vector<32x64xbf16>
      tpu.vector_store %arg5[%c0_12, %c0_13], %13 {strides = array<i32>} : memref<32x64xbf16, #tpu.memory_space<vmem>>, vector<32x64xbf16>,
    } else {
    }
    return
  }
  func.func @transform_0(%arg0: i32, %arg1: i32, %arg2: i32) -> (i32, i32) {
    %c0_i32 = arith.constant 0 : i32
    return %arg0, %arg2 : i32, i32
  }
  func.func @transform_1(%arg0: i32, %arg1: i32, %arg2: i32) -> (i32, i32) {
    %c0_i32 = arith.constant 0 : i32
    return %arg2, %arg1 : i32, i32
  }
  func.func @transform_2(%arg0: i32, %arg1: i32, %arg2: i32) -> (i32, i32) {
    %c0_i32 = arith.constant 0 : i32
    return %arg0, %arg1 : i32, i32
  }
}

module attributes {stable_mosaic.version = 11 : i64} {
  func.func @_ffn_kernel(%arg0: i32, %arg1: i32, %arg2: memref<32x64xbf16, #tpu.memory_space<vmem>>, %arg3: memref<64x192xbf16, #tpu.memory_space<vmem>>, %arg4: memref<64x192xbf16, #tpu.memory_space<vmem>>, %arg5: memref<192x64xbf16, #tpu.memory_space<vmem>>, %arg6: memref<32x64xbf16, #tpu.memory_space<vmem>>, %arg7: memref<32x64xf32, #tpu.memory_space<vmem>>) attributes {dimension_semantics = [#tpu.dimension_semantics<parallel>, #tpu.dimension_semantics<arbitrary>], iteration_bounds = array<i64: 1, 1>, scalar_prefetch = 0 : i64, scratch_operands = 1 : i64, tpu.core_type = #tpu.core_type<tc>, window_params = [{transform_indices = @transform_0, window_bounds = array<i64: 32, 64>}, {transform_indices = @transform_1, window_bounds = array<i64: 64, 192>}, {transform_indices = @transform_2, window_bounds = array<i64: 64, 192>}, {transform_indices = @transform_3, window_bounds = array<i64: 192, 64>}, {transform_indices = @transform_4, window_bounds = array<i64: 32, 64>}]} {
    %c0_i32 = arith.constant 0 : i32
    %0 = arith.cmpi eq, %arg1, %c0_i32 : i32
    %1 = arith.extui %0 : i1 to i32
    %c0_i32_0 = arith.constant 0 : i32
    %2 = arith.cmpi ne, %1, %c0_i32_0 : i32
    scf.if %2 {
      %cst_17 = arith.constant 0.000000e+00 : f32
      %24 = vector.broadcast %cst_17 : f32 to vector<32x64xf32>
      %c0_18 = arith.constant 0 : index
      %c0_19 = arith.constant 0 : index
      %25 = vector.load %arg7[%c0_18, %c0_19] : memref<32x64xf32, #tpu.memory_space<vmem>>, vector<32x64xf32>
      tpu.vector_store %arg7[%c0_18, %c0_19], %24 {strides = array<i32>} : memref<32x64xf32, #tpu.memory_space<vmem>>, vector<32x64xf32>,
    } else {
    }
    %c0 = arith.constant 0 : index
    %c0_1 = arith.constant 0 : index
    %3 = vector.load %arg2[%c0, %c0_1] : memref<32x64xbf16, #tpu.memory_space<vmem>>, vector<32x64xbf16>
    %c0_2 = arith.constant 0 : index
    %c0_3 = arith.constant 0 : index
    %4 = vector.load %arg3[%c0_2, %c0_3] : memref<64x192xbf16, #tpu.memory_space<vmem>>, vector<64x192xbf16>
    %cst = arith.constant dense<0.000000e+00> : vector<32x192xf32>
    %5 = tpu.matmul %3, %4, %cst {dimension_numbers = #tpu.dot_dimension_numbers<[1], [0], [0], [1], [0, 0, 1, 1], [], []>} : vector<32x64xbf16>, vector<64x192xbf16>, vector<32x192xf32> -> vector<32x192xf32>
    %c0_4 = arith.constant 0 : index
    %c0_5 = arith.constant 0 : index
    %6 = vector.load %arg4[%c0_4, %c0_5] : memref<64x192xbf16, #tpu.memory_space<vmem>>, vector<64x192xbf16>
    %cst_6 = arith.constant dense<0.000000e+00> : vector<32x192xf32>
    %7 = tpu.matmul %3, %6, %cst_6 {dimension_numbers = #tpu.dot_dimension_numbers<[1], [0], [0], [1], [0, 0, 1, 1], [], []>} : vector<32x64xbf16>, vector<64x192xbf16>, vector<32x192xf32> -> vector<32x192xf32>
    %8 = arith.negf %5 : vector<32x192xf32>
    %9 = math.exp %8 : vector<32x192xf32>
    %cst_7 = arith.constant 1.000000e+00 : f32
    %10 = vector.broadcast %cst_7 : f32 to vector<32x192xf32>
    %11 = arith.addf %10, %9 : vector<32x192xf32>
    %12 = arith.divf %10, %11 : vector<32x192xf32>
    %13 = arith.mulf %5, %12 : vector<32x192xf32>
    %14 = arith.mulf %13, %7 : vector<32x192xf32>
    %c0_8 = arith.constant 0 : index
    %c0_9 = arith.constant 0 : index
    %15 = vector.load %arg7[%c0_8, %c0_9] : memref<32x64xf32, #tpu.memory_space<vmem>>, vector<32x64xf32>
    %16 = arith.truncf %14 : vector<32x192xf32> to vector<32x192xbf16>
    %c0_10 = arith.constant 0 : index
    %c0_11 = arith.constant 0 : index
    %17 = vector.load %arg5[%c0_10, %c0_11] : memref<192x64xbf16, #tpu.memory_space<vmem>>, vector<192x64xbf16>
    %cst_12 = arith.constant dense<0.000000e+00> : vector<32x64xf32>
    %18 = tpu.matmul %16, %17, %cst_12 {dimension_numbers = #tpu.dot_dimension_numbers<[1], [0], [0], [1], [0, 0, 1, 1], [], []>} : vector<32x192xbf16>, vector<192x64xbf16>, vector<32x64xf32> -> vector<32x64xf32>
    %19 = arith.addf %15, %18 : vector<32x64xf32>
    %c0_13 = arith.constant 0 : index
    %c0_14 = arith.constant 0 : index
    %20 = vector.load %arg7[%c0_13, %c0_14] : memref<32x64xf32, #tpu.memory_space<vmem>>, vector<32x64xf32>
    tpu.vector_store %arg7[%c0_13, %c0_14], %19 {strides = array<i32>} : memref<32x64xf32, #tpu.memory_space<vmem>>, vector<32x64xf32>,
    %c0_i32_15 = arith.constant 0 : i32
    %21 = arith.cmpi eq, %arg1, %c0_i32_15 : i32
    %22 = arith.extui %21 : i1 to i32
    %c0_i32_16 = arith.constant 0 : i32
    %23 = arith.cmpi ne, %22, %c0_i32_16 : i32
    scf.if %23 {
      %c0_17 = arith.constant 0 : index
      %c0_18 = arith.constant 0 : index
      %24 = vector.load %arg7[%c0_17, %c0_18] : memref<32x64xf32, #tpu.memory_space<vmem>>, vector<32x64xf32>
      %25 = arith.truncf %24 : vector<32x64xf32> to vector<32x64xbf16>
      %c0_19 = arith.constant 0 : index
      %c0_20 = arith.constant 0 : index
      %26 = vector.load %arg6[%c0_19, %c0_20] : memref<32x64xbf16, #tpu.memory_space<vmem>>, vector<32x64xbf16>
      tpu.vector_store %arg6[%c0_19, %c0_20], %25 {strides = array<i32>} : memref<32x64xbf16, #tpu.memory_space<vmem>>, vector<32x64xbf16>,
    } else {
    }
    return
  }
  func.func @transform_0(%arg0: i32, %arg1: i32) -> (i32, i32) {
    %c0_i32 = arith.constant 0 : i32
    %c0_i32_0 = arith.constant 0 : i32
    return %arg0, %c0_i32 : i32, i32
  }
  func.func @transform_1(%arg0: i32, %arg1: i32) -> (i32, i32) {
    %c0_i32 = arith.constant 0 : i32
    %c0_i32_0 = arith.constant 0 : i32
    return %c0_i32, %arg1 : i32, i32
  }
  func.func @transform_2(%arg0: i32, %arg1: i32) -> (i32, i32) {
    %c0_i32 = arith.constant 0 : i32
    %c0_i32_0 = arith.constant 0 : i32
    return %c0_i32, %arg1 : i32, i32
  }
  func.func @transform_3(%arg0: i32, %arg1: i32) -> (i32, i32) {
    %c0_i32 = arith.constant 0 : i32
    %c0_i32_0 = arith.constant 0 : i32
    return %arg1, %c0_i32 : i32, i32
  }
  func.func @transform_4(%arg0: i32, %arg1: i32) -> (i32, i32) {
    %c0_i32 = arith.constant 0 : i32
    %c0_i32_0 = arith.constant 0 : i32
    return %arg0, %c0_i32 : i32, i32
  }
}

module attributes {stable_mosaic.version = 11 : i64} {
  func.func @_matmul_kernel(%arg0: i32, %arg1: i32, %arg2: i32, %arg3: memref<32x64xbf16, #tpu.memory_space<vmem>>, %arg4: memref<64x256xbf16, #tpu.memory_space<vmem>>, %arg5: memref<32x256xf32, #tpu.memory_space<vmem>>, %arg6: memref<32x256xf32, #tpu.memory_space<vmem>>) attributes {dimension_semantics = [#tpu.dimension_semantics<parallel>, #tpu.dimension_semantics<parallel>, #tpu.dimension_semantics<arbitrary>], iteration_bounds = array<i64: 1, 1, 1>, scalar_prefetch = 0 : i64, scratch_operands = 1 : i64, tpu.core_type = #tpu.core_type<tc>, window_params = [{transform_indices = @transform_0, window_bounds = array<i64: 32, 64>}, {transform_indices = @transform_1, window_bounds = array<i64: 64, 256>}, {transform_indices = @transform_2, window_bounds = array<i64: 32, 256>}]} {
    %c0_i32 = arith.constant 0 : i32
    %0 = arith.cmpi eq, %arg2, %c0_i32 : i32
    %1 = arith.extui %0 : i1 to i32
    %c0_i32_0 = arith.constant 0 : i32
    %2 = arith.cmpi ne, %1, %c0_i32_0 : i32
    scf.if %2 {
      %cst_10 = arith.constant 0.000000e+00 : f32
      %12 = vector.broadcast %cst_10 : f32 to vector<32x256xf32>
      %c0_11 = arith.constant 0 : index
      %c0_12 = arith.constant 0 : index
      %13 = vector.load %arg6[%c0_11, %c0_12] : memref<32x256xf32, #tpu.memory_space<vmem>>, vector<32x256xf32>
      tpu.vector_store %arg6[%c0_11, %c0_12], %12 {strides = array<i32>} : memref<32x256xf32, #tpu.memory_space<vmem>>, vector<32x256xf32>,
    } else {
    }
    %c0 = arith.constant 0 : index
    %c0_1 = arith.constant 0 : index
    %3 = vector.load %arg6[%c0, %c0_1] : memref<32x256xf32, #tpu.memory_space<vmem>>, vector<32x256xf32>
    %c0_2 = arith.constant 0 : index
    %c0_3 = arith.constant 0 : index
    %4 = vector.load %arg3[%c0_2, %c0_3] : memref<32x64xbf16, #tpu.memory_space<vmem>>, vector<32x64xbf16>
    %c0_4 = arith.constant 0 : index
    %c0_5 = arith.constant 0 : index
    %5 = vector.load %arg4[%c0_4, %c0_5] : memref<64x256xbf16, #tpu.memory_space<vmem>>, vector<64x256xbf16>
    %cst = arith.constant dense<0.000000e+00> : vector<32x256xf32>
    %6 = tpu.matmul %4, %5, %cst {dimension_numbers = #tpu.dot_dimension_numbers<[1], [0], [0], [1], [0, 0, 1, 1], [], []>} : vector<32x64xbf16>, vector<64x256xbf16>, vector<32x256xf32> -> vector<32x256xf32>
    %7 = arith.addf %3, %6 : vector<32x256xf32>
    %c0_6 = arith.constant 0 : index
    %c0_7 = arith.constant 0 : index
    %8 = vector.load %arg6[%c0_6, %c0_7] : memref<32x256xf32, #tpu.memory_space<vmem>>, vector<32x256xf32>
    tpu.vector_store %arg6[%c0_6, %c0_7], %7 {strides = array<i32>} : memref<32x256xf32, #tpu.memory_space<vmem>>, vector<32x256xf32>,
    %c0_i32_8 = arith.constant 0 : i32
    %9 = arith.cmpi eq, %arg2, %c0_i32_8 : i32
    %10 = arith.extui %9 : i1 to i32
    %c0_i32_9 = arith.constant 0 : i32
    %11 = arith.cmpi ne, %10, %c0_i32_9 : i32
    scf.if %11 {
      %c0_10 = arith.constant 0 : index
      %c0_11 = arith.constant 0 : index
      %12 = vector.load %arg6[%c0_10, %c0_11] : memref<32x256xf32, #tpu.memory_space<vmem>>, vector<32x256xf32>
      %c0_12 = arith.constant 0 : index
      %c0_13 = arith.constant 0 : index
      %13 = vector.load %arg5[%c0_12, %c0_13] : memref<32x256xf32, #tpu.memory_space<vmem>>, vector<32x256xf32>
      tpu.vector_store %arg5[%c0_12, %c0_13], %12 {strides = array<i32>} : memref<32x256xf32, #tpu.memory_space<vmem>>, vector<32x256xf32>,
    } else {
    }
    return
  }
  func.func @transform_0(%arg0: i32, %arg1: i32, %arg2: i32) -> (i32, i32) {
    %c0_i32 = arith.constant 0 : i32
    return %arg0, %arg2 : i32, i32
  }
  func.func @transform_1(%arg0: i32, %arg1: i32, %arg2: i32) -> (i32, i32) {
    %c0_i32 = arith.constant 0 : i32
    return %arg2, %arg1 : i32, i32
  }
  func.func @transform_2(%arg0: i32, %arg1: i32, %arg2: i32) -> (i32, i32) {
    %c0_i32 = arith.constant 0 : i32
    return %arg0, %arg1 : i32, i32
  }
}

</mosaic_0001>

<llo_original>
// kernel: llama_forward.14
$region0: #{llama_forward.14}
  #allocation0 [shape = 'u32[]', space=smem, size = 0x4, offset = 0x4, fixed_abs, tag = 'smem constant byte address 0x4 - core index']
  #allocation1 [shape = 'u32[144,128]{1,0:T(1,128)}', space=vmem, size = 0x12000, scoped, tag = 'internal scratch']
  %s0 = inlined_call_operand.vmem [shape: bf16[32,64], index: 0, kind: input, shape index: {}]
  %s1 = inlined_call_operand.vmem [shape: f32[1,64], index: 1, kind: input, shape index: {}]
  %s2 = inlined_call_operand.vmem [shape: bf16[32,64], index: 2, kind: output, shape index: {}]
  %s3 = sld [smem:[#allocation0]]
  $region18: #{llama_forward.14} parent=0
    _
  %s5 = ssub.s32 1, %s3
  %s6 = scalar_select 0, %s5, %s3
  // Predicated region
  $region2: #{llama_forward.14} parent=0 // pred_check
    _
  $region3: #{llama_forward.14} parent=0 // pred_check_branch
    %8 = sbr.rel (0) target = $region5
  $region4: #{llama_forward.14} parent=0 // pred_region
    _
  $region5: #{llama_forward.14} parent=0 // pred_fallthru
    _
  // Predicated region
  $region6: #{llama_forward.14} parent=0 // pred_check
    _
  $region7: #{llama_forward.14} parent=0 // pred_check_branch
    %10 = sbr.rel (0) target = $region9
  $region8: #{llama_forward.14} parent=0 // pred_region
    _
  $region9: #{llama_forward.14} parent=0 // pred_fallthru
    _
  %v11 = vld [vmem:[%s0] sm:$0xf]
  %v12 = vld [vmem:[%s0 + $0x4] sm:$0xf]
  %v13 = vld [vmem:[%s0 + $0x8] sm:$0xf]
  %v14 = vld [vmem:[%s0 + $0xc] sm:$0xf]
  %v15 = vunpack.c.l.bf16 %v11
  %v16 = vunpack.c.l.bf16 %v12
  %v17 = vunpack.c.l.bf16 %v13
  %v18 = vunpack.c.l.bf16 %v14
  %v19 = vmul.f32 %v15, %v15
  %v20 = vmul.f32 %v16, %v16
  %v21 = vmul.f32 %v17, %v17
  %v22 = vmul.f32 %v18, %v18
  %vm23 = vcmask 523264
  %v24 = vsel %vm23, %v19, 0.0
  %25 = vadd.xlane.f32.xlu0 %v24
  %v26 = vpop.xlane.xlu0 %25
  %v27 = vsel %vm23, %v20, 0.0
  %28 = vadd.xlane.f32.xlu0 %v27
  %v29 = vpop.xlane.xlu0 %28
  %v30 = vsel %vm23, %v21, 0.0
  %31 = vadd.xlane.f32.xlu0 %v30
  %v32 = vpop.xlane.xlu0 %31
  %v33 = vsel %vm23, %v22, 0.0
  %34 = vadd.xlane.f32.xlu0 %v33
  %v35 = vpop.xlane.xlu0 %34
  %v36 = vrcp.pop 64.0
  %v37 = vmul.f32 %v26, %v36
  %v38 = vmul.f32 %v29, %v36
  %v39 = vmul.f32 %v32, %v36
  %v40 = vmul.f32 %v35, %v36
  %v41 = vadd.f32 %v37, 1e-06
  %v42 = vadd.f32 %v38, 1e-06
  %v43 = vadd.f32 %v39, 1e-06
  %v44 = vadd.f32 %v40, 1e-06
  %v45 = vrsqrt.pop %v41
  %v46 = vrsqrt.pop %v42
  %v47 = vrsqrt.pop %v43
  %v48 = vrsqrt.pop %v44
  %v49 = vmul.f32 %v15, %v45
  %v50 = vmul.f32 %v16, %v46
  %v51 = vmul.f32 %v17, %v47
  %v52 = vmul.f32 %v18, %v48
  %v53 = vld [vmem:[%s1] sm:$0x1]
  %v55 = vlaneseq
  %v56 = vshrl.u32 %v55, 7
  %v57 = vsub.s32 0, %v56
  %v58 = vrot.slane %v53, %v57
  %v60 = vmul.f32 %v49, %v58
  %v61 = vmul.f32 %v50, %v58
  %v62 = vmul.f32 %v51, %v58
  %v63 = vmul.f32 %v52, %v58
  %v64 = vpack.c.bf16 %v61, %v60
  %v65 = vpack.c.bf16 %v63, %v62
  %v68 = vunpack.c.l.b16 %v64
  %v69 = vunpack.c.h.b16 %v64
  %v70 = vunpack.c.l.b16 %v65
  %v71 = vunpack.c.h.b16 %v65
  %v72 = vpack.c.b16 %v68, %v68
  %v73 = vpack.c.b16 %v69, %v69
  %v74 = vpack.c.b16 %v70, %v70
  %v75 = vpack.c.b16 %v71, %v71
  %vm80 = vcmask 519168
  %81 = vst.msk [vmem:[%s2] sm:$0xf] %vm80, %v72
  %82 = vst.msk [vmem:[%s2 + $0x4] sm:$0xf] %vm80, %v73
  %83 = vst.msk [vmem:[%s2 + $0x8] sm:$0xf] %vm80, %v74
  %84 = vst.msk [vmem:[%s2 + $0xc] sm:$0xf] %vm80, %v75
  // Predicated region
  $region10: #{llama_forward.14} parent=0 // pred_check
    _
  $region11: #{llama_forward.14} parent=0 // pred_check_branch
    %86 = sbr.rel (0) target = $region13
  $region12: #{llama_forward.14} parent=0 // pred_region
    _
  $region13: #{llama_forward.14} parent=0 // pred_fallthru
    _
  // Predicated region
  $region14: #{llama_forward.14} parent=0 // pred_check
    _
  $region15: #{llama_forward.14} parent=0 // pred_check_branch
    %88 = sbr.rel (0) target = $region17
  $region16: #{llama_forward.14} parent=0 // pred_region
    _
  $region17: #{llama_forward.14} parent=0 // pred_fallthru
    _

// kernel: llama_forward.17
$region0: #{llama_forward.17}
  #allocation0 [shape = 'u32[]', space=smem, size = 0x4, offset = 0x4, fixed_abs, tag = 'smem constant byte address 0x4 - core index']
  #allocation1 [shape = 'u32[144,128]{1,0:T(1,128)}', space=vmem, size = 0x12000, scoped, tag = 'internal scratch']
  #allocation2 [shape = 'f32[32,64]{1,0:T(8,128)}', space=vmem, size = 0x4000, scoped, tag = 'scratch operand']
  %s0 = inlined_call_operand.vmem [shape: bf16[32,64], index: 0, kind: input, shape index: {}]
  %s1 = inlined_call_operand.vmem [shape: bf16[64,64], index: 1, kind: input, shape index: {}]
  %s2 = inlined_call_operand.vmem [shape: bf16[32,64], index: 2, kind: output, shape index: {}]
  %s3 = sld [smem:[#allocation0]]
  $region26: #{llama_forward.17} parent=0
    _
  %s5 = ssub.s32 1, %s3
  %s6 = scalar_select 0, %s5, %s3
  // Predicated region
  $region2: #{llama_forward.17} parent=0 // pred_check
    _
  $region3: #{llama_forward.17} parent=0 // pred_check_branch
    %8 = sbr.rel (0) target = $region5
  $region4: #{llama_forward.17} parent=0 // pred_region
    _
  $region5: #{llama_forward.17} parent=0 // pred_fallthru
    _
  // Predicated region
  $region6: #{llama_forward.17} parent=0 // pred_check
    _
  $region7: #{llama_forward.17} parent=0 // pred_check_branch
    %10 = sbr.rel (0) target = $region9
  $region8: #{llama_forward.17} parent=0 // pred_region
    _
  $region9: #{llama_forward.17} parent=0 // pred_fallthru
    _
  %p12 = scmp.eq.s32.totalorder 0, 0
  // Predicated region
  $region10: #{llama_forward.17} parent=0 // pred_check
    %p13 = pneg %p12
  $region11: #{llama_forward.17} parent=0 // pred_check_branch
    %15 = sbr.rel (%p13) target = $region13
  $region12: #{llama_forward.17} parent=0 // pred_region
    %vm16 = vcmask 523264
    %17 = vst.msk [vmem:[#allocation2] sm:$0xff] %vm16, 0.0
    %18 = vst.msk [vmem:[#allocation2 + $0x8] sm:$0xff] %vm16, 0.0
    %19 = vst.msk [vmem:[#allocation2 + $0x10] sm:$0xff] %vm16, 0.0
    %20 = vst.msk [vmem:[#allocation2 + $0x18] sm:$0xff] %vm16, 0.0
  $region13: #{llama_forward.17} parent=0 // pred_fallthru
    _
  %v21 = vld [vmem:[#allocation2] sm:$0xff]
  %v22 = vld [vmem:[#allocation2 + $0x8] sm:$0xff]
  %v23 = vld [vmem:[#allocation2 + $0x10] sm:$0xff]
  %v24 = vld [vmem:[#allocation2 + $0x18] sm:$0xff]
  %v25 = vld [vmem:[%s0] sm:$0xf]
  %v26 = vld [vmem:[%s0 + $0x4] sm:$0xf]
  %v27 = vld [vmem:[%s0 + $0x8] sm:$0xf]
  %v28 = vld [vmem:[%s0 + $0xc] sm:$0xf]
  %v29 = vld [vmem:[%s1] sm:$0xf]
  %v30 = vld [vmem:[%s1 + $0x4] sm:$0xf]
  %v31 = vld [vmem:[%s1 + $0x8] sm:$0xf]
  %v32 = vld [vmem:[%s1 + $0xc] sm:$0xf]
  %v33 = vld [vmem:[%s1 + $0x10] sm:$0xf]
  %v34 = vld [vmem:[%s1 + $0x14] sm:$0xf]
  %v35 = vld [vmem:[%s1 + $0x18] sm:$0xf]
  %v36 = vld [vmem:[%s1 + $0x1c] sm:$0xf]
  %v41 = vunpack.c.l.b16 %v25
  %v42 = vunpack.c.l.b16 %v26
  %v43 = vunpack.c.l.b16 %v27
  %v44 = vunpack.c.l.b16 %v28
  %v45 = vpack.c.b16 %v42, %v41
  %v46 = vpack.c.b16 %v44, %v43
  %v55 = vunpack.c.l.b16 %v29
  %v56 = vunpack.c.l.b16 %v30
  %v57 = vunpack.c.l.b16 %v31
  %v58 = vunpack.c.l.b16 %v32
  %v59 = vunpack.c.l.b16 %v33
  %v60 = vunpack.c.l.b16 %v34
  %v61 = vunpack.c.l.b16 %v35
  %v62 = vunpack.c.l.b16 %v36
  %v63 = vpack.c.b16 %v56, %v55
  %v64 = vpack.c.b16 %v58, %v57
  %v65 = vpack.c.b16 %v60, %v59
  %v66 = vpack.c.b16 %v62, %v61
  %vm71 = vcmask 523264
  %v73 = vsel %vm71, %v45, 0
  %v76 = vsel %vm71, %v46, 0
  %78 = vmatprep.subr.bf16.mxu0 0
  %79 = vmatpush1.bf16.msra.mxu0 0
  %80 = vmatprep.subr.bf16.mxu0 0
  %81 = vmatpush1.bf16.msra.mxu0 0
  %82 = vmatprep.subr.bf16.mxu0 0
  %83 = vmatpush1.bf16.msra.mxu0 0
  %84 = vmatprep.subr.bf16.mxu0 0
  %85 = vmatpush1.bf16.msra.mxu0 0
  %86 = vmatprep.subr.bf16.mxu0 0
  %87 = vmatpush1.bf16.msra.mxu0 %v66
  %88 = vmatprep.subr.bf16.mxu0 0
  %89 = vmatpush1.bf16.msra.mxu0 %v65
  %90 = vmatprep.subr.bf16.mxu0 0
  %91 = vmatpush1.bf16.msra.mxu0 %v64
  %92 = vmatprep.subr.bf16.mxu0 0
  %93 = vmatpush1.bf16.msra.mxu0 %v63
  %94 = vmatprep.subr.bf16.mxu0 0
  %95 = vmatpush2.bf16.msra.mxu0 0
  %96 = vmatprep.subr.bf16.mxu0 0
  %97 = vmatpush2.bf16.msra.mxu0 0
  %98 = vmatprep.subr.bf16.mxu0 0
  %99 = vmatpush2.bf16.msra.mxu0 0
  %100 = vmatprep.subr.bf16.mxu0 0
  %101 = vmatpush2.bf16.msra.mxu0 0
  %102 = vmatprep.subr.bf16.mxu0 0
  %103 = vmatpush2.bf16.msra.mxu0 0
  %104 = vmatprep.subr.bf16.mxu0 0
  %105 = vmatpush2.bf16.msra.mxu0 0
  %106 = vmatprep.subr.bf16.mxu0 0
  %107 = vmatpush2.bf16.msra.mxu0 0
  %108 = vmatprep.subr.bf16.mxu0 0
  %109 = vmatpush2.bf16.msra.mxu0 0
  %110 = vmatprep.mubr.bf16.mxu0 0
  %111 = vmatmul.mubr.bf16.gmra.mxu0 %v73
  %v112 = vpop.f32.mrf.mxu0
  %v113 = vadd.f32 0.0, %v112
  %v114 = vpop.f32.mrf.mxu0
  %v115 = vpop.f32.mrf.mxu0
  %v116 = vadd.f32 0.0, %v115
  %v117 = vpop.f32.mrf.mxu0
  %118 = vmatprep.mubr.bf16.mxu0 0
  %119 = vmatmul.mubr.bf16.gmra.mxu0 %v76
  %v120 = vpop.f32.mrf.mxu0
  %v121 = vadd.f32 0.0, %v120
  %v122 = vpop.f32.mrf.mxu0
  %v123 = vpop.f32.mrf.mxu0
  %v124 = vadd.f32 0.0, %v123
  %v125 = vpop.f32.mrf.mxu0
  %126 = vdwg.mxu0
  %v127 = vadd.f32 %v21, %v113
  %v128 = vadd.f32 %v22, %v116
  %v129 = vadd.f32 %v23, %v121
  %v130 = vadd.f32 %v24, %v124
  %131 = vst.msk [vmem:[#allocation2] sm:$0xff] %vm71, %v127
  %132 = vst.msk [vmem:[#allocation2 + $0x8] sm:$0xff] %vm71, %v128
  %133 = vst.msk [vmem:[#allocation2 + $0x10] sm:$0xff] %vm71, %v129
  %134 = vst.msk [vmem:[#allocation2 + $0x18] sm:$0xff] %vm71, %v130
  // Predicated region
  $region14: #{llama_forward.17} parent=0 // pred_check
    %p135 = pneg %p12
  $region15: #{llama_forward.17} parent=0 // pred_check_branch
    %137 = sbr.rel (%p135) target = $region17
  $region16: #{llama_forward.17} parent=0 // pred_region
    %v138 = vld [vmem:[#allocation2] sm:$0xff]
    %v139 = vld [vmem:[#allocation2 + $0x8] sm:$0xff]
    %v140 = vld [vmem:[#allocation2 + $0x10] sm:$0xff]
    %v141 = vld [vmem:[#allocation2 + $0x18] sm:$0xff]
    %v142 = vpack.c.bf16 %v139, %v138
    %v143 = vpack.c.bf16 %v141, %v140
    %v146 = vunpack.c.l.b16 %v142
    %v147 = vunpack.c.h.b16 %v142
    %v148 = vunpack.c.l.b16 %v143
    %v149 = vunpack.c.h.b16 %v143
    %v150 = vpack.c.b16 %v146, %v146
    %v151 = vpack.c.b16 %v147, %v147
    %v152 = vpack.c.b16 %v148, %v148
    %v153 = vpack.c.b16 %v149, %v149
    %vm158 = vcmask 519168
    %159 = vst.msk [vmem:[%s2] sm:$0xf] %vm158, %v150
    %160 = vst.msk [vmem:[%s2 + $0x4] sm:$0xf] %vm158, %v151
    %161 = vst.msk [vmem:[%s2 + $0x8] sm:$0xf] %vm158, %v152
    %162 = vst.msk [vmem:[%s2 + $0xc] sm:$0xf] %vm158, %v153
  $region17: #{llama_forward.17} parent=0 // pred_fallthru
    _
  // Predicated region
  $region18: #{llama_forward.17} parent=0 // pred_check
    _
  $region19: #{llama_forward.17} parent=0 // pred_check_branch
    %164 = sbr.rel (0) target = $region21
  $region20: #{llama_forward.17} parent=0 // pred_region
    _
  $region21: #{llama_forward.17} parent=0 // pred_fallthru
    _
  // Predicated region
  $region22: #{llama_forward.17} parent=0 // pred_check
    _
  $region23: #{llama_forward.17} parent=0 // pred_check_branch
    %166 = sbr.rel (0) target = $region25
  $region24: #{llama_forward.17} parent=0 // pred_region
    _
  $region25: #{llama_forward.17} parent=0 // pred_fallthru
    _

// kernel: llama_forward.15
$region0: #{llama_forward.15}
  #allocation0 [shape = 'u32[]', space=smem, size = 0x4, offset = 0x4, fixed_abs, tag = 'smem constant byte address 0x4 - core index']
  #allocation1 [shape = 'u32[144,128]{1,0:T(1,128)}', space=vmem, size = 0x12000, scoped, tag = 'internal scratch']
  #allocation2 [shape = 'f32[32,128]{1,0:T(8,128)}', space=vmem, size = 0x4000, scoped, tag = 'scratch operand']
  %s0 = inlined_call_operand.vmem [shape: bf16[32,64], index: 0, kind: input, shape index: {}]
  %s1 = inlined_call_operand.vmem [shape: bf16[64,128], index: 1, kind: input, shape index: {}]
  %s2 = inlined_call_operand.vmem [shape: f32[32,16], index: 2, kind: input, shape index: {}]
  %s3 = inlined_call_operand.vmem [shape: f32[32,16], index: 3, kind: input, shape index: {}]
  %s4 = inlined_call_operand.vmem [shape: bf16[32,64], index: 4, kind: output, shape index: {0}]
  %s5 = inlined_call_operand.vmem [shape: bf16[32,32], index: 5, kind: output, shape index: {1}]
  %s6 = inlined_call_operand.vmem [shape: bf16[32,32], index: 6, kind: output, shape index: {2}]
  %7 = xla_tuple %s4, %s5, %s6
  %s8 = sld [smem:[#allocation0]]
  $region50: #{llama_forward.15} parent=0
    _
  %s10 = ssub.s32 1, %s8
  %s11 = scalar_select 0, %s10, %s8
  // Predicated region
  $region2: #{llama_forward.15} parent=0 // pred_check
    _
  $region3: #{llama_forward.15} parent=0 // pred_check_branch
    %13 = sbr.rel (0) target = $region5
  $region4: #{llama_forward.15} parent=0 // pred_region
    _
  $region5: #{llama_forward.15} parent=0 // pred_fallthru
    _
  // Predicated region
  $region6: #{llama_forward.15} parent=0 // pred_check
    _
  $region7: #{llama_forward.15} parent=0 // pred_check_branch
    %15 = sbr.rel (0) target = $region9
  $region8: #{llama_forward.15} parent=0 // pred_region
    _
  $region9: #{llama_forward.15} parent=0 // pred_fallthru
    _
  // Predicated region
  $region10: #{llama_forward.15} parent=0 // pred_check
    _
  $region11: #{llama_forward.15} parent=0 // pred_check_branch
    %17 = sbr.rel (0) target = $region13
  $region12: #{llama_forward.15} parent=0 // pred_region
    _
  $region13: #{llama_forward.15} parent=0 // pred_fallthru
    _
  // Predicated region
  $region14: #{llama_forward.15} parent=0 // pred_check
    _
  $region15: #{llama_forward.15} parent=0 // pred_check_branch
    %19 = sbr.rel (0) target = $region17
  $region16: #{llama_forward.15} parent=0 // pred_region
    _
  $region17: #{llama_forward.15} parent=0 // pred_fallthru
    _
  %p21 = scmp.eq.s32.totalorder 0, 0
  // Predicated region
  $region18: #{llama_forward.15} parent=0 // pred_check
    %p22 = pneg %p21
  $region19: #{llama_forward.15} parent=0 // pred_check_branch
    %24 = sbr.rel (%p22) target = $region21
  $region20: #{llama_forward.15} parent=0 // pred_region
    %25 = vst [vmem:[#allocation2] sm:$0xff] 0.0
    %26 = vst [vmem:[#allocation2 + $0x8] sm:$0xff] 0.0
    %27 = vst [vmem:[#allocation2 + $0x10] sm:$0xff] 0.0
    %28 = vst [vmem:[#allocation2 + $0x18] sm:$0xff] 0.0
  $region21: #{llama_forward.15} parent=0 // pred_fallthru
    _
  %v29 = vld [vmem:[#allocation2] sm:$0xff]
  %v30 = vld [vmem:[#allocation2 + $0x8] sm:$0xff]
  %v31 = vld [vmem:[#allocation2 + $0x10] sm:$0xff]
  %v32 = vld [vmem:[#allocation2 + $0x18] sm:$0xff]
  %v33 = vld [vmem:[%s0] sm:$0xf]
  %v34 = vld [vmem:[%s0 + $0x4] sm:$0xf]
  %v35 = vld [vmem:[%s0 + $0x8] sm:$0xf]
  %v36 = vld [vmem:[%s0 + $0xc] sm:$0xf]
  %v37 = vld [vmem:[%s1] sm:$0xf]
  %v38 = vld [vmem:[%s1 + $0x4] sm:$0xf]
  %v39 = vld [vmem:[%s1 + $0x8] sm:$0xf]
  %v40 = vld [vmem:[%s1 + $0xc] sm:$0xf]
  %v41 = vld [vmem:[%s1 + $0x10] sm:$0xf]
  %v42 = vld [vmem:[%s1 + $0x14] sm:$0xf]
  %v43 = vld [vmem:[%s1 + $0x18] sm:$0xf]
  %v44 = vld [vmem:[%s1 + $0x1c] sm:$0xf]
  %v49 = vunpack.c.l.b16 %v33
  %v50 = vunpack.c.l.b16 %v34
  %v51 = vunpack.c.l.b16 %v35
  %v52 = vunpack.c.l.b16 %v36
  %v53 = vpack.c.b16 %v50, %v49
  %v54 = vpack.c.b16 %v52, %v51
  %v63 = vunpack.c.l.b16 %v37
  %v64 = vunpack.c.l.b16 %v38
  %v65 = vunpack.c.l.b16 %v39
  %v66 = vunpack.c.l.b16 %v40
  %v67 = vunpack.c.l.b16 %v41
  %v68 = vunpack.c.l.b16 %v42
  %v69 = vunpack.c.l.b16 %v43
  %v70 = vunpack.c.l.b16 %v44
  %v71 = vpack.c.b16 %v64, %v63
  %v72 = vpack.c.b16 %v66, %v65
  %v73 = vpack.c.b16 %v68, %v67
  %v74 = vpack.c.b16 %v70, %v69
  %vm79 = vcmask 523264
  %v81 = vsel %vm79, %v53, 0
  %v84 = vsel %vm79, %v54, 0
  %86 = vmatprep.subr.bf16.mxu0 0
  %87 = vmatpush1.bf16.msra.mxu0 0
  %88 = vmatprep.subr.bf16.mxu0 0
  %89 = vmatpush1.bf16.msra.mxu0 0
  %90 = vmatprep.subr.bf16.mxu0 0
  %91 = vmatpush1.bf16.msra.mxu0 0
  %92 = vmatprep.subr.bf16.mxu0 0
  %93 = vmatpush1.bf16.msra.mxu0 0
  %94 = vmatprep.subr.bf16.mxu0 0
  %95 = vmatpush1.bf16.msra.mxu0 %v74
  %96 = vmatprep.subr.bf16.mxu0 0
  %97 = vmatpush1.bf16.msra.mxu0 %v73
  %98 = vmatprep.subr.bf16.mxu0 0
  %99 = vmatpush1.bf16.msra.mxu0 %v72
  %100 = vmatprep.subr.bf16.mxu0 0
  %101 = vmatpush1.bf16.msra.mxu0 %v71
  %102 = vmatprep.subr.bf16.mxu0 0
  %103 = vmatpush2.bf16.msra.mxu0 0
  %104 = vmatprep.subr.bf16.mxu0 0
  %105 = vmatpush2.bf16.msra.mxu0 0
  %106 = vmatprep.subr.bf16.mxu0 0
  %107 = vmatpush2.bf16.msra.mxu0 0
  %108 = vmatprep.subr.bf16.mxu0 0
  %109 = vmatpush2.bf16.msra.mxu0 0
  %110 = vmatprep.subr.bf16.mxu0 0
  %111 = vmatpush2.bf16.msra.mxu0 0
  %112 = vmatprep.subr.bf16.mxu0 0
  %113 = vmatpush2.bf16.msra.mxu0 0
  %114 = vmatprep.subr.bf16.mxu0 0
  %115 = vmatpush2.bf16.msra.mxu0 0
  %116 = vmatprep.subr.bf16.mxu0 0
  %117 = vmatpush2.bf16.msra.mxu0 0
  %118 = vmatprep.mubr.bf16.mxu0 0
  %119 = vmatmul.mubr.bf16.gmra.mxu0 %v81
  %v120 = vpop.f32.mrf.mxu0
  %v121 = vadd.f32 0.0, %v120
  %v122 = vpop.f32.mrf.mxu0
  %v123 = vpop.f32.mrf.mxu0
  %v124 = vadd.f32 0.0, %v123
  %v125 = vpop.f32.mrf.mxu0
  %126 = vmatprep.mubr.bf16.mxu0 0
  %127 = vmatmul.mubr.bf16.gmra.mxu0 %v84
  %v128 = vpop.f32.mrf.mxu0
  %v129 = vadd.f32 0.0, %v128
  %v130 = vpop.f32.mrf.mxu0
  %v131 = vpop.f32.mrf.mxu0
  %v132 = vadd.f32 0.0, %v131
  %v133 = vpop.f32.mrf.mxu0
  %134 = vdwg.mxu0
  %v135 = vadd.f32 %v29, %v121
  %v136 = vadd.f32 %v30, %v124
  %v137 = vadd.f32 %v31, %v129
  %v138 = vadd.f32 %v32, %v132
  %139 = vst [vmem:[#allocation2] sm:$0xff] %v135
  %140 = vst [vmem:[#allocation2 + $0x8] sm:$0xff] %v136
  %141 = vst [vmem:[#allocation2 + $0x10] sm:$0xff] %v137
  %142 = vst [vmem:[#allocation2 + $0x18] sm:$0xff] %v138
  // Predicated region
  $region22: #{llama_forward.15} parent=0 // pred_check
    %p143 = pneg %p21
  $region23: #{llama_forward.15} parent=0 // pred_check_branch
    %145 = sbr.rel (%p143) target = $region25
  $region24: #{llama_forward.15} parent=0 // pred_region
    %v146 = vld [vmem:[%s2] sm:$0xff]
    %v147 = vld [vmem:[%s2 + $0x8] sm:$0xff]
    %v148 = vld [vmem:[%s2 + $0x10] sm:$0xff]
    %v149 = vld [vmem:[%s2 + $0x18] sm:$0xff]
    %v150 = vld [vmem:[%s3] sm:$0xff]
    %v151 = vld [vmem:[%s3 + $0x8] sm:$0xff]
    %v152 = vld [vmem:[%s3 + $0x10] sm:$0xff]
    %v153 = vld [vmem:[%s3 + $0x18] sm:$0xff]
    %v154 = vld [vmem:[#allocation2] sm:$0xff]
    %v155 = vld [vmem:[#allocation2 + $0x8] sm:$0xff]
    %v156 = vld [vmem:[#allocation2 + $0x10] sm:$0xff]
    %v157 = vld [vmem:[#allocation2 + $0x18] sm:$0xff]
    %v158 = vsub.f32 0.0, %v154
    %v159 = vsub.f32 0.0, %v155
    %v160 = vsub.f32 0.0, %v156
    %v161 = vsub.f32 0.0, %v157
    %166 = vrot.lane.b32.xlu0 %v158, 120
    %v167 = vpop.permute.xlu0 %166
    %168 = vrot.lane.b32.xlu0 %v159, 120
    %v169 = vpop.permute.xlu0 %168
    %170 = vrot.lane.b32.xlu0 %v160, 120
    %v171 = vpop.permute.xlu0 %170
    %172 = vrot.lane.b32.xlu0 %v161, 120
    %v173 = vpop.permute.xlu0 %172
    %182 = vrot.lane.b32.xlu0 %v154, 8
    %v183 = vpop.permute.xlu0 %182
    %184 = vrot.lane.b32.xlu0 %v155, 8
    %v185 = vpop.permute.xlu0 %184
    %186 = vrot.lane.b32.xlu0 %v156, 8
    %v187 = vpop.permute.xlu0 %186
    %188 = vrot.lane.b32.xlu0 %v157, 8
    %v189 = vpop.permute.xlu0 %188
    %vm194 = vcmask 64512
    %v195 = vsel %vm194, %v167, %v183
    %v196 = vsel %vm194, %v169, %v185
    %v197 = vsel %vm194, %v171, %v187
    %v198 = vsel %vm194, %v173, %v189
    %v199 = vmul.f32 %v154, %v146
    %v200 = vmul.f32 %v155, %v147
    %v201 = vmul.f32 %v156, %v148
    %v202 = vmul.f32 %v157, %v149
    %v203 = vmul.f32 %v195, %v150
    %v204 = vmul.f32 %v196, %v151
    %v205 = vmul.f32 %v197, %v152
    %v206 = vmul.f32 %v198, %v153
    %v207 = vadd.f32 %v199, %v203
    %v208 = vadd.f32 %v200, %v204
    %v209 = vadd.f32 %v201, %v205
    %v210 = vadd.f32 %v202, %v206
    %v211 = vpack.c.bf16 %v208, %v207
    %v212 = vpack.c.bf16 %v210, %v209
    %v215 = vunpack.c.l.b16 %v211
    %v216 = vunpack.c.h.b16 %v211
    %v217 = vunpack.c.l.b16 %v212
    %v218 = vunpack.c.h.b16 %v212
    %v219 = vpack.c.b16 %v215, %v215
    %v220 = vpack.c.b16 %v216, %v216
    %v221 = vpack.c.b16 %v217, %v217
    %v222 = vpack.c.b16 %v218, %v218
    %vm227 = vcmask 125952
    %228 = vst.msk [vmem:[%s4] sm:$0xf] %vm227, %v219
    %229 = vst.msk [vmem:[%s4 + $0x4] sm:$0xf] %vm227, %v220
    %230 = vst.msk [vmem:[%s4 + $0x8] sm:$0xf] %vm227, %v221
    %231 = vst.msk [vmem:[%s4 + $0xc] sm:$0xf] %vm227, %v222
    %v232 = vld [vmem:[#allocation2] sm:$0xff]
    %v233 = vld [vmem:[#allocation2 + $0x8] sm:$0xff]
    %v234 = vld [vmem:[#allocation2 + $0x10] sm:$0xff]
    %v235 = vld [vmem:[#allocation2 + $0x18] sm:$0xff]
    %v236 = vsub.f32 0.0, %v232
    %v237 = vsub.f32 0.0, %v233
    %v238 = vsub.f32 0.0, %v234
    %v239 = vsub.f32 0.0, %v235
    %244 = vrot.lane.b32.xlu0 %v236, 104
    %v245 = vpop.permute.xlu0 %244
    %246 = vrot.lane.b32.xlu0 %v237, 104
    %v247 = vpop.permute.xlu0 %246
    %248 = vrot.lane.b32.xlu0 %v238, 104
    %v249 = vpop.permute.xlu0 %248
    %250 = vrot.lane.b32.xlu0 %v239, 104
    %v251 = vpop.permute.xlu0 %250
    %260 = vrot.lane.b32.xlu0 %v232, 120
    %v261 = vpop.permute.xlu0 %260
    %262 = vrot.lane.b32.xlu0 %v233, 120
    %v263 = vpop.permute.xlu0 %262
    %264 = vrot.lane.b32.xlu0 %v234, 120
    %v265 = vpop.permute.xlu0 %264
    %266 = vrot.lane.b32.xlu0 %v235, 120
    %v267 = vpop.permute.xlu0 %266
    %v272 = vsel %vm194, %v245, %v261
    %v273 = vsel %vm194, %v247, %v263
    %v274 = vsel %vm194, %v249, %v265
    %v275 = vsel %vm194, %v251, %v267
    %280 = vrot.lane.b32.xlu0 %v146, 16
    %v281 = vpop.permute.xlu0 %280
    %282 = vrot.lane.b32.xlu0 %v147, 16
    %v283 = vpop.permute.xlu0 %282
    %284 = vrot.lane.b32.xlu0 %v148, 16
    %v285 = vpop.permute.xlu0 %284
    %286 = vrot.lane.b32.xlu0 %v149, 16
    %v287 = vpop.permute.xlu0 %286
    %v292 = vmul.f32 %v232, %v281
    %v293 = vmul.f32 %v233, %v283
    %v294 = vmul.f32 %v234, %v285
    %v295 = vmul.f32 %v235, %v287
    %v296 = vmul.f32 %v272, %v150
    %v297 = vmul.f32 %v273, %v151
    %v298 = vmul.f32 %v274, %v152
    %v299 = vmul.f32 %v275, %v153
    %304 = vrot.lane.b32.xlu0 %v296, 16
    %v305 = vpop.permute.xlu0 %304
    %306 = vrot.lane.b32.xlu0 %v297, 16
    %v307 = vpop.permute.xlu0 %306
    %308 = vrot.lane.b32.xlu0 %v298, 16
    %v309 = vpop.permute.xlu0 %308
    %310 = vrot.lane.b32.xlu0 %v299, 16
    %v311 = vpop.permute.xlu0 %310
    %v316 = vadd.f32 %v292, %v305
    %v317 = vadd.f32 %v293, %v307
    %v318 = vadd.f32 %v294, %v309
    %v319 = vadd.f32 %v295, %v311
    %v320 = vpack.c.bf16 %v317, %v316
    %v321 = vpack.c.bf16 %v319, %v318
    %v324 = vunpack.c.l.b16 %v320
    %v325 = vunpack.c.h.b16 %v320
    %v326 = vunpack.c.l.b16 %v321
    %v327 = vunpack.c.h.b16 %v321
    %v328 = vpack.c.b16 %v324, %v324
    %v329 = vpack.c.b16 %v325, %v325
    %v330 = vpack.c.b16 %v326, %v326
    %v331 = vpack.c.b16 %v327, %v327
    %vm336 = vcmask 257152
    %337 = vst.msk [vmem:[%s4] sm:$0xf] %vm336, %v328
    %338 = vst.msk [vmem:[%s4 + $0x4] sm:$0xf] %vm336, %v329
    %339 = vst.msk [vmem:[%s4 + $0x8] sm:$0xf] %vm336, %v330
    %340 = vst.msk [vmem:[%s4 + $0xc] sm:$0xf] %vm336, %v331
    %v341 = vld [vmem:[#allocation2] sm:$0xff]
    %v342 = vld [vmem:[#allocation2 + $0x8] sm:$0xff]
    %v343 = vld [vmem:[#allocation2 + $0x10] sm:$0xff]
    %v344 = vld [vmem:[#allocation2 + $0x18] sm:$0xff]
    %v345 = vsub.f32 0.0, %v341
    %v346 = vsub.f32 0.0, %v342
    %v347 = vsub.f32 0.0, %v343
    %v348 = vsub.f32 0.0, %v344
    %353 = vrot.lane.b32.xlu0 %v345, 88
    %v354 = vpop.permute.xlu0 %353
    %355 = vrot.lane.b32.xlu0 %v346, 88
    %v356 = vpop.permute.xlu0 %355
    %357 = vrot.lane.b32.xlu0 %v347, 88
    %v358 = vpop.permute.xlu0 %357
    %359 = vrot.lane.b32.xlu0 %v348, 88
    %v360 = vpop.permute.xlu0 %359
    %369 = vrot.lane.b32.xlu0 %v341, 104
    %v370 = vpop.permute.xlu0 %369
    %371 = vrot.lane.b32.xlu0 %v342, 104
    %v372 = vpop.permute.xlu0 %371
    %373 = vrot.lane.b32.xlu0 %v343, 104
    %v374 = vpop.permute.xlu0 %373
    %375 = vrot.lane.b32.xlu0 %v344, 104
    %v376 = vpop.permute.xlu0 %375
    %v381 = vsel %vm194, %v354, %v370
    %v382 = vsel %vm194, %v356, %v372
    %v383 = vsel %vm194, %v358, %v374
    %v384 = vsel %vm194, %v360, %v376
    %385 = vrot.lane.b32.xlu0 %v146, 32
    %v386 = vpop.permute.xlu0 %385
    %387 = vrot.lane.b32.xlu0 %v147, 32
    %v388 = vpop.permute.xlu0 %387
    %389 = vrot.lane.b32.xlu0 %v148, 32
    %v390 = vpop.permute.xlu0 %389
    %391 = vrot.lane.b32.xlu0 %v149, 32
    %v392 = vpop.permute.xlu0 %391
    %v397 = vmul.f32 %v341, %v386
    %v398 = vmul.f32 %v342, %v388
    %v399 = vmul.f32 %v343, %v390
    %v400 = vmul.f32 %v344, %v392
    %v401 = vmul.f32 %v381, %v150
    %v402 = vmul.f32 %v382, %v151
    %v403 = vmul.f32 %v383, %v152
    %v404 = vmul.f32 %v384, %v153
    %409 = vrot.lane.b32.xlu0 %v401, 32
    %v410 = vpop.permute.xlu0 %409
    %411 = vrot.lane.b32.xlu0 %v402, 32
    %v412 = vpop.permute.xlu0 %411
    %413 = vrot.lane.b32.xlu0 %v403, 32
    %v414 = vpop.permute.xlu0 %413
    %415 = vrot.lane.b32.xlu0 %v404, 32
    %v416 = vpop.permute.xlu0 %415
    %v421 = vadd.f32 %v397, %v410
    %v422 = vadd.f32 %v398, %v412
    %v423 = vadd.f32 %v399, %v414
    %v424 = vadd.f32 %v400, %v416
    %v425 = vpack.c.bf16 %v422, %v421
    %v426 = vpack.c.bf16 %v424, %v423
    %v429 = vunpack.c.l.b16 %v425
    %v430 = vunpack.c.h.b16 %v425
    %v431 = vunpack.c.l.b16 %v426
    %v432 = vunpack.c.h.b16 %v426
    %v433 = vpack.c.b16 %v429, %v429
    %v434 = vpack.c.b16 %v430, %v430
    %v435 = vpack.c.b16 %v431, %v431
    %v436 = vpack.c.b16 %v432, %v432
    %vm441 = vcmask 388352
    %442 = vst.msk [vmem:[%s4] sm:$0xf] %vm441, %v433
    %443 = vst.msk [vmem:[%s4 + $0x4] sm:$0xf] %vm441, %v434
    %444 = vst.msk [vmem:[%s4 + $0x8] sm:$0xf] %vm441, %v435
    %445 = vst.msk [vmem:[%s4 + $0xc] sm:$0xf] %vm441, %v436
    %v446 = vld [vmem:[#allocation2] sm:$0xff]
    %v447 = vld [vmem:[#allocation2 + $0x8] sm:$0xff]
    %v448 = vld [vmem:[#allocation2 + $0x10] sm:$0xff]
    %v449 = vld [vmem:[#allocation2 + $0x18] sm:$0xff]
    %v450 = vsub.f32 0.0, %v446
    %v451 = vsub.f32 0.0, %v447
    %v452 = vsub.f32 0.0, %v448
    %v453 = vsub.f32 0.0, %v449
    %458 = vrot.lane.b32.xlu0 %v450, 72
    %v459 = vpop.permute.xlu0 %458
    %460 = vrot.lane.b32.xlu0 %v451, 72
    %v461 = vpop.permute.xlu0 %460
    %462 = vrot.lane.b32.xlu0 %v452, 72
    %v463 = vpop.permute.xlu0 %462
    %464 = vrot.lane.b32.xlu0 %v453, 72
    %v465 = vpop.permute.xlu0 %464
    %474 = vrot.lane.b32.xlu0 %v446, 88
    %v475 = vpop.permute.xlu0 %474
    %476 = vrot.lane.b32.xlu0 %v447, 88
    %v477 = vpop.permute.xlu0 %476
    %478 = vrot.lane.b32.xlu0 %v448, 88
    %v479 = vpop.permute.xlu0 %478
    %480 = vrot.lane.b32.xlu0 %v449, 88
    %v481 = vpop.permute.xlu0 %480
    %v486 = vsel %vm194, %v459, %v475
    %v487 = vsel %vm194, %v461, %v477
    %v488 = vsel %vm194, %v463, %v479
    %v489 = vsel %vm194, %v465, %v481
    %490 = vrot.lane.b32.xlu0 %v146, 48
    %v491 = vpop.permute.xlu0 %490
    %492 = vrot.lane.b32.xlu0 %v147, 48
    %v493 = vpop.permute.xlu0 %492
    %494 = vrot.lane.b32.xlu0 %v148, 48
    %v495 = vpop.permute.xlu0 %494
    %496 = vrot.lane.b32.xlu0 %v149, 48
    %v497 = vpop.permute.xlu0 %496
    %v502 = vmul.f32 %v446, %v491
    %v503 = vmul.f32 %v447, %v493
    %v504 = vmul.f32 %v448, %v495
    %v505 = vmul.f32 %v449, %v497
    %v506 = vmul.f32 %v486, %v150
    %v507 = vmul.f32 %v487, %v151
    %v508 = vmul.f32 %v488, %v152
    %v509 = vmul.f32 %v489, %v153
    %514 = vrot.lane.b32.xlu0 %v506, 48
    %v515 = vpop.permute.xlu0 %514
    %516 = vrot.lane.b32.xlu0 %v507, 48
    %v517 = vpop.permute.xlu0 %516
    %518 = vrot.lane.b32.xlu0 %v508, 48
    %v519 = vpop.permute.xlu0 %518
    %520 = vrot.lane.b32.xlu0 %v509, 48
    %v521 = vpop.permute.xlu0 %520
    %v526 = vadd.f32 %v502, %v515
    %v527 = vadd.f32 %v503, %v517
    %v528 = vadd.f32 %v504, %v519
    %v529 = vadd.f32 %v505, %v521
    %v530 = vpack.c.bf16 %v527, %v526
    %v531 = vpack.c.bf16 %v529, %v528
    %v534 = vunpack.c.l.b16 %v530
    %v535 = vunpack.c.h.b16 %v530
    %v536 = vunpack.c.l.b16 %v531
    %v537 = vunpack.c.h.b16 %v531
    %v538 = vpack.c.b16 %v534, %v534
    %v539 = vpack.c.b16 %v535, %v535
    %v540 = vpack.c.b16 %v536, %v536
    %v541 = vpack.c.b16 %v537, %v537
    %vm546 = vcmask 519552
    %547 = vst.msk [vmem:[%s4] sm:$0xf] %vm546, %v538
    %548 = vst.msk [vmem:[%s4 + $0x4] sm:$0xf] %vm546, %v539
    %549 = vst.msk [vmem:[%s4 + $0x8] sm:$0xf] %vm546, %v540
    %550 = vst.msk [vmem:[%s4 + $0xc] sm:$0xf] %vm546, %v541
    %v551 = vld [vmem:[#allocation2] sm:$0xff]
    %v552 = vld [vmem:[#allocation2 + $0x8] sm:$0xff]
    %v553 = vld [vmem:[#allocation2 + $0x10] sm:$0xff]
    %v554 = vld [vmem:[#allocation2 + $0x18] sm:$0xff]
    %v555 = vsub.f32 0.0, %v551
    %v556 = vsub.f32 0.0, %v552
    %v557 = vsub.f32 0.0, %v553
    %v558 = vsub.f32 0.0, %v554
    %563 = vrot.lane.b32.xlu0 %v555, 56
    %v564 = vpop.permute.xlu0 %563
    %565 = vrot.lane.b32.xlu0 %v556, 56
    %v566 = vpop.permute.xlu0 %565
    %567 = vrot.lane.b32.xlu0 %v557, 56
    %v568 = vpop.permute.xlu0 %567
    %569 = vrot.lane.b32.xlu0 %v558, 56
    %v570 = vpop.permute.xlu0 %569
    %579 = vrot.lane.b32.xlu0 %v551, 72
    %v580 = vpop.permute.xlu0 %579
    %581 = vrot.lane.b32.xlu0 %v552, 72
    %v582 = vpop.permute.xlu0 %581
    %583 = vrot.lane.b32.xlu0 %v553, 72
    %v584 = vpop.permute.xlu0 %583
    %585 = vrot.lane.b32.xlu0 %v554, 72
    %v586 = vpop.permute.xlu0 %585
    %v591 = vsel %vm194, %v564, %v580
    %v592 = vsel %vm194, %v566, %v582
    %v593 = vsel %vm194, %v568, %v584
    %v594 = vsel %vm194, %v570, %v586
    %595 = vrot.lane.b32.xlu0 %v146, 64
    %v596 = vpop.permute.xlu0 %595
    %597 = vrot.lane.b32.xlu0 %v147, 64
    %v598 = vpop.permute.xlu0 %597
    %599 = vrot.lane.b32.xlu0 %v148, 64
    %v600 = vpop.permute.xlu0 %599
    %601 = vrot.lane.b32.xlu0 %v149, 64
    %v602 = vpop.permute.xlu0 %601
    %v607 = vmul.f32 %v551, %v596
    %v608 = vmul.f32 %v552, %v598
    %v609 = vmul.f32 %v553, %v600
    %v610 = vmul.f32 %v554, %v602
    %v611 = vmul.f32 %v591, %v150
    %v612 = vmul.f32 %v592, %v151
    %v613 = vmul.f32 %v593, %v152
    %v614 = vmul.f32 %v594, %v153
    %619 = vrot.lane.b32.xlu0 %v611, 64
    %v620 = vpop.permute.xlu0 %619
    %621 = vrot.lane.b32.xlu0 %v612, 64
    %v622 = vpop.permute.xlu0 %621
    %623 = vrot.lane.b32.xlu0 %v613, 64
    %v624 = vpop.permute.xlu0 %623
    %625 = vrot.lane.b32.xlu0 %v614, 64
    %v626 = vpop.permute.xlu0 %625
    %v631 = vadd.f32 %v607, %v620
    %v632 = vadd.f32 %v608, %v622
    %v633 = vadd.f32 %v609, %v624
    %v634 = vadd.f32 %v610, %v626
    %v635 = vpack.c.bf16 %v632, %v631
    %v636 = vpack.c.bf16 %v634, %v633
    %v639 = vunpack.c.l.b16 %v635
    %v640 = vunpack.c.h.b16 %v635
    %v641 = vunpack.c.l.b16 %v636
    %v642 = vunpack.c.h.b16 %v636
    %v643 = vpack.c.b16 %v639, %v639
    %v644 = vpack.c.b16 %v640, %v640
    %v645 = vpack.c.b16 %v641, %v641
    %v646 = vpack.c.b16 %v642, %v642
    %647 = vrot.lane.b32.xlu0 %v643, 64
    %v648 = vpop.permute.xlu0 %647
    %649 = vrot.lane.b32.xlu0 %v644, 64
    %v650 = vpop.permute.xlu0 %649
    %651 = vrot.lane.b32.xlu0 %v645, 64
    %v652 = vpop.permute.xlu0 %651
    %653 = vrot.lane.b32.xlu0 %v646, 64
    %v654 = vpop.permute.xlu0 %653
    %659 = vst.msk [vmem:[%s5] sm:$0xf] %vm227, %v648
    %660 = vst.msk [vmem:[%s5 + $0x4] sm:$0xf] %vm227, %v650
    %661 = vst.msk [vmem:[%s5 + $0x8] sm:$0xf] %vm227, %v652
    %662 = vst.msk [vmem:[%s5 + $0xc] sm:$0xf] %vm227, %v654
    %v663 = vld [vmem:[#allocation2] sm:$0xff]
    %v664 = vld [vmem:[#allocation2 + $0x8] sm:$0xff]
    %v665 = vld [vmem:[#allocation2 + $0x10] sm:$0xff]
    %v666 = vld [vmem:[#allocation2 + $0x18] sm:$0xff]
    %v667 = vsub.f32 0.0, %v663
    %v668 = vsub.f32 0.0, %v664
    %v669 = vsub.f32 0.0, %v665
    %v670 = vsub.f32 0.0, %v666
    %675 = vrot.lane.b32.xlu0 %v667, 40
    %v676 = vpop.permute.xlu0 %675
    %677 = vrot.lane.b32.xlu0 %v668, 40
    %v678 = vpop.permute.xlu0 %677
    %679 = vrot.lane.b32.xlu0 %v669, 40
    %v680 = vpop.permute.xlu0 %679
    %681 = vrot.lane.b32.xlu0 %v670, 40
    %v682 = vpop.permute.xlu0 %681
    %691 = vrot.lane.b32.xlu0 %v663, 56
    %v692 = vpop.permute.xlu0 %691
    %693 = vrot.lane.b32.xlu0 %v664, 56
    %v694 = vpop.permute.xlu0 %693
    %695 = vrot.lane.b32.xlu0 %v665, 56
    %v696 = vpop.permute.xlu0 %695
    %697 = vrot.lane.b32.xlu0 %v666, 56
    %v698 = vpop.permute.xlu0 %697
    %v703 = vsel %vm194, %v676, %v692
    %v704 = vsel %vm194, %v678, %v694
    %v705 = vsel %vm194, %v680, %v696
    %v706 = vsel %vm194, %v682, %v698
    %707 = vrot.lane.b32.xlu0 %v146, 80
    %v708 = vpop.permute.xlu0 %707
    %709 = vrot.lane.b32.xlu0 %v147, 80
    %v710 = vpop.permute.xlu0 %709
    %711 = vrot.lane.b32.xlu0 %v148, 80
    %v712 = vpop.permute.xlu0 %711
    %713 = vrot.lane.b32.xlu0 %v149, 80
    %v714 = vpop.permute.xlu0 %713
    %v719 = vmul.f32 %v663, %v708
    %v720 = vmul.f32 %v664, %v710
    %v721 = vmul.f32 %v665, %v712
    %v722 = vmul.f32 %v666, %v714
    %v723 = vmul.f32 %v703, %v150
    %v724 = vmul.f32 %v704, %v151
    %v725 = vmul.f32 %v705, %v152
    %v726 = vmul.f32 %v706, %v153
    %731 = vrot.lane.b32.xlu0 %v723, 80
    %v732 = vpop.permute.xlu0 %731
    %733 = vrot.lane.b32.xlu0 %v724, 80
    %v734 = vpop.permute.xlu0 %733
    %735 = vrot.lane.b32.xlu0 %v725, 80
    %v736 = vpop.permute.xlu0 %735
    %737 = vrot.lane.b32.xlu0 %v726, 80
    %v738 = vpop.permute.xlu0 %737
    %v743 = vadd.f32 %v719, %v732
    %v744 = vadd.f32 %v720, %v734
    %v745 = vadd.f32 %v721, %v736
    %v746 = vadd.f32 %v722, %v738
    %v747 = vpack.c.bf16 %v744, %v743
    %v748 = vpack.c.bf16 %v746, %v745
    %v751 = vunpack.c.l.b16 %v747
    %v752 = vunpack.c.h.b16 %v747
    %v753 = vunpack.c.l.b16 %v748
    %v754 = vunpack.c.h.b16 %v748
    %v755 = vpack.c.b16 %v751, %v751
    %v756 = vpack.c.b16 %v752, %v752
    %v757 = vpack.c.b16 %v753, %v753
    %v758 = vpack.c.b16 %v754, %v754
    %759 = vrot.lane.b32.xlu0 %v755, 64
    %v760 = vpop.permute.xlu0 %759
    %761 = vrot.lane.b32.xlu0 %v756, 64
    %v762 = vpop.permute.xlu0 %761
    %763 = vrot.lane.b32.xlu0 %v757, 64
    %v764 = vpop.permute.xlu0 %763
    %765 = vrot.lane.b32.xlu0 %v758, 64
    %v766 = vpop.permute.xlu0 %765
    %771 = vst.msk [vmem:[%s5] sm:$0xf] %vm336, %v760
    %772 = vst.msk [vmem:[%s5 + $0x4] sm:$0xf] %vm336, %v762
    %773 = vst.msk [vmem:[%s5 + $0x8] sm:$0xf] %vm336, %v764
    %774 = vst.msk [vmem:[%s5 + $0xc] sm:$0xf] %vm336, %v766
    %v775 = vld [vmem:[#allocation2] sm:$0xff]
    %v776 = vld [vmem:[#allocation2 + $0x8] sm:$0xff]
    %v777 = vld [vmem:[#allocation2 + $0x10] sm:$0xff]
    %v778 = vld [vmem:[#allocation2 + $0x18] sm:$0xff]
    %v779 = vpack.c.bf16 %v776, %v775
    %v780 = vpack.c.bf16 %v778, %v777
    %v783 = vunpack.c.l.b16 %v779
    %v784 = vunpack.c.h.b16 %v779
    %v785 = vunpack.c.l.b16 %v780
    %v786 = vunpack.c.h.b16 %v780
    %v787 = vpack.c.b16 %v783, %v783
    %v788 = vpack.c.b16 %v784, %v784
    %v789 = vpack.c.b16 %v785, %v785
    %v790 = vpack.c.b16 %v786, %v786
    %791 = vrot.lane.b32.xlu0 %v787, 32
    %v792 = vpop.permute.xlu0 %791
    %793 = vrot.lane.b32.xlu0 %v788, 32
    %v794 = vpop.permute.xlu0 %793
    %795 = vrot.lane.b32.xlu0 %v789, 32
    %v796 = vpop.permute.xlu0 %795
    %797 = vrot.lane.b32.xlu0 %v790, 32
    %v798 = vpop.permute.xlu0 %797
    %vm803 = vcmask 257024
    %804 = vst.msk [vmem:[%s6] sm:$0xf] %vm803, %v792
    %805 = vst.msk [vmem:[%s6 + $0x4] sm:$0xf] %vm803, %v794
    %806 = vst.msk [vmem:[%s6 + $0x8] sm:$0xf] %vm803, %v796
    %807 = vst.msk [vmem:[%s6 + $0xc] sm:$0xf] %vm803, %v798
  $region25: #{llama_forward.15} parent=0 // pred_fallthru
    _
  // Predicated region
  $region26: #{llama_forward.15} parent=0 // pred_check
    _
  $region27: #{llama_forward.15} parent=0 // pred_check_branch
    %809 = sbr.rel (0) target = $region29
  $region28: #{llama_forward.15} parent=0 // pred_region
    _
  $region29: #{llama_forward.15} parent=0 // pred_fallthru
    _
  // Predicated region
  $region30: #{llama_forward.15} parent=0 // pred_check
    _
  $region31: #{llama_forward.15} parent=0 // pred_check_branch
    %811 = sbr.rel (0) target = $region33
  $region32: #{llama_forward.15} parent=0 // pred_region
    _
  $region33: #{llama_forward.15} parent=0 // pred_fallthru
    _
  // Predicated region
  $region34: #{llama_forward.15} parent=0 // pred_check
    _
  $region35: #{llama_forward.15} parent=0 // pred_check_branch
    %813 = sbr.rel (0) target = $region37
  $region36: #{llama_forward.15} parent=0 // pred_region
    _
  $region37: #{llama_forward.15} parent=0 // pred_fallthru
    _
  // Predicated region
  $region38: #{llama_forward.15} parent=0 // pred_check
    _
  $region39: #{llama_forward.15} parent=0 // pred_check_branch
    %815 = sbr.rel (0) target = $region41
  $region40: #{llama_forward.15} parent=0 // pred_region
    _
  $region41: #{llama_forward.15} parent=0 // pred_fallthru
    _
  // Predicated region
  $region42: #{llama_forward.15} parent=0 // pred_check
    _
  $region43: #{llama_forward.15} parent=0 // pred_check_branch
    %817 = sbr.rel (0) target = $region45
  $region44: #{llama_forward.15} parent=0 // pred_region
    _
  $region45: #{llama_forward.15} parent=0 // pred_fallthru
    _
  // Predicated region
  $region46: #{llama_forward.15} parent=0 // pred_check
    _
  $region47: #{llama_forward.15} parent=0 // pred_check_branch
    %819 = sbr.rel (0) target = $region49
  $region48: #{llama_forward.15} parent=0 // pred_region
    _
  $region49: #{llama_forward.15} parent=0 // pred_fallthru
    _

// kernel: llama_forward.16
$region0: #{llama_forward.16}
  #allocation0 [shape = 'u32[]', space=smem, size = 0x4, offset = 0x4, fixed_abs, tag = 'smem constant byte address 0x4 - core index']
  #allocation1 [shape = 'u32[144,128]{1,0:T(1,128)}', space=vmem, size = 0x12000, scoped, tag = 'internal scratch']
  #allocation2 [shape = 'f32[2,32,1]{2,1,0:T(8,128)}', space=vmem, size = 0x8000, scoped, tag = 'scratch operand']
  #allocation3 [shape = 'f32[2,32,1]{2,1,0:T(8,128)}', space=vmem, size = 0x8000, scoped, tag = 'scratch operand']
  #allocation4 [shape = 'f32[2,32,16]{2,1,0:T(8,128)}', space=vmem, size = 0x8000, scoped, tag = 'scratch operand']
  #allocation5 [shape = 'bf16[2,32,16]{2,1,0:T(8,128)(2,1)}', space=vmem, size = 0x4000, scoped, tag = 'scratch operand']
  %s0 = inlined_call_operand.vmem [shape: bf16[2,16,64], index: 0, kind: input, shape index: {}]
  %s1 = inlined_call_operand.vmem [shape: bf16[2,16,32], index: 1, kind: input, shape index: {}]
  %s2 = inlined_call_operand.vmem [shape: bf16[2,16,32], index: 2, kind: input, shape index: {}]
  %s3 = inlined_call_operand.vmem [shape: bf16[2,16,64], index: 3, kind: output, shape index: {}]
  %s4 = sld [smem:[#allocation0]]
  $region57: #{llama_forward.16} parent=0
    _
  %s6 = ssub.s32 1, %s4
  %s7 = scalar_select 0, %s6, %s4
  loop: start=0, step=1, limit=4
  $region2: #{llama_forward.16} parent=0 // loop_pre_header
    _
  $region3: #{llama_forward.16} parent=0 // loop_header
    %s9 = sphi 0, %s13
    %p10 = scmp.ge.s32.totalorder %s9, 4
    %s16 = sphi 0, %s35
    %s17 = sphi 0, %s31
    %s18 = sphi 0, %s27
    %s19 = sphi 0, %s16
    %s20 = sphi 0, %s17
    %s21 = sphi 0, %s18
    %s22 = sphi 0, %s19
    %s23 = sphi 0, %s20
    %s24 = sphi 0, %s21
    %s40 = sphi 0, %s42
    %s43 = sphi 0, %s40
    %s44 = sphi 0, %s43
    %s60 = sphi 0, %s44
    %s68 = sphi 0, %s70
    %s71 = sphi 0, %s68
    %s72 = sphi 0, %s71
    %s88 = sphi 0, %s72
    %s96 = sphi 0, %s98
    %s99 = sphi 0, %s96
    %s100 = sphi 0, %s99
    %s116 = sphi 0, %s100
    %s124 = sphi 0, %s126
    %s127 = sphi 0, %s124
    %s128 = sphi 0, %s127
    %s144 = sphi 0, %s128
  $region4: #{llama_forward.16} parent=0 // loop_header_branch
    %12 = sbr.rel (%p10) target = $region8
  $region5: #{llama_forward.16} parent=0 // loop_body
    %s14 = ssub.s32 %s9, 1
    %s15 = ssub.s32 %s9, 2
    %s25 = sadd.s32 1, %s18
    %p26 = scmp.ge.s32.totalorder %s25, 1
    %s27 = scalar_select %p26, 0, %s25
    %s28 = sadd.s32 1, %s17
    %s29 = scalar_select %p26, %s28, %s17
    %p30 = scmp.ge.s32.totalorder %s29, 1
    %s31 = scalar_select %p30, 0, %s29
    %s32 = sadd.s32 1, %s16
    %s33 = scalar_select %p30, %s32, %s16
    %p34 = scmp.ge.s32.totalorder %s33, 2
    %s35 = scalar_select %p34, 0, %s33
    %s36 = ssub.s32 %s16, %s35
    %s37 = ssub.s32 %s17, %s31
    %s38 = sor.u32 %s36, %s37
    %p39 = scmp.eq.s32.totalorder %s38, 0
    %s41 = sadd.s32 %s40, 1
    %s42 = scalar_select %p39, %s40, %s41
    %p45 = pneg %p39
    %p46 = scmp.eq.s32.totalorder %s9, 1
    %p47 = por %p45, %p46
    %p48 = scmp.ne.s32.totalorder %s40, %s43
    %p49 = scmp.eq.s32.totalorder %s9, 0
    %p50 = por %p48, %p49
    %p51 = scmp.ne.s32.totalorder %s40, %s43
    %p52 = scmp.eq.s32.totalorder %s14, 1
    %p53 = por %p51, %p52
    %p54 = scmp.ne.s32.totalorder %s43, %s44
    %p55 = scmp.eq.s32.totalorder %s14, 0
    %p56 = por %p54, %p55
    %p57 = scmp.ne.s32.totalorder %s43, %s44
    %p58 = scmp.eq.s32.totalorder %s15, 1
    %p59 = por %p57, %p58
    %p61 = scmp.ne.s32.totalorder %s44, %s60
    %p62 = scmp.eq.s32.totalorder %s15, 0
    %p63 = por %p61, %p62
    %s64 = ssub.s32 %s16, %s35
    %s65 = ssub.s32 %s18, %s27
    %s66 = sor.u32 %s64, %s65
    %p67 = scmp.eq.s32.totalorder %s66, 0
    %s69 = sadd.s32 %s68, 1
    %s70 = scalar_select %p67, %s68, %s69
    %p73 = pneg %p67
    %p74 = scmp.eq.s32.totalorder %s9, 1
    %p75 = por %p73, %p74
    %p76 = scmp.ne.s32.totalorder %s68, %s71
    %p77 = scmp.eq.s32.totalorder %s9, 0
    %p78 = por %p76, %p77
    %p79 = scmp.ne.s32.totalorder %s68, %s71
    %p80 = scmp.eq.s32.totalorder %s14, 1
    %p81 = por %p79, %p80
    %p82 = scmp.ne.s32.totalorder %s71, %s72
    %p83 = scmp.eq.s32.totalorder %s14, 0
    %p84 = por %p82, %p83
    %p85 = scmp.ne.s32.totalorder %s71, %s72
    %p86 = scmp.eq.s32.totalorder %s15, 1
    %p87 = por %p85, %p86
    %p89 = scmp.ne.s32.totalorder %s72, %s88
    %p90 = scmp.eq.s32.totalorder %s15, 0
    %p91 = por %p89, %p90
    %s92 = ssub.s32 %s16, %s35
    %s93 = ssub.s32 %s18, %s27
    %s94 = sor.u32 %s92, %s93
    %p95 = scmp.eq.s32.totalorder %s94, 0
    %s97 = sadd.s32 %s96, 1
    %s98 = scalar_select %p95, %s96, %s97
    %p101 = pneg %p95
    %p102 = scmp.eq.s32.totalorder %s9, 1
    %p103 = por %p101, %p102
    %p104 = scmp.ne.s32.totalorder %s96, %s99
    %p105 = scmp.eq.s32.totalorder %s9, 0
    %p106 = por %p104, %p105
    %p107 = scmp.ne.s32.totalorder %s96, %s99
    %p108 = scmp.eq.s32.totalorder %s14, 1
    %p109 = por %p107, %p108
    %p110 = scmp.ne.s32.totalorder %s99, %s100
    %p111 = scmp.eq.s32.totalorder %s14, 0
    %p112 = por %p110, %p111
    %p113 = scmp.ne.s32.totalorder %s99, %s100
    %p114 = scmp.eq.s32.totalorder %s15, 1
    %p115 = por %p113, %p114
    %p117 = scmp.ne.s32.totalorder %s100, %s116
    %p118 = scmp.eq.s32.totalorder %s15, 0
    %p119 = por %p117, %p118
    %s120 = ssub.s32 %s16, %s35
    %s121 = ssub.s32 %s17, %s31
    %s122 = sor.u32 %s120, %s121
    %p123 = scmp.eq.s32.totalorder %s122, 0
    %s125 = sadd.s32 %s124, 1
    %s126 = scalar_select %p123, %s124, %s125
    %p129 = pneg %p123
    %p130 = scmp.eq.s32.totalorder %s9, 1
    %p131 = por %p129, %p130
    %p132 = scmp.ne.s32.totalorder %s124, %s127
    %p133 = scmp.eq.s32.totalorder %s9, 0
    %p134 = por %p132, %p133
    %p135 = scmp.ne.s32.totalorder %s124, %s127
    %p136 = scmp.eq.s32.totalorder %s14, 1
    %p137 = por %p135, %p136
    %p138 = scmp.ne.s32.totalorder %s127, %s128
    %p139 = scmp.eq.s32.totalorder %s14, 0
    %p140 = por %p138, %p139
    %p141 = scmp.ne.s32.totalorder %s127, %s128
    %p142 = scmp.eq.s32.totalorder %s15, 1
    %p143 = por %p141, %p142
    %p145 = scmp.ne.s32.totalorder %s128, %s144
    %p146 = scmp.eq.s32.totalorder %s15, 0
    %p147 = por %p145, %p146
    %p148 = scmp.le.s32.totalorder 1, %s9
    %p149 = scmp.lt.s32.totalorder %s9, 3
    %p150 = pnand %p148, %p149
    %p151 = pneg %p150
    // Predicated region
    $region9: #{llama_forward.16} parent=5 // pred_check
      _
    $region10: #{llama_forward.16} parent=5 // pred_check_branch
      %153 = sbr.rel (%p150) target = $region12
    $region11: #{llama_forward.16} parent=5 // pred_region
      %s154 = ssub.s32 %s9, 1
    $region12: #{llama_forward.16} parent=5 // pred_fallthru
      _
    %p155 = scmp.lt.s32.totalorder %s9, 2
    // Predicated region
    $region13: #{llama_forward.16} parent=5 // pred_check
      %p156 = pneg %p155
    $region14: #{llama_forward.16} parent=5 // pred_check_branch
      %158 = sbr.rel (%p156) target = $region16
    $region15: #{llama_forward.16} parent=5 // pred_region
      // Predicated region
      $region17: #{llama_forward.16} parent=15 // pred_check
        %p159 = pneg %p50
      $region18: #{llama_forward.16} parent=15 // pred_check_branch
        %161 = sbr.rel (%p159) target = $region20
      $region19: #{llama_forward.16} parent=15 // pred_region
        %s162 = smul.u32 2, %s17
        %p163 = scmp.lt.s32.totalorder %s16, 1
        %s164 = scalar_select %p163, %s16, 1
        %p165 = scmp.lt.s32.totalorder %s162, 1
        %s166 = scalar_select %p165, %s162, 1
        %s167 = smul.addr %s164, 2
        %s168 = sadd.s32 %s166, %s167
        %s169 = smul.addr %s168, 4
        %s170 = scalar_lea.vmem %s0, %s169
        %s171 = smul.u32 2, %s17
      $region20: #{llama_forward.16} parent=15 // pred_fallthru
        _
      // Predicated region
      $region21: #{llama_forward.16} parent=15 // pred_check
        %p172 = pneg %p78
      $region22: #{llama_forward.16} parent=15 // pred_check_branch
        %174 = sbr.rel (%p172) target = $region24
      $region23: #{llama_forward.16} parent=15 // pred_region
        %s175 = smul.u32 2, %s18
        %p176 = scmp.lt.s32.totalorder %s16, 1
        %s177 = scalar_select %p176, %s16, 1
        %p178 = scmp.lt.s32.totalorder %s175, 1
        %s179 = scalar_select %p178, %s175, 1
        %s180 = smul.addr %s177, 2
        %s181 = sadd.s32 %s179, %s180
        %s182 = smul.addr %s181, 4
        %s183 = scalar_lea.vmem %s1, %s182
        %s184 = smul.u32 2, %s18
      $region24: #{llama_forward.16} parent=15 // pred_fallthru
        _
      // Predicated region
      $region25: #{llama_forward.16} parent=15 // pred_check
        %p185 = pneg %p106
      $region26: #{llama_forward.16} parent=15 // pred_check_branch
        %187 = sbr.rel (%p185) target = $region28
      $region27: #{llama_forward.16} parent=15 // pred_region
        %s188 = smul.u32 2, %s18
        %p189 = scmp.lt.s32.totalorder %s16, 1
        %s190 = scalar_select %p189, %s16, 1
        %p191 = scmp.lt.s32.totalorder %s188, 1
        %s192 = scalar_select %p191, %s188, 1
        %s193 = smul.addr %s190, 2
        %s194 = sadd.s32 %s192, %s193
        %s195 = smul.addr %s194, 4
        %s196 = scalar_lea.vmem %s2, %s195
        %s197 = smul.u32 2, %s18
      $region28: #{llama_forward.16} parent=15 // pred_fallthru
        _
    $region16: #{llama_forward.16} parent=5 // pred_fallthru
      _
    %p198 = scmp.le.s32.totalorder 1, %s9
    %p199 = scmp.lt.s32.totalorder %s9, 3
    %p200 = pnand %p198, %p199
    %p201 = pneg %p200
    // Predicated region
    $region29: #{llama_forward.16} parent=5 // pred_check
      _
    $region30: #{llama_forward.16} parent=5 // pred_check_branch
      %203 = sbr.rel (%p200) target = $region32
    $region31: #{llama_forward.16} parent=5 // pred_region
      %s204 = ssub.s32 %s9, 1
      %s205 = smul.u32 2, %s20
      %p206 = scmp.lt.s32.totalorder %s19, 1
      %s207 = scalar_select %p206, %s19, 1
      %p208 = scmp.lt.s32.totalorder %s205, 1
      %s209 = scalar_select %p208, %s205, 1
      %s210 = smul.addr %s207, 2
      %s211 = sadd.s32 %s209, %s210
      %s212 = smul.addr %s211, 4
      %s213 = scalar_lea.vmem %s0, %s212
      %p214 = pneg %p56
      %p215 = pneg %p53
      %s216 = smul.u32 2, %s21
      %p217 = scmp.lt.s32.totalorder %s19, 1
      %s218 = scalar_select %p217, %s19, 1
      %p219 = scmp.lt.s32.totalorder %s216, 1
      %s220 = scalar_select %p219, %s216, 1
      %s221 = smul.addr %s218, 2
      %s222 = sadd.s32 %s220, %s221
      %s223 = smul.addr %s222, 4
      %s224 = scalar_lea.vmem %s1, %s223
      %p225 = pneg %p84
      %p226 = pneg %p81
      %s227 = smul.u32 2, %s21
      %p228 = scmp.lt.s32.totalorder %s19, 1
      %s229 = scalar_select %p228, %s19, 1
      %p230 = scmp.lt.s32.totalorder %s227, 1
      %s231 = scalar_select %p230, %s227, 1
      %s232 = smul.addr %s229, 2
      %s233 = sadd.s32 %s231, %s232
      %s234 = smul.addr %s233, 4
      %s235 = scalar_lea.vmem %s2, %s234
      %p236 = pneg %p112
      %p237 = pneg %p109
      %p238 = pneg %p140
      %p239 = pneg %p137
      %s240 = smul.u32 2, %s20
      %p241 = scmp.lt.s32.totalorder %s19, 1
      %s242 = scalar_select %p241, %s19, 1
      %p243 = scmp.lt.s32.totalorder %s240, 1
      %s244 = scalar_select %p243, %s240, 1
      %s245 = smul.addr %s242, 2
      %s246 = sadd.s32 %s244, %s245
      %s247 = smul.addr %s246, 4
      %s248 = scalar_lea.vmem %s3, %s247
      %s249 = smul.u32 2, %s20
      %p250 = scmp.lt.s32.totalorder %s19, 1
      %s251 = scalar_select %p250, %s19, 1
      %p252 = scmp.lt.s32.totalorder %s249, 1
      %s253 = scalar_select %p252, %s249, 1
      %s254 = smul.addr %s251, 2
      %s255 = sadd.s32 %s253, %s254
      %s256 = smul.addr %s255, 4
      %s257 = scalar_lea.vmem %s0, %s256
      %s258 = smul.u32 2, %s20
      %s259 = smul.u32 2, %s21
      %p260 = scmp.lt.s32.totalorder %s19, 1
      %s261 = scalar_select %p260, %s19, 1
      %p262 = scmp.lt.s32.totalorder %s259, 1
      %s263 = scalar_select %p262, %s259, 1
      %s264 = smul.addr %s261, 2
      %s265 = sadd.s32 %s263, %s264
      %s266 = smul.addr %s265, 4
      %s267 = scalar_lea.vmem %s1, %s266
      %s268 = smul.u32 2, %s21
      %s269 = smul.u32 2, %s21
      %p270 = scmp.lt.s32.totalorder %s19, 1
      %s271 = scalar_select %p270, %s19, 1
      %p272 = scmp.lt.s32.totalorder %s269, 1
      %s273 = scalar_select %p272, %s269, 1
      %s274 = smul.addr %s271, 2
      %s275 = sadd.s32 %s273, %s274
      %s276 = smul.addr %s275, 4
      %s277 = scalar_lea.vmem %s2, %s276
      %s278 = smul.u32 2, %s21
      %s279 = smul.u32 2, %s20
      %p280 = scmp.lt.s32.totalorder %s19, 1
      %s281 = scalar_select %p280, %s19, 1
      %p282 = scmp.lt.s32.totalorder %s279, 1
      %s283 = scalar_select %p282, %s279, 1
      %s284 = smul.addr %s281, 2
      %s285 = sadd.s32 %s283, %s284
      %s286 = smul.addr %s285, 4
      %s287 = scalar_lea.vmem %s3, %s286
      %s288 = smul.u32 2, %s20
      %p290 = scmp.eq.s32.totalorder %s21, 0
      // Predicated region
      $region33: #{llama_forward.16} parent=31 // pred_check
        %p291 = pneg %p290
      $region34: #{llama_forward.16} parent=31 // pred_check_branch
        %293 = sbr.rel (%p291) target = $region36
      $region35: #{llama_forward.16} parent=31 // pred_region
        %vm294 = vcmask 7168
        %295 = vst.msk [vmem:[#allocation2] sm:$0xff] %vm294, -1e+30
        %296 = vst.msk [vmem:[#allocation2 + $0x8] sm:$0xff] %vm294, -1e+30
        %297 = vst.msk [vmem:[#allocation2 + $0x10] sm:$0xff] %vm294, -1e+30
        %298 = vst.msk [vmem:[#allocation2 + $0x18] sm:$0xff] %vm294, -1e+30
        %299 = vst.msk [vmem:[#allocation2 + $0x20] sm:$0xff] %vm294, -1e+30
        %300 = vst.msk [vmem:[#allocation2 + $0x28] sm:$0xff] %vm294, -1e+30
        %301 = vst.msk [vmem:[#allocation2 + $0x30] sm:$0xff] %vm294, -1e+30
        %302 = vst.msk [vmem:[#allocation2 + $0x38] sm:$0xff] %vm294, -1e+30
        %303 = vst.msk [vmem:[#allocation3] sm:$0xff] %vm294, 0.0
        %304 = vst.msk [vmem:[#allocation3 + $0x8] sm:$0xff] %vm294, 0.0
        %305 = vst.msk [vmem:[#allocation3 + $0x10] sm:$0xff] %vm294, 0.0
        %306 = vst.msk [vmem:[#allocation3 + $0x18] sm:$0xff] %vm294, 0.0
        %307 = vst.msk [vmem:[#allocation3 + $0x20] sm:$0xff] %vm294, 0.0
        %308 = vst.msk [vmem:[#allocation3 + $0x28] sm:$0xff] %vm294, 0.0
        %309 = vst.msk [vmem:[#allocation3 + $0x30] sm:$0xff] %vm294, 0.0
        %310 = vst.msk [vmem:[#allocation3 + $0x38] sm:$0xff] %vm294, 0.0
        %vm311 = vcmask 130048
        %312 = vst.msk [vmem:[#allocation4] sm:$0xff] %vm311, 0.0
        %313 = vst.msk [vmem:[#allocation4 + $0x8] sm:$0xff] %vm311, 0.0
        %314 = vst.msk [vmem:[#allocation4 + $0x10] sm:$0xff] %vm311, 0.0
        %315 = vst.msk [vmem:[#allocation4 + $0x18] sm:$0xff] %vm311, 0.0
        %316 = vst.msk [vmem:[#allocation4 + $0x20] sm:$0xff] %vm311, 0.0
        %317 = vst.msk [vmem:[#allocation4 + $0x28] sm:$0xff] %vm311, 0.0
        %318 = vst.msk [vmem:[#allocation4 + $0x30] sm:$0xff] %vm311, 0.0
        %319 = vst.msk [vmem:[#allocation4 + $0x38] sm:$0xff] %vm311, 0.0
        %v320 = vld [vmem:[%s257] sm:$0xf]
        %v321 = vld [vmem:[%s257 + $0x4] sm:$0xf]
        %vm322 = vcmask 125952
        %323 = vst.msk [vmem:[#allocation5] sm:$0xf] %vm322, %v320
        %324 = vst.msk [vmem:[#allocation5 + $0x4] sm:$0xf] %vm322, %v321
        %v325 = vld [vmem:[%s257] sm:$0xf]
        %v326 = vld [vmem:[%s257 + $0x4] sm:$0xf]
        %329 = vrot.lane.b32.xlu0 %v325, 112
        %v330 = vpop.permute.xlu0 %329
        %331 = vrot.lane.b32.xlu0 %v326, 112
        %v332 = vpop.permute.xlu0 %331
        %335 = vst.msk [vmem:[#allocation5 + $0x8] sm:$0xf] %vm322, %v330
        %336 = vst.msk [vmem:[#allocation5 + $0xc] sm:$0xf] %vm322, %v332
        %v337 = vld [vmem:[%s257] sm:$0xf]
        %v338 = vld [vmem:[%s257 + $0x4] sm:$0xf]
        %341 = vrot.lane.b32.xlu0 %v337, 96
        %v342 = vpop.permute.xlu0 %341
        %343 = vrot.lane.b32.xlu0 %v338, 96
        %v344 = vpop.permute.xlu0 %343
        %s347 = scalar_lea.vmem [#allocation5], 16
        %348 = vst.msk [vmem:[%s347] sm:$0xf] %vm322, %v342
        %349 = vst.msk [vmem:[%s347 + $0x4] sm:$0xf] %vm322, %v344
        %v350 = vld [vmem:[%s257] sm:$0xf]
        %v351 = vld [vmem:[%s257 + $0x4] sm:$0xf]
        %354 = vrot.lane.b32.xlu0 %v350, 80
        %v355 = vpop.permute.xlu0 %354
        %356 = vrot.lane.b32.xlu0 %v351, 80
        %v357 = vpop.permute.xlu0 %356
        %360 = vst.msk [vmem:[%s347 + $0x8] sm:$0xf] %vm322, %v355
        %361 = vst.msk [vmem:[%s347 + $0xc] sm:$0xf] %vm322, %v357
      $region36: #{llama_forward.16} parent=31 // pred_fallthru
        _
      %s362 = smul.u32 %s21, 16
      %s363 = sadd.s32 %s20, 1
      %s364 = smul.u32 %s363, 16
      %p365 = scmp.lt.s32.totalorder %s362, %s364
      // Predicated region
      $region37: #{llama_forward.16} parent=31 // pred_check
        %p366 = pneg %p365
      $region38: #{llama_forward.16} parent=31 // pred_check_branch
        %368 = sbr.rel (%p366) target = $region40
      $region39: #{llama_forward.16} parent=31 // pred_region
        %s369 = smul.u32 %s20, 16
        %v370 = vlaneseq
        %v371 = vshrl.u32 %v370, 7
        %v372 = vadd.s32 %v371, 8
        %v373 = vadd.s32 %v371, 16
        %v374 = vadd.s32 %v371, 24
        %vm375 = vcmp.lt.s32.totalorder %v371, 0
        %v376 = vsub.s32 0, %v371
        %v377 = vsel %vm375, %v376, %v371
        %v378 = vshrl.u32 %v377, 4
        %v379 = vand.u32 %v377, 15
        %v380 = vsub.s32 0, %v379
        %v381 = vsel %vm375, %v380, %v379
        %vm382 = vcmp.lt.s32.totalorder %v372, 0
        %v383 = vsub.s32 0, %v372
        %v384 = vsel %vm382, %v383, %v372
        %v385 = vshrl.u32 %v384, 4
        %v386 = vand.u32 %v384, 15
        %v387 = vsub.s32 0, %v386
        %v388 = vsel %vm382, %v387, %v386
        %vm389 = vcmp.lt.s32.totalorder %v373, 0
        %v390 = vsub.s32 0, %v373
        %v391 = vsel %vm389, %v390, %v373
        %v392 = vshrl.u32 %v391, 4
        %v393 = vand.u32 %v391, 15
        %v394 = vsub.s32 0, %v393
        %v395 = vsel %vm389, %v394, %v393
        %vm396 = vcmp.lt.s32.totalorder %v374, 0
        %v397 = vsub.s32 0, %v374
        %v398 = vsel %vm396, %v397, %v374
        %v399 = vshrl.u32 %v398, 4
        %v400 = vand.u32 %v398, 15
        %v401 = vsub.s32 0, %v400
        %v402 = vsel %vm396, %v401, %v400
        %vm403 = vcmp.ne.s32.totalorder %v381, 0
        %vm404 = vcmp.ne.s32.totalorder %v388, 0
        %vm405 = vcmp.ne.s32.totalorder %v395, 0
        %vm406 = vcmp.ne.s32.totalorder %v402, 0
        %vm407 = vcmp.lt.s32.totalorder %v381, 0
        %vm408 = vcmp.lt.s32.totalorder %v388, 0
        %vm409 = vcmp.lt.s32.totalorder %v395, 0
        %vm410 = vcmp.lt.s32.totalorder %v402, 0
        %vm411 = vmand %vm407, %vm403
        %vm412 = vmand %vm408, %vm404
        %vm413 = vmand %vm409, %vm405
        %vm414 = vmand %vm410, %vm406
        %v415 = vadd.s32 %v381, 16
        %v416 = vadd.s32 %v388, 16
        %v417 = vadd.s32 %v395, 16
        %v418 = vadd.s32 %v402, 16
        %v419 = vsel %vm411, %v415, %v381
        %v420 = vsel %vm412, %v416, %v388
        %v421 = vsel %vm413, %v417, %v395
        %v422 = vsel %vm414, %v418, %v402
        %v423 = vstv %s369
        %v424 = vadd.s32 %v423, %v419
        %v425 = vadd.s32 %v423, %v420
        %v426 = vadd.s32 %v423, %v421
        %v427 = vadd.s32 %v423, %v422
        %v428 = vlaneseq
        %v429 = vand.u32 %v428, 127
        %v430 = vstv %s362
        %v431 = vadd.s32 %v430, %v429
        %v432 = vld [vmem:[%s267] sm:$0xf]
        %v433 = vld [vmem:[%s267 + $0x4] sm:$0xf]
        %v434 = vld [vmem:[%s277] sm:$0xf]
        %v435 = vld [vmem:[%s277 + $0x4] sm:$0xf]
        %v436 = vld [vmem:[#allocation5] sm:$0xf]
        %v437 = vld [vmem:[#allocation5 + $0x4] sm:$0xf]
        %v438 = vld [vmem:[#allocation5 + $0x8] sm:$0xf]
        %v439 = vld [vmem:[#allocation5 + $0xc] sm:$0xf]
        %v444 = vunpack.c.l.b16 %v436
        %v445 = vunpack.c.l.b16 %v437
        %v446 = vunpack.c.l.b16 %v438
        %v447 = vunpack.c.l.b16 %v439
        %v448 = vpack.c.b16 %v445, %v444
        %v449 = vpack.c.b16 %v447, %v446
        %v452 = vunpack.c.l.b16 %v432
        %v453 = vunpack.c.l.b16 %v433
        %v454 = vpack.c.b16 %v453, %v452
        %vm455 = vcmask 130048
        %v457 = vsel %vm455, %v448, 0
        %v460 = vsel %vm455, %v449, 0
        %v463 = vsel %vm455, %v454, 0
        %465 = vmatprep.subr.bf16.mxu0 0
        %466 = vmatpush1.bf16.xpose.msra.mxu0 0
        %467 = vmatprep.subr.bf16.mxu0 0
        %468 = vmatpush1.bf16.xpose.msra.mxu0 0
        %469 = vmatprep.subr.bf16.mxu0 0
        %470 = vmatpush1.bf16.xpose.msra.mxu0 0
        %471 = vmatprep.subr.bf16.mxu0 0
        %472 = vmatpush1.bf16.xpose.msra.mxu0 0
        %473 = vmatprep.subr.bf16.mxu0 0
        %474 = vmatpush1.bf16.xpose.msra.mxu0 0
        %475 = vmatprep.subr.bf16.mxu0 0
        %476 = vmatpush1.bf16.xpose.msra.mxu0 0
        %477 = vmatprep.subr.bf16.mxu0 0
        %478 = vmatpush1.bf16.xpose.msra.mxu0 0
        %479 = vmatprep.subr.bf16.mxu0 0
        %480 = vmatpush1.bf16.xpose.msra.mxu0 %v463
        %481 = vmatprep.subr.bf16.mxu0 0
        %482 = vmatpush2.bf16.xpose.msra.mxu0 0
        %483 = vmatprep.subr.bf16.mxu0 0
        %484 = vmatpush2.bf16.xpose.msra.mxu0 0
        %485 = vmatprep.subr.bf16.mxu0 0
        %486 = vmatpush2.bf16.xpose.msra.mxu0 0
        %487 = vmatprep.subr.bf16.mxu0 0
        %488 = vmatpush2.bf16.xpose.msra.mxu0 0
        %489 = vmatprep.subr.bf16.mxu0 0
        %490 = vmatpush2.bf16.xpose.msra.mxu0 0
        %491 = vmatprep.subr.bf16.mxu0 0
        %492 = vmatpush2.bf16.xpose.msra.mxu0 0
        %493 = vmatprep.subr.bf16.mxu0 0
        %494 = vmatpush2.bf16.xpose.msra.mxu0 0
        %495 = vmatprep.subr.bf16.mxu0 0
        %496 = vmatpush2.bf16.xpose.msra.mxu0 0
        %497 = vmatprep.mubr.bf16.mxu0 0
        %498 = vmatmul.mubr.bf16.gmra.mxu0 %v457
        %v499 = vpop.f32.mrf.mxu0
        %v500 = vadd.f32 0.0, %v499
        %v501 = vpop.f32.mrf.mxu0
        %v502 = vpop.f32.mrf.mxu0
        %v503 = vadd.f32 0.0, %v502
        %v504 = vpop.f32.mrf.mxu0
        %505 = vmatprep.mubr.bf16.mxu0 0
        %506 = vmatmul.mubr.bf16.gmra.mxu0 %v460
        %v507 = vpop.f32.mrf.mxu0
        %v508 = vadd.f32 0.0, %v507
        %v509 = vpop.f32.mrf.mxu0
        %v510 = vpop.f32.mrf.mxu0
        %v511 = vadd.f32 0.0, %v510
        %v512 = vpop.f32.mrf.mxu0
        %513 = vdwg.mxu0
        %vm514 = vcmp.le.s32.totalorder %v431, %v424
        %vm515 = vcmp.le.s32.totalorder %v431, %v425
        %vm516 = vcmp.le.s32.totalorder %v431, %v426
        %vm517 = vcmp.le.s32.totalorder %v431, %v427
        %v518 = vsel %vm514, %v500, -1e+30
        %v519 = vsel %vm515, %v503, -1e+30
        %v520 = vsel %vm516, %v508, -1e+30
        %v521 = vsel %vm517, %v511, -1e+30
        %v522 = vld [vmem:[#allocation2] sm:$0xff]
        %v523 = vld [vmem:[#allocation2 + $0x8] sm:$0xff]
        %v524 = vld [vmem:[#allocation2 + $0x10] sm:$0xff]
        %v525 = vld [vmem:[#allocation2 + $0x18] sm:$0xff]
        %v526 = vsel %vm455, %v518, -inf
        %527 = vmax.xlane.f32.xlu0 %v526
        %v528 = vpop.xlane.xlu0 %527
        %v529 = vsel %vm455, %v519, -inf
        %530 = vmax.xlane.f32.xlu0 %v529
        %v531 = vpop.xlane.xlu0 %530
        %v532 = vsel %vm455, %v520, -inf
        %533 = vmax.xlane.f32.xlu0 %v532
        %v534 = vpop.xlane.xlu0 %533
        %v535 = vsel %vm455, %v521, -inf
        %536 = vmax.xlane.f32.xlu0 %v535
        %v537 = vpop.xlane.xlu0 %536
        %v538 = vmax.f32 %v522, %v528
        %v539 = vmax.f32 %v523, %v531
        %v540 = vmax.f32 %v524, %v534
        %v541 = vmax.f32 %v525, %v537
        %v542 = vsub.f32 %v522, %v538
        %v543 = vsub.f32 %v523, %v539
        %v544 = vsub.f32 %v524, %v540
        %v545 = vsub.f32 %v525, %v541
        %v546 = vmul.f32 %v542, 1.442695
        %v547 = vpow.pop %v546
        %v548 = vmul.f32 %v543, 1.442695
        %v549 = vpow.pop %v548
        %v550 = vmul.f32 %v544, 1.442695
        %v551 = vpow.pop %v550
        %v552 = vmul.f32 %v545, 1.442695
        %v553 = vpow.pop %v552
        %555 = vset.pattern.permute.xlu0 0
        %556 = vperm.xlu0 %555, %v538
        %v557 = vpop.permute.xlu0 %556
        %560 = vset.pattern.permute.xlu0 0
        %561 = vperm.xlu0 %560, %v539
        %v562 = vpop.permute.xlu0 %561
        %565 = vset.pattern.permute.xlu0 0
        %566 = vperm.xlu0 %565, %v540
        %v567 = vpop.permute.xlu0 %566
        %570 = vset.pattern.permute.xlu0 0
        %571 = vperm.xlu0 %570, %v541
        %v572 = vpop.permute.xlu0 %571
        %v574 = vsub.f32 %v518, %v557
        %v575 = vsub.f32 %v519, %v562
        %v576 = vsub.f32 %v520, %v567
        %v577 = vsub.f32 %v521, %v572
        %v578 = vmul.f32 %v574, 1.442695
        %v579 = vpow.pop %v578
        %v580 = vmul.f32 %v575, 1.442695
        %v581 = vpow.pop %v580
        %v582 = vmul.f32 %v576, 1.442695
        %v583 = vpow.pop %v582
        %v584 = vmul.f32 %v577, 1.442695
        %v585 = vpow.pop %v584
        %v586 = vld [vmem:[#allocation3] sm:$0xff]
        %v587 = vld [vmem:[#allocation3 + $0x8] sm:$0xff]
        %v588 = vld [vmem:[#allocation3 + $0x10] sm:$0xff]
        %v589 = vld [vmem:[#allocation3 + $0x18] sm:$0xff]
        %v590 = vmul.f32 %v547, %v586
        %v591 = vmul.f32 %v549, %v587
        %v592 = vmul.f32 %v551, %v588
        %v593 = vmul.f32 %v553, %v589
        %v594 = vsel %vm455, %v579, 0.0
        %595 = vadd.xlane.f32.xlu0 %v594
        %v596 = vpop.xlane.xlu0 %595
        %v597 = vsel %vm455, %v581, 0.0
        %598 = vadd.xlane.f32.xlu0 %v597
        %v599 = vpop.xlane.xlu0 %598
        %v600 = vsel %vm455, %v583, 0.0
        %601 = vadd.xlane.f32.xlu0 %v600
        %v602 = vpop.xlane.xlu0 %601
        %v603 = vsel %vm455, %v585, 0.0
        %604 = vadd.xlane.f32.xlu0 %v603
        %v605 = vpop.xlane.xlu0 %604
        %v606 = vadd.f32 %v590, %v596
        %v607 = vadd.f32 %v591, %v599
        %v608 = vadd.f32 %v592, %v602
        %v609 = vadd.f32 %v593, %v605
        %vm610 = vcmask 7168
        %611 = vst.msk [vmem:[#allocation3] sm:$0xff] %vm610, %v606
        %612 = vst.msk [vmem:[#allocation3 + $0x8] sm:$0xff] %vm610, %v607
        %613 = vst.msk [vmem:[#allocation3 + $0x10] sm:$0xff] %vm610, %v608
        %614 = vst.msk [vmem:[#allocation3 + $0x18] sm:$0xff] %vm610, %v609
        %v615 = vld [vmem:[#allocation4] sm:$0xff]
        %v616 = vld [vmem:[#allocation4 + $0x8] sm:$0xff]
        %v617 = vld [vmem:[#allocation4 + $0x10] sm:$0xff]
        %v618 = vld [vmem:[#allocation4 + $0x18] sm:$0xff]
        %620 = vset.pattern.permute.xlu0 0
        %621 = vperm.xlu0 %620, %v547
        %v622 = vpop.permute.xlu0 %621
        %625 = vset.pattern.permute.xlu0 0
        %626 = vperm.xlu0 %625, %v549
        %v627 = vpop.permute.xlu0 %626
        %630 = vset.pattern.permute.xlu0 0
        %631 = vperm.xlu0 %630, %v551
        %v632 = vpop.permute.xlu0 %631
        %635 = vset.pattern.permute.xlu0 0
        %636 = vperm.xlu0 %635, %v553
        %v637 = vpop.permute.xlu0 %636
        %v639 = vmul.f32 %v622, %v615
        %v640 = vmul.f32 %v627, %v616
        %v641 = vmul.f32 %v632, %v617
        %v642 = vmul.f32 %v637, %v618
        %v643 = vpack.c.bf16 %v581, %v579
        %v644 = vpack.c.bf16 %v585, %v583
        %v647 = vunpack.c.l.b16 %v434
        %v648 = vunpack.c.l.b16 %v435
        %v649 = vpack.c.b16 %v648, %v647
        %v652 = vsel %vm455, %v643, 0
        %v655 = vsel %vm455, %v644, 0
        %657 = vmatprep.subr.bf16.mxu0 0
        %658 = vmatpush1.bf16.msra.mxu0 0
        %659 = vmatprep.subr.bf16.mxu0 0
        %660 = vmatpush1.bf16.msra.mxu0 0
        %661 = vmatprep.subr.bf16.mxu0 0
        %662 = vmatpush1.bf16.msra.mxu0 0
        %663 = vmatprep.subr.bf16.mxu0 0
        %664 = vmatpush1.bf16.msra.mxu0 0
        %665 = vmatprep.subr.bf16.mxu0 0
        %666 = vmatpush1.bf16.msra.mxu0 0
        %667 = vmatprep.subr.bf16.mxu0 0
        %668 = vmatpush1.bf16.msra.mxu0 0
        %669 = vmatprep.subr.bf16.mxu0 0
        %670 = vmatpush1.bf16.msra.mxu0 0
        %671 = vmatprep.subr.bf16.mxu0 0
        %672 = vmatpush1.bf16.msra.mxu0 %v649
        %673 = vmatprep.subr.bf16.mxu0 0
        %674 = vmatpush2.bf16.msra.mxu0 0
        %675 = vmatprep.subr.bf16.mxu0 0
        %676 = vmatpush2.bf16.msra.mxu0 0
        %677 = vmatprep.subr.bf16.mxu0 0
        %678 = vmatpush2.bf16.msra.mxu0 0
        %679 = vmatprep.subr.bf16.mxu0 0
        %680 = vmatpush2.bf16.msra.mxu0 0
        %681 = vmatprep.subr.bf16.mxu0 0
        %682 = vmatpush2.bf16.msra.mxu0 0
        %683 = vmatprep.subr.bf16.mxu0 0
        %684 = vmatpush2.bf16.msra.mxu0 0
        %685 = vmatprep.subr.bf16.mxu0 0
        %686 = vmatpush2.bf16.msra.mxu0 0
        %687 = vmatprep.subr.bf16.mxu0 0
        %688 = vmatpush2.bf16.msra.mxu0 0
        %689 = vmatprep.mubr.bf16.mxu0 0
        %690 = vmatmul.mubr.bf16.gmra.mxu0 %v652
        %v691 = vpop.f32.mrf.mxu0
        %v692 = vadd.f32 0.0, %v691
        %v693 = vpop.f32.mrf.mxu0
        %v694 = vpop.f32.mrf.mxu0
        %v695 = vadd.f32 0.0, %v694
        %v696 = vpop.f32.mrf.mxu0
        %697 = vmatprep.mubr.bf16.mxu0 0
        %698 = vmatmul.mubr.bf16.gmra.mxu0 %v655
        %v699 = vpop.f32.mrf.mxu0
        %v700 = vadd.f32 0.0, %v699
        %v701 = vpop.f32.mrf.mxu0
        %v702 = vpop.f32.mrf.mxu0
        %v703 = vadd.f32 0.0, %v702
        %v704 = vpop.f32.mrf.mxu0
        %705 = vdwg.mxu0
        %v706 = vadd.f32 %v639, %v692
        %v707 = vadd.f32 %v640, %v695
        %v708 = vadd.f32 %v641, %v700
        %v709 = vadd.f32 %v642, %v703
        %710 = vst.msk [vmem:[#allocation4] sm:$0xff] %vm455, %v706
        %711 = vst.msk [vmem:[#allocation4 + $0x8] sm:$0xff] %vm455, %v707
        %712 = vst.msk [vmem:[#allocation4 + $0x10] sm:$0xff] %vm455, %v708
        %713 = vst.msk [vmem:[#allocation4 + $0x18] sm:$0xff] %vm455, %v709
        %714 = vst.msk [vmem:[#allocation2] sm:$0xff] %vm610, %v538
        %715 = vst.msk [vmem:[#allocation2 + $0x8] sm:$0xff] %vm610, %v539
        %716 = vst.msk [vmem:[#allocation2 + $0x10] sm:$0xff] %vm610, %v540
        %717 = vst.msk [vmem:[#allocation2 + $0x18] sm:$0xff] %vm610, %v541
        %v718 = vld [vmem:[%s267] sm:$0xf]
        %v719 = vld [vmem:[%s267 + $0x4] sm:$0xf]
        %v720 = vld [vmem:[%s277] sm:$0xf]
        %v721 = vld [vmem:[%s277 + $0x4] sm:$0xf]
        %s722 = scalar_lea.vmem [#allocation5], 16
        %v723 = vld [vmem:[%s722] sm:$0xf]
        %v724 = vld [vmem:[%s722 + $0x4] sm:$0xf]
        %v725 = vld [vmem:[%s722 + $0x8] sm:$0xf]
        %v726 = vld [vmem:[%s722 + $0xc] sm:$0xf]
        %v731 = vunpack.c.l.b16 %v723
        %v732 = vunpack.c.l.b16 %v724
        %v733 = vunpack.c.l.b16 %v725
        %v734 = vunpack.c.l.b16 %v726
        %v735 = vpack.c.b16 %v732, %v731
        %v736 = vpack.c.b16 %v734, %v733
        %v739 = vunpack.c.l.b16 %v718
        %v740 = vunpack.c.l.b16 %v719
        %v741 = vpack.c.b16 %v740, %v739
        %742 = vrot.lane.b32.xlu0 %v741, 112
        %v743 = vpop.permute.xlu0 %742
        %v745 = vsel %vm455, %v735, 0
        %v748 = vsel %vm455, %v736, 0
        %v751 = vsel %vm455, %v743, 0
        %753 = vmatprep.subr.bf16.mxu0 0
        %754 = vmatpush1.bf16.xpose.msra.mxu0 0
        %755 = vmatprep.subr.bf16.mxu0 0
        %756 = vmatpush1.bf16.xpose.msra.mxu0 0
        %757 = vmatprep.subr.bf16.mxu0 0
        %758 = vmatpush1.bf16.xpose.msra.mxu0 0
        %759 = vmatprep.subr.bf16.mxu0 0
        %760 = vmatpush1.bf16.xpose.msra.mxu0 0
        %761 = vmatprep.subr.bf16.mxu0 0
        %762 = vmatpush1.bf16.xpose.msra.mxu0 0
        %763 = vmatprep.subr.bf16.mxu0 0
        %764 = vmatpush1.bf16.xpose.msra.mxu0 0
        %765 = vmatprep.subr.bf16.mxu0 0
        %766 = vmatpush1.bf16.xpose.msra.mxu0 0
        %767 = vmatprep.subr.bf16.mxu0 0
        %768 = vmatpush1.bf16.xpose.msra.mxu0 %v751
        %769 = vmatprep.subr.bf16.mxu0 0
        %770 = vmatpush2.bf16.xpose.msra.mxu0 0
        %771 = vmatprep.subr.bf16.mxu0 0
        %772 = vmatpush2.bf16.xpose.msra.mxu0 0
        %773 = vmatprep.subr.bf16.mxu0 0
        %774 = vmatpush2.bf16.xpose.msra.mxu0 0
        %775 = vmatprep.subr.bf16.mxu0 0
        %776 = vmatpush2.bf16.xpose.msra.mxu0 0
        %777 = vmatprep.subr.bf16.mxu0 0
        %778 = vmatpush2.bf16.xpose.msra.mxu0 0
        %779 = vmatprep.subr.bf16.mxu0 0
        %780 = vmatpush2.bf16.xpose.msra.mxu0 0
        %781 = vmatprep.subr.bf16.mxu0 0
        %782 = vmatpush2.bf16.xpose.msra.mxu0 0
        %783 = vmatprep.subr.bf16.mxu0 0
        %784 = vmatpush2.bf16.xpose.msra.mxu0 0
        %785 = vmatprep.mubr.bf16.mxu0 0
        %786 = vmatmul.mubr.bf16.gmra.mxu0 %v745
        %v787 = vpop.f32.mrf.mxu0
        %v788 = vadd.f32 0.0, %v787
        %v789 = vpop.f32.mrf.mxu0
        %v790 = vpop.f32.mrf.mxu0
        %v791 = vadd.f32 0.0, %v790
        %v792 = vpop.f32.mrf.mxu0
        %793 = vmatprep.mubr.bf16.mxu0 0
        %794 = vmatmul.mubr.bf16.gmra.mxu0 %v748
        %v795 = vpop.f32.mrf.mxu0
        %v796 = vadd.f32 0.0, %v795
        %v797 = vpop.f32.mrf.mxu0
        %v798 = vpop.f32.mrf.mxu0
        %v799 = vadd.f32 0.0, %v798
        %v800 = vpop.f32.mrf.mxu0
        %801 = vdwg.mxu0
        %v802 = vsel %vm514, %v788, -1e+30
        %v803 = vsel %vm515, %v791, -1e+30
        %v804 = vsel %vm516, %v796, -1e+30
        %v805 = vsel %vm517, %v799, -1e+30
        %s806 = scalar_lea.vmem [#allocation2], 32
        %v807 = vld [vmem:[%s806] sm:$0xff]
        %v808 = vld [vmem:[%s806 + $0x8] sm:$0xff]
        %v809 = vld [vmem:[%s806 + $0x10] sm:$0xff]
        %v810 = vld [vmem:[%s806 + $0x18] sm:$0xff]
        %v811 = vsel %vm455, %v802, -inf
        %812 = vmax.xlane.f32.xlu0 %v811
        %v813 = vpop.xlane.xlu0 %812
        %v814 = vsel %vm455, %v803, -inf
        %815 = vmax.xlane.f32.xlu0 %v814
        %v816 = vpop.xlane.xlu0 %815
        %v817 = vsel %vm455, %v804, -inf
        %818 = vmax.xlane.f32.xlu0 %v817
        %v819 = vpop.xlane.xlu0 %818
        %v820 = vsel %vm455, %v805, -inf
        %821 = vmax.xlane.f32.xlu0 %v820
        %v822 = vpop.xlane.xlu0 %821
        %v823 = vmax.f32 %v807, %v813
        %v824 = vmax.f32 %v808, %v816
        %v825 = vmax.f32 %v809, %v819
        %v826 = vmax.f32 %v810, %v822
        %v827 = vsub.f32 %v807, %v823
        %v828 = vsub.f32 %v808, %v824
        %v829 = vsub.f32 %v809, %v825
        %v830 = vsub.f32 %v810, %v826
        %v831 = vmul.f32 %v827, 1.442695
        %v832 = vpow.pop %v831
        %v833 = vmul.f32 %v828, 1.442695
        %v834 = vpow.pop %v833
        %v835 = vmul.f32 %v829, 1.442695
        %v836 = vpow.pop %v835
        %v837 = vmul.f32 %v830, 1.442695
        %v838 = vpow.pop %v837
        %840 = vset.pattern.permute.xlu0 0
        %841 = vperm.xlu0 %840, %v823
        %v842 = vpop.permute.xlu0 %841
        %845 = vset.pattern.permute.xlu0 0
        %846 = vperm.xlu0 %845, %v824
        %v847 = vpop.permute.xlu0 %846
        %850 = vset.pattern.permute.xlu0 0
        %851 = vperm.xlu0 %850, %v825
        %v852 = vpop.permute.xlu0 %851
        %855 = vset.pattern.permute.xlu0 0
        %856 = vperm.xlu0 %855, %v826
        %v857 = vpop.permute.xlu0 %856
        %v859 = vsub.f32 %v802, %v842
        %v860 = vsub.f32 %v803, %v847
        %v861 = vsub.f32 %v804, %v852
        %v862 = vsub.f32 %v805, %v857
        %v863 = vmul.f32 %v859, 1.442695
        %v864 = vpow.pop %v863
        %v865 = vmul.f32 %v860, 1.442695
        %v866 = vpow.pop %v865
        %v867 = vmul.f32 %v861, 1.442695
        %v868 = vpow.pop %v867
        %v869 = vmul.f32 %v862, 1.442695
        %v870 = vpow.pop %v869
        %s871 = scalar_lea.vmem [#allocation3], 32
        %v872 = vld [vmem:[%s871] sm:$0xff]
        %v873 = vld [vmem:[%s871 + $0x8] sm:$0xff]
        %v874 = vld [vmem:[%s871 + $0x10] sm:$0xff]
        %v875 = vld [vmem:[%s871 + $0x18] sm:$0xff]
        %v876 = vmul.f32 %v832, %v872
        %v877 = vmul.f32 %v834, %v873
        %v878 = vmul.f32 %v836, %v874
        %v879 = vmul.f32 %v838, %v875
        %v880 = vsel %vm455, %v864, 0.0
        %881 = vadd.xlane.f32.xlu0 %v880
        %v882 = vpop.xlane.xlu0 %881
        %v883 = vsel %vm455, %v866, 0.0
        %884 = vadd.xlane.f32.xlu0 %v883
        %v885 = vpop.xlane.xlu0 %884
        %v886 = vsel %vm455, %v868, 0.0
        %887 = vadd.xlane.f32.xlu0 %v886
        %v888 = vpop.xlane.xlu0 %887
        %v889 = vsel %vm455, %v870, 0.0
        %890 = vadd.xlane.f32.xlu0 %v889
        %v891 = vpop.xlane.xlu0 %890
        %v892 = vadd.f32 %v876, %v882
        %v893 = vadd.f32 %v877, %v885
        %v894 = vadd.f32 %v878, %v888
        %v895 = vadd.f32 %v879, %v891
        %896 = vst.msk [vmem:[%s871] sm:$0xff] %vm610, %v892
        %897 = vst.msk [vmem:[%s871 + $0x8] sm:$0xff] %vm610, %v893
        %898 = vst.msk [vmem:[%s871 + $0x10] sm:$0xff] %vm610, %v894
        %899 = vst.msk [vmem:[%s871 + $0x18] sm:$0xff] %vm610, %v895
        %s900 = scalar_lea.vmem [#allocation4], 32
        %v901 = vld [vmem:[%s900] sm:$0xff]
        %v902 = vld [vmem:[%s900 + $0x8] sm:$0xff]
        %v903 = vld [vmem:[%s900 + $0x10] sm:$0xff]
        %v904 = vld [vmem:[%s900 + $0x18] sm:$0xff]
        %906 = vset.pattern.permute.xlu0 0
        %907 = vperm.xlu0 %906, %v832
        %v908 = vpop.permute.xlu0 %907
        %911 = vset.pattern.permute.xlu0 0
        %912 = vperm.xlu0 %911, %v834
        %v913 = vpop.permute.xlu0 %912
        %916 = vset.pattern.permute.xlu0 0
        %917 = vperm.xlu0 %916, %v836
        %v918 = vpop.permute.xlu0 %917
        %921 = vset.pattern.permute.xlu0 0
        %922 = vperm.xlu0 %921, %v838
        %v923 = vpop.permute.xlu0 %922
        %v925 = vmul.f32 %v908, %v901
        %v926 = vmul.f32 %v913, %v902
        %v927 = vmul.f32 %v918, %v903
        %v928 = vmul.f32 %v923, %v904
        %v929 = vpack.c.bf16 %v866, %v864
        %v930 = vpack.c.bf16 %v870, %v868
        %v933 = vunpack.c.l.b16 %v720
        %v934 = vunpack.c.l.b16 %v721
        %v935 = vpack.c.b16 %v934, %v933
        %936 = vrot.lane.b32.xlu0 %v935, 112
        %v937 = vpop.permute.xlu0 %936
        %v940 = vsel %vm455, %v929, 0
        %v943 = vsel %vm455, %v930, 0
        %945 = vmatprep.subr.bf16.mxu0 0
        %946 = vmatpush1.bf16.msra.mxu0 0
        %947 = vmatprep.subr.bf16.mxu0 0
        %948 = vmatpush1.bf16.msra.mxu0 0
        %949 = vmatprep.subr.bf16.mxu0 0
        %950 = vmatpush1.bf16.msra.mxu0 0
        %951 = vmatprep.subr.bf16.mxu0 0
        %952 = vmatpush1.bf16.msra.mxu0 0
        %953 = vmatprep.subr.bf16.mxu0 0
        %954 = vmatpush1.bf16.msra.mxu0 0
        %955 = vmatprep.subr.bf16.mxu0 0
        %956 = vmatpush1.bf16.msra.mxu0 0
        %957 = vmatprep.subr.bf16.mxu0 0
        %958 = vmatpush1.bf16.msra.mxu0 0
        %959 = vmatprep.subr.bf16.mxu0 0
        %960 = vmatpush1.bf16.msra.mxu0 %v937
        %961 = vmatprep.subr.bf16.mxu0 0
        %962 = vmatpush2.bf16.msra.mxu0 0
        %963 = vmatprep.subr.bf16.mxu0 0
        %964 = vmatpush2.bf16.msra.mxu0 0
        %965 = vmatprep.subr.bf16.mxu0 0
        %966 = vmatpush2.bf16.msra.mxu0 0
        %967 = vmatprep.subr.bf16.mxu0 0
        %968 = vmatpush2.bf16.msra.mxu0 0
        %969 = vmatprep.subr.bf16.mxu0 0
        %970 = vmatpush2.bf16.msra.mxu0 0
        %971 = vmatprep.subr.bf16.mxu0 0
        %972 = vmatpush2.bf16.msra.mxu0 0
        %973 = vmatprep.subr.bf16.mxu0 0
        %974 = vmatpush2.bf16.msra.mxu0 0
        %975 = vmatprep.subr.bf16.mxu0 0
        %976 = vmatpush2.bf16.msra.mxu0 0
        %977 = vmatprep.mubr.bf16.mxu0 0
        %978 = vmatmul.mubr.bf16.gmra.mxu0 %v940
        %v979 = vpop.f32.mrf.mxu0
        %v980 = vadd.f32 0.0, %v979
        %v981 = vpop.f32.mrf.mxu0
        %v982 = vpop.f32.mrf.mxu0
        %v983 = vadd.f32 0.0, %v982
        %v984 = vpop.f32.mrf.mxu0
        %985 = vmatprep.mubr.bf16.mxu0 0
        %986 = vmatmul.mubr.bf16.gmra.mxu0 %v943
        %v987 = vpop.f32.mrf.mxu0
        %v988 = vadd.f32 0.0, %v987
        %v989 = vpop.f32.mrf.mxu0
        %v990 = vpop.f32.mrf.mxu0
        %v991 = vadd.f32 0.0, %v990
        %v992 = vpop.f32.mrf.mxu0
        %993 = vdwg.mxu0
        %v994 = vadd.f32 %v925, %v980
        %v995 = vadd.f32 %v926, %v983
        %v996 = vadd.f32 %v927, %v988
        %v997 = vadd.f32 %v928, %v991
        %998 = vst.msk [vmem:[%s900] sm:$0xff] %vm455, %v994
        %999 = vst.msk [vmem:[%s900 + $0x8] sm:$0xff] %vm455, %v995
        %1000 = vst.msk [vmem:[%s900 + $0x10] sm:$0xff] %vm455, %v996
        %1001 = vst.msk [vmem:[%s900 + $0x18] sm:$0xff] %vm455, %v997
        %1002 = vst.msk [vmem:[%s806] sm:$0xff] %vm610, %v823
        %1003 = vst.msk [vmem:[%s806 + $0x8] sm:$0xff] %vm610, %v824
        %1004 = vst.msk [vmem:[%s806 + $0x10] sm:$0xff] %vm610, %v825
        %1005 = vst.msk [vmem:[%s806 + $0x18] sm:$0xff] %vm610, %v826
      $region40: #{llama_forward.16} parent=31 // pred_fallthru
        _
      // Predicated region
      $region41: #{llama_forward.16} parent=31 // pred_check
        %p1006 = pneg %p290
      $region42: #{llama_forward.16} parent=31 // pred_check_branch
        %1008 = sbr.rel (%p1006) target = $region44
      $region43: #{llama_forward.16} parent=31 // pred_region
        %v1009 = vld [vmem:[#allocation4] sm:$0xff]
        %v1010 = vld [vmem:[#allocation4 + $0x8] sm:$0xff]
        %v1011 = vld [vmem:[#allocation3] sm:$0xff]
        %v1012 = vld [vmem:[#allocation3 + $0x8] sm:$0xff]
        %v1013 = vrcp.pop %v1011
        %v1014 = vrcp.pop %v1012
        %1016 = vset.pattern.permute.xlu0 0
        %1017 = vperm.xlu0 %1016, %v1013
        %v1018 = vpop.permute.xlu0 %1017
        %1021 = vset.pattern.permute.xlu0 0
        %1022 = vperm.xlu0 %1021, %v1014
        %v1023 = vpop.permute.xlu0 %1022
        %v1025 = vmul.f32 %v1009, %v1018
        %v1026 = vmul.f32 %v1010, %v1023
        %v1027 = vpack.c.bf16 %v1026, %v1025
        %v1029 = vunpack.c.l.b16 %v1027
        %v1030 = vunpack.c.h.b16 %v1027
        %v1031 = vpack.c.b16 %v1029, %v1029
        %v1032 = vpack.c.b16 %v1030, %v1030
        %vm1035 = vcmask 125952
        %1036 = vst.msk [vmem:[%s287] sm:$0xf] %vm1035, %v1031
        %1037 = vst.msk [vmem:[%s287 + $0x4] sm:$0xf] %vm1035, %v1032
        %v1038 = vld [vmem:[#allocation4 + $0x10] sm:$0xff]
        %v1039 = vld [vmem:[#allocation4 + $0x18] sm:$0xff]
        %v1040 = vld [vmem:[#allocation3 + $0x10] sm:$0xff]
        %v1041 = vld [vmem:[#allocation3 + $0x18] sm:$0xff]
        %v1042 = vrcp.pop %v1040
        %v1043 = vrcp.pop %v1041
        %1045 = vset.pattern.permute.xlu0 0
        %1046 = vperm.xlu0 %1045, %v1042
        %v1047 = vpop.permute.xlu0 %1046
        %1050 = vset.pattern.permute.xlu0 0
        %1051 = vperm.xlu0 %1050, %v1043
        %v1052 = vpop.permute.xlu0 %1051
        %v1054 = vmul.f32 %v1038, %v1047
        %v1055 = vmul.f32 %v1039, %v1052
        %v1056 = vpack.c.bf16 %v1055, %v1054
        %v1058 = vunpack.c.l.b16 %v1056
        %v1059 = vunpack.c.h.b16 %v1056
        %v1060 = vpack.c.b16 %v1058, %v1058
        %v1061 = vpack.c.b16 %v1059, %v1059
        %1062 = vrot.lane.b32.xlu0 %v1060, 16
        %v1063 = vpop.permute.xlu0 %1062
        %1064 = vrot.lane.b32.xlu0 %v1061, 16
        %v1065 = vpop.permute.xlu0 %1064
        %vm1068 = vcmask 257152
        %1069 = vst.msk [vmem:[%s287] sm:$0xf] %vm1068, %v1063
        %1070 = vst.msk [vmem:[%s287 + $0x4] sm:$0xf] %vm1068, %v1065
        %s1071 = scalar_lea.vmem [#allocation4], 32
        %v1072 = vld [vmem:[%s1071] sm:$0xff]
        %v1073 = vld [vmem:[%s1071 + $0x8] sm:$0xff]
        %s1074 = scalar_lea.vmem [#allocation3], 32
        %v1075 = vld [vmem:[%s1074] sm:$0xff]
        %v1076 = vld [vmem:[%s1074 + $0x8] sm:$0xff]
        %v1077 = vrcp.pop %v1075
        %v1078 = vrcp.pop %v1076
        %1080 = vset.pattern.permute.xlu0 0
        %1081 = vperm.xlu0 %1080, %v1077
        %v1082 = vpop.permute.xlu0 %1081
        %1085 = vset.pattern.permute.xlu0 0
        %1086 = vperm.xlu0 %1085, %v1078
        %v1087 = vpop.permute.xlu0 %1086
        %v1089 = vmul.f32 %v1072, %v1082
        %v1090 = vmul.f32 %v1073, %v1087
        %v1091 = vpack.c.bf16 %v1090, %v1089
        %v1093 = vunpack.c.l.b16 %v1091
        %v1094 = vunpack.c.h.b16 %v1091
        %v1095 = vpack.c.b16 %v1093, %v1093
        %v1096 = vpack.c.b16 %v1094, %v1094
        %1097 = vrot.lane.b32.xlu0 %v1095, 32
        %v1098 = vpop.permute.xlu0 %1097
        %1099 = vrot.lane.b32.xlu0 %v1096, 32
        %v1100 = vpop.permute.xlu0 %1099
        %vm1103 = vcmask 388352
        %1104 = vst.msk [vmem:[%s287] sm:$0xf] %vm1103, %v1098
        %1105 = vst.msk [vmem:[%s287 + $0x4] sm:$0xf] %vm1103, %v1100
        %v1106 = vld [vmem:[%s1071 + $0x10] sm:$0xff]
        %v1107 = vld [vmem:[%s1071 + $0x18] sm:$0xff]
        %v1108 = vld [vmem:[%s1074 + $0x10] sm:$0xff]
        %v1109 = vld [vmem:[%s1074 + $0x18] sm:$0xff]
        %v1110 = vrcp.pop %v1108
        %v1111 = vrcp.pop %v1109
        %1113 = vset.pattern.permute.xlu0 0
        %1114 = vperm.xlu0 %1113, %v1110
        %v1115 = vpop.permute.xlu0 %1114
        %1118 = vset.pattern.permute.xlu0 0
        %1119 = vperm.xlu0 %1118, %v1111
        %v1120 = vpop.permute.xlu0 %1119
        %v1122 = vmul.f32 %v1106, %v1115
        %v1123 = vmul.f32 %v1107, %v1120
        %v1124 = vpack.c.bf16 %v1123, %v1122
        %v1126 = vunpack.c.l.b16 %v1124
        %v1127 = vunpack.c.h.b16 %v1124
        %v1128 = vpack.c.b16 %v1126, %v1126
        %v1129 = vpack.c.b16 %v1127, %v1127
        %1130 = vrot.lane.b32.xlu0 %v1128, 48
        %v1131 = vpop.permute.xlu0 %1130
        %1132 = vrot.lane.b32.xlu0 %v1129, 48
        %v1133 = vpop.permute.xlu0 %1132
        %vm1136 = vcmask 519552
        %1137 = vst.msk [vmem:[%s287] sm:$0xf] %vm1136, %v1131
        %1138 = vst.msk [vmem:[%s287 + $0x4] sm:$0xf] %vm1136, %v1133
      $region44: #{llama_forward.16} parent=31 // pred_fallthru
        _
      %s1139 = smul.u32 2, %s20
      %p1140 = scmp.lt.s32.totalorder %s19, 1
      %s1141 = scalar_select %p1140, %s19, 1
      %p1142 = scmp.lt.s32.totalorder %s1139, 1
      %s1143 = scalar_select %p1142, %s1139, 1
      %s1144 = smul.addr %s1141, 2
      %s1145 = sadd.s32 %s1143, %s1144
      %s1146 = smul.addr %s1145, 4
      %s1147 = scalar_lea.vmem %s3, %s1146
      // Predicated region
      $region45: #{llama_forward.16} parent=31 // pred_check
        %p1148 = pneg %p137
      $region46: #{llama_forward.16} parent=31 // pred_check_branch
        %1150 = sbr.rel (%p1148) target = $region48
      $region47: #{llama_forward.16} parent=31 // pred_region
        %s1151 = smul.u32 2, %s20
      $region48: #{llama_forward.16} parent=31 // pred_fallthru
        _
    $region32: #{llama_forward.16} parent=5 // pred_fallthru
      _
    %p1152 = scmp.le.s32.totalorder 2, %s9
    // Predicated region
    $region49: #{llama_forward.16} parent=5 // pred_check
      %p1153 = pneg %p1152
    $region50: #{llama_forward.16} parent=5 // pred_check_branch
      %1155 = sbr.rel (%p1153) target = $region52
    $region51: #{llama_forward.16} parent=5 // pred_region
      %s1156 = ssub.s32 %s9, 2
      // Predicated region
      $region53: #{llama_forward.16} parent=51 // pred_check
        %p1157 = pneg %p143
      $region54: #{llama_forward.16} parent=51 // pred_check_branch
        %1159 = sbr.rel (%p1157) target = $region56
      $region55: #{llama_forward.16} parent=51 // pred_region
        %s1160 = smul.u32 2, %s23
        %p1161 = scmp.lt.s32.totalorder %s22, 1
        %s1162 = scalar_select %p1161, %s22, 1
        %p1163 = scmp.lt.s32.totalorder %s1160, 1
        %s1164 = scalar_select %p1163, %s1160, 1
        %s1165 = smul.addr %s1162, 2
        %s1166 = sadd.s32 %s1164, %s1165
        %s1167 = smul.addr %s1166, 4
        %s1168 = scalar_lea.vmem %s3, %s1167
      $region56: #{llama_forward.16} parent=51 // pred_fallthru
        _
    $region52: #{llama_forward.16} parent=5 // pred_fallthru
      _
  $region6: #{llama_forward.16} parent=0 // loop_footer
    %s13 = sadd.s32 1, %s9
  $region7: #{llama_forward.16} parent=0 // loop_footer_branch
    %8 = sbr.rel target = $region3
  $region8: #{llama_forward.16} parent=0 // loop_exit
    _

// kernel: llama_forward.27
$region0: #{llama_forward.27}
  #allocation0 [shape = 'u32[]', space=smem, size = 0x4, offset = 0x4, fixed_abs, tag = 'smem constant byte address 0x4 - core index']
  #allocation1 [shape = 'u32[144,128]{1,0:T(1,128)}', space=vmem, size = 0x12000, scoped, tag = 'internal scratch']
  #allocation2 [shape = 'f32[32,256]{1,0:T(8,128)}', space=vmem, size = 0x8000, scoped, tag = 'scratch operand']
  %s0 = inlined_call_operand.vmem [shape: bf16[32,64], index: 0, kind: input, shape index: {}]
  %s1 = inlined_call_operand.vmem [shape: bf16[64,256], index: 1, kind: input, shape index: {}]
  %s2 = inlined_call_operand.vmem [shape: f32[32,256], index: 2, kind: output, shape index: {}]
  %s3 = sld [smem:[#allocation0]]
  $region26: #{llama_forward.27} parent=0
    _
  %s5 = ssub.s32 1, %s3
  %s6 = scalar_select 0, %s5, %s3
  // Predicated region
  $region2: #{llama_forward.27} parent=0 // pred_check
    _
  $region3: #{llama_forward.27} parent=0 // pred_check_branch
    %8 = sbr.rel (0) target = $region5
  $region4: #{llama_forward.27} parent=0 // pred_region
    _
  $region5: #{llama_forward.27} parent=0 // pred_fallthru
    _
  // Predicated region
  $region6: #{llama_forward.27} parent=0 // pred_check
    _
  $region7: #{llama_forward.27} parent=0 // pred_check_branch
    %10 = sbr.rel (0) target = $region9
  $region8: #{llama_forward.27} parent=0 // pred_region
    _
  $region9: #{llama_forward.27} parent=0 // pred_fallthru
    _
  %p12 = scmp.eq.s32.totalorder 0, 0
  // Predicated region
  $region10: #{llama_forward.27} parent=0 // pred_check
    %p13 = pneg %p12
  $region11: #{llama_forward.27} parent=0 // pred_check_branch
    %15 = sbr.rel (%p13) target = $region13
  $region12: #{llama_forward.27} parent=0 // pred_region
    %16 = vst [vmem:[#allocation2] sm:$0xff] 0.0
    %17 = vst [vmem:[#allocation2 + $0x8] sm:$0xff] 0.0
    %18 = vst [vmem:[#allocation2 + $0x10] sm:$0xff] 0.0
    %19 = vst [vmem:[#allocation2 + $0x18] sm:$0xff] 0.0
    %20 = vst [vmem:[#allocation2 + $0x20] sm:$0xff] 0.0
    %21 = vst [vmem:[#allocation2 + $0x28] sm:$0xff] 0.0
    %22 = vst [vmem:[#allocation2 + $0x30] sm:$0xff] 0.0
    %23 = vst [vmem:[#allocation2 + $0x38] sm:$0xff] 0.0
  $region13: #{llama_forward.27} parent=0 // pred_fallthru
    _
  %v24 = vld [vmem:[#allocation2] sm:$0xff]
  %v25 = vld [vmem:[#allocation2 + $0x8] sm:$0xff]
  %v26 = vld [vmem:[#allocation2 + $0x10] sm:$0xff]
  %v27 = vld [vmem:[#allocation2 + $0x18] sm:$0xff]
  %v28 = vld [vmem:[#allocation2 + $0x20] sm:$0xff]
  %v29 = vld [vmem:[#allocation2 + $0x28] sm:$0xff]
  %v30 = vld [vmem:[#allocation2 + $0x30] sm:$0xff]
  %v31 = vld [vmem:[#allocation2 + $0x38] sm:$0xff]
  %v32 = vld [vmem:[%s0] sm:$0xf]
  %v33 = vld [vmem:[%s0 + $0x4] sm:$0xf]
  %v34 = vld [vmem:[%s0 + $0x8] sm:$0xf]
  %v35 = vld [vmem:[%s0 + $0xc] sm:$0xf]
  %v36 = vld [vmem:[%s1] sm:$0xff]
  %v37 = vld [vmem:[%s1 + $0x8] sm:$0xff]
  %v38 = vld [vmem:[%s1 + $0x10] sm:$0xff]
  %v39 = vld [vmem:[%s1 + $0x18] sm:$0xff]
  %v40 = vld [vmem:[%s1 + $0x20] sm:$0xff]
  %v41 = vld [vmem:[%s1 + $0x28] sm:$0xff]
  %v42 = vld [vmem:[%s1 + $0x30] sm:$0xff]
  %v43 = vld [vmem:[%s1 + $0x38] sm:$0xff]
  %v48 = vunpack.c.l.b16 %v32
  %v49 = vunpack.c.l.b16 %v33
  %v50 = vunpack.c.l.b16 %v34
  %v51 = vunpack.c.l.b16 %v35
  %v52 = vpack.c.b16 %v49, %v48
  %v53 = vpack.c.b16 %v51, %v50
  %v62 = vunpack.c.l.b16 %v36
  %v63 = vunpack.c.h.b16 %v36
  %v64 = vunpack.c.l.b16 %v37
  %v65 = vunpack.c.h.b16 %v37
  %v66 = vunpack.c.l.b16 %v38
  %v67 = vunpack.c.h.b16 %v38
  %v68 = vunpack.c.l.b16 %v39
  %v69 = vunpack.c.h.b16 %v39
  %v70 = vunpack.c.l.b16 %v40
  %v71 = vunpack.c.h.b16 %v40
  %v72 = vunpack.c.l.b16 %v41
  %v73 = vunpack.c.h.b16 %v41
  %v74 = vunpack.c.l.b16 %v42
  %v75 = vunpack.c.h.b16 %v42
  %v76 = vunpack.c.l.b16 %v43
  %v77 = vunpack.c.h.b16 %v43
  %v78 = vpack.c.b16 %v64, %v62
  %v79 = vpack.c.b16 %v65, %v63
  %v80 = vpack.c.b16 %v68, %v66
  %v81 = vpack.c.b16 %v69, %v67
  %v82 = vpack.c.b16 %v72, %v70
  %v83 = vpack.c.b16 %v73, %v71
  %v84 = vpack.c.b16 %v76, %v74
  %v85 = vpack.c.b16 %v77, %v75
  %vm94 = vcmask 523264
  %v96 = vsel %vm94, %v52, 0
  %v99 = vsel %vm94, %v53, 0
  %101 = vmatprep.subr.bf16.mxu0 0
  %102 = vmatpush1.bf16.msra.mxu0 0
  %103 = vmatprep.subr.bf16.mxu0 0
  %104 = vmatpush1.bf16.msra.mxu0 0
  %105 = vmatprep.subr.bf16.mxu0 0
  %106 = vmatpush1.bf16.msra.mxu0 0
  %107 = vmatprep.subr.bf16.mxu0 0
  %108 = vmatpush1.bf16.msra.mxu0 0
  %109 = vmatprep.subr.bf16.mxu0 %v85
  %110 = vmatpush1.bf16.msra.mxu0 %v84
  %111 = vmatprep.subr.bf16.mxu0 %v83
  %112 = vmatpush1.bf16.msra.mxu0 %v82
  %113 = vmatprep.subr.bf16.mxu0 %v81
  %114 = vmatpush1.bf16.msra.mxu0 %v80
  %115 = vmatprep.subr.bf16.mxu0 %v79
  %116 = vmatpush1.bf16.msra.mxu0 %v78
  %117 = vmatprep.subr.bf16.mxu0 0
  %118 = vmatpush2.bf16.msra.mxu0 0
  %119 = vmatprep.subr.bf16.mxu0 0
  %120 = vmatpush2.bf16.msra.mxu0 0
  %121 = vmatprep.subr.bf16.mxu0 0
  %122 = vmatpush2.bf16.msra.mxu0 0
  %123 = vmatprep.subr.bf16.mxu0 0
  %124 = vmatpush2.bf16.msra.mxu0 0
  %125 = vmatprep.subr.bf16.mxu0 0
  %126 = vmatpush2.bf16.msra.mxu0 0
  %127 = vmatprep.subr.bf16.mxu0 0
  %128 = vmatpush2.bf16.msra.mxu0 0
  %129 = vmatprep.subr.bf16.mxu0 0
  %130 = vmatpush2.bf16.msra.mxu0 0
  %131 = vmatprep.subr.bf16.mxu0 0
  %132 = vmatpush2.bf16.msra.mxu0 0
  %133 = vmatprep.mubr.bf16.mxu0 0
  %134 = vmatmul.mubr.bf16.gmra.mxu0 %v96
  %v135 = vpop.f32.mrf.mxu0
  %v136 = vadd.f32 0.0, %v135
  %v137 = vpop.f32.mrf.mxu0
  %v138 = vadd.f32 0.0, %v137
  %v139 = vpop.f32.mrf.mxu0
  %v140 = vadd.f32 0.0, %v139
  %v141 = vpop.f32.mrf.mxu0
  %v142 = vadd.f32 0.0, %v141
  %143 = vmatprep.mubr.bf16.mxu0 0
  %144 = vmatmul.mubr.bf16.gmra.mxu0 %v99
  %v145 = vpop.f32.mrf.mxu0
  %v146 = vadd.f32 0.0, %v145
  %v147 = vpop.f32.mrf.mxu0
  %v148 = vadd.f32 0.0, %v147
  %v149 = vpop.f32.mrf.mxu0
  %v150 = vadd.f32 0.0, %v149
  %v151 = vpop.f32.mrf.mxu0
  %v152 = vadd.f32 0.0, %v151
  %153 = vdwg.mxu0
  %v154 = vadd.f32 %v24, %v136
  %v155 = vadd.f32 %v25, %v138
  %v156 = vadd.f32 %v26, %v140
  %v157 = vadd.f32 %v27, %v142
  %v158 = vadd.f32 %v28, %v146
  %v159 = vadd.f32 %v29, %v148
  %v160 = vadd.f32 %v30, %v150
  %v161 = vadd.f32 %v31, %v152
  %162 = vst [vmem:[#allocation2] sm:$0xff] %v154
  %163 = vst [vmem:[#allocation2 + $0x8] sm:$0xff] %v155
  %164 = vst [vmem:[#allocation2 + $0x10] sm:$0xff] %v156
  %165 = vst [vmem:[#allocation2 + $0x18] sm:$0xff] %v157
  %166 = vst [vmem:[#allocation2 + $0x20] sm:$0xff] %v158
  %167 = vst [vmem:[#allocation2 + $0x28] sm:$0xff] %v159
  %168 = vst [vmem:[#allocation2 + $0x30] sm:$0xff] %v160
  %169 = vst [vmem:[#allocation2 + $0x38] sm:$0xff] %v161
  // Predicated region
  $region14: #{llama_forward.27} parent=0 // pred_check
    %p170 = pneg %p12
  $region15: #{llama_forward.27} parent=0 // pred_check_branch
    %172 = sbr.rel (%p170) target = $region17
  $region16: #{llama_forward.27} parent=0 // pred_region
    %v173 = vld [vmem:[#allocation2] sm:$0xff]
    %v174 = vld [vmem:[#allocation2 + $0x8] sm:$0xff]
    %v175 = vld [vmem:[#allocation2 + $0x10] sm:$0xff]
    %v176 = vld [vmem:[#allocation2 + $0x18] sm:$0xff]
    %v177 = vld [vmem:[#allocation2 + $0x20] sm:$0xff]
    %v178 = vld [vmem:[#allocation2 + $0x28] sm:$0xff]
    %v179 = vld [vmem:[#allocation2 + $0x30] sm:$0xff]
    %v180 = vld [vmem:[#allocation2 + $0x38] sm:$0xff]
    %181 = vst [vmem:[%s2] sm:$0xff] %v173
    %182 = vst [vmem:[%s2 + $0x8] sm:$0xff] %v174
    %183 = vst [vmem:[%s2 + $0x10] sm:$0xff] %v175
    %184 = vst [vmem:[%s2 + $0x18] sm:$0xff] %v176
    %185 = vst [vmem:[%s2 + $0x20] sm:$0xff] %v177
    %186 = vst [vmem:[%s2 + $0x28] sm:$0xff] %v178
    %187 = vst [vmem:[%s2 + $0x30] sm:$0xff] %v179
    %188 = vst [vmem:[%s2 + $0x38] sm:$0xff] %v180
  $region17: #{llama_forward.27} parent=0 // pred_fallthru
    _
  // Predicated region
  $region18: #{llama_forward.27} parent=0 // pred_check
    _
  $region19: #{llama_forward.27} parent=0 // pred_check_branch
    %190 = sbr.rel (0) target = $region21
  $region20: #{llama_forward.27} parent=0 // pred_region
    _
  $region21: #{llama_forward.27} parent=0 // pred_fallthru
    _
  // Predicated region
  $region22: #{llama_forward.27} parent=0 // pred_check
    _
  $region23: #{llama_forward.27} parent=0 // pred_check_branch
    %192 = sbr.rel (0) target = $region25
  $region24: #{llama_forward.27} parent=0 // pred_region
    _
  $region25: #{llama_forward.27} parent=0 // pred_fallthru
    _

// kernel: llama_forward.19
$region0: #{llama_forward.19}
  #allocation0 [shape = 'u32[]', space=smem, size = 0x4, offset = 0x4, fixed_abs, tag = 'smem constant byte address 0x4 - core index']
  #allocation1 [shape = 'u32[144,128]{1,0:T(1,128)}', space=vmem, size = 0x12000, scoped, tag = 'internal scratch']
  #allocation2 [shape = 'f32[32,64]{1,0:T(8,128)}', space=vmem, size = 0x4000, scoped, tag = 'scratch operand']
  %s0 = inlined_call_operand.vmem [shape: bf16[32,64], index: 0, kind: input, shape index: {}]
  %s1 = inlined_call_operand.vmem [shape: bf16[64,192], index: 1, kind: input, shape index: {}]
  %s2 = inlined_call_operand.vmem [shape: bf16[64,192], index: 2, kind: input, shape index: {}]
  %s3 = inlined_call_operand.vmem [shape: bf16[192,64], index: 3, kind: input, shape index: {}]
  %s4 = inlined_call_operand.vmem [shape: bf16[32,64], index: 4, kind: output, shape index: {}]
  %s5 = sld [smem:[#allocation0]]
  $region34: #{llama_forward.19} parent=0
    _
  %s7 = ssub.s32 1, %s5
  %s8 = scalar_select 0, %s7, %s5
  // Predicated region
  $region2: #{llama_forward.19} parent=0 // pred_check
    _
  $region3: #{llama_forward.19} parent=0 // pred_check_branch
    %10 = sbr.rel (0) target = $region5
  $region4: #{llama_forward.19} parent=0 // pred_region
    _
  $region5: #{llama_forward.19} parent=0 // pred_fallthru
    _
  // Predicated region
  $region6: #{llama_forward.19} parent=0 // pred_check
    _
  $region7: #{llama_forward.19} parent=0 // pred_check_branch
    %12 = sbr.rel (0) target = $region9
  $region8: #{llama_forward.19} parent=0 // pred_region
    _
  $region9: #{llama_forward.19} parent=0 // pred_fallthru
    _
  // Predicated region
  $region10: #{llama_forward.19} parent=0 // pred_check
    _
  $region11: #{llama_forward.19} parent=0 // pred_check_branch
    %14 = sbr.rel (0) target = $region13
  $region12: #{llama_forward.19} parent=0 // pred_region
    _
  $region13: #{llama_forward.19} parent=0 // pred_fallthru
    _
  // Predicated region
  $region14: #{llama_forward.19} parent=0 // pred_check
    _
  $region15: #{llama_forward.19} parent=0 // pred_check_branch
    %16 = sbr.rel (0) target = $region17
  $region16: #{llama_forward.19} parent=0 // pred_region
    _
  $region17: #{llama_forward.19} parent=0 // pred_fallthru
    _
  %p18 = scmp.eq.s32.totalorder 0, 0
  // Predicated region
  $region18: #{llama_forward.19} parent=0 // pred_check
    %p19 = pneg %p18
  $region19: #{llama_forward.19} parent=0 // pred_check_branch
    %21 = sbr.rel (%p19) target = $region21
  $region20: #{llama_forward.19} parent=0 // pred_region
    %vm22 = vcmask 523264
    %23 = vst.msk [vmem:[#allocation2] sm:$0xff] %vm22, 0.0
    %24 = vst.msk [vmem:[#allocation2 + $0x8] sm:$0xff] %vm22, 0.0
    %25 = vst.msk [vmem:[#allocation2 + $0x10] sm:$0xff] %vm22, 0.0
    %26 = vst.msk [vmem:[#allocation2 + $0x18] sm:$0xff] %vm22, 0.0
  $region21: #{llama_forward.19} parent=0 // pred_fallthru
    _
  %v27 = vld [vmem:[%s0] sm:$0xf]
  %v28 = vld [vmem:[%s0 + $0x4] sm:$0xf]
  %v29 = vld [vmem:[%s0 + $0x8] sm:$0xf]
  %v30 = vld [vmem:[%s0 + $0xc] sm:$0xf]
  %v31 = vld [vmem:[%s1] sm:$0xff]
  %v32 = vld [vmem:[%s1 + $0x8] sm:$0xff]
  %v33 = vld [vmem:[%s1 + $0x10] sm:$0xff]
  %v34 = vld [vmem:[%s1 + $0x18] sm:$0xff]
  %v35 = vld [vmem:[%s1 + $0x20] sm:$0xff]
  %v36 = vld [vmem:[%s1 + $0x28] sm:$0xff]
  %v37 = vld [vmem:[%s1 + $0x30] sm:$0xff]
  %v38 = vld [vmem:[%s1 + $0x38] sm:$0xff]
  %v43 = vunpack.c.l.b16 %v27
  %v44 = vunpack.c.l.b16 %v28
  %v45 = vunpack.c.l.b16 %v29
  %v46 = vunpack.c.l.b16 %v30
  %v47 = vpack.c.b16 %v44, %v43
  %v48 = vpack.c.b16 %v46, %v45
  %v57 = vunpack.c.l.b16 %v31
  %v58 = vunpack.c.h.b16 %v31
  %v59 = vunpack.c.l.b16 %v32
  %v60 = vunpack.c.h.b16 %v32
  %v61 = vunpack.c.l.b16 %v33
  %v62 = vunpack.c.h.b16 %v33
  %v63 = vunpack.c.l.b16 %v34
  %v64 = vunpack.c.h.b16 %v34
  %v65 = vunpack.c.l.b16 %v35
  %v66 = vunpack.c.h.b16 %v35
  %v67 = vunpack.c.l.b16 %v36
  %v68 = vunpack.c.h.b16 %v36
  %v69 = vunpack.c.l.b16 %v37
  %v70 = vunpack.c.h.b16 %v37
  %v71 = vunpack.c.l.b16 %v38
  %v72 = vunpack.c.h.b16 %v38
  %v73 = vpack.c.b16 %v59, %v57
  %v74 = vpack.c.b16 %v60, %v58
  %v75 = vpack.c.b16 %v63, %v61
  %v76 = vpack.c.b16 %v64, %v62
  %v77 = vpack.c.b16 %v67, %v65
  %v78 = vpack.c.b16 %v68, %v66
  %v79 = vpack.c.b16 %v71, %v69
  %v80 = vpack.c.b16 %v72, %v70
  %vm89 = vcmask 523264
  %v91 = vsel %vm89, %v47, 0
  %v94 = vsel %vm89, %v48, 0
  %96 = vmatprep.subr.bf16.mxu0 0
  %97 = vmatpush1.bf16.msra.mxu0 0
  %98 = vmatprep.subr.bf16.mxu0 0
  %99 = vmatpush1.bf16.msra.mxu0 0
  %100 = vmatprep.subr.bf16.mxu0 0
  %101 = vmatpush1.bf16.msra.mxu0 0
  %102 = vmatprep.subr.bf16.mxu0 0
  %103 = vmatpush1.bf16.msra.mxu0 0
  %104 = vmatprep.subr.bf16.mxu0 %v80
  %105 = vmatpush1.bf16.msra.mxu0 %v79
  %106 = vmatprep.subr.bf16.mxu0 %v78
  %107 = vmatpush1.bf16.msra.mxu0 %v77
  %108 = vmatprep.subr.bf16.mxu0 %v76
  %109 = vmatpush1.bf16.msra.mxu0 %v75
  %110 = vmatprep.subr.bf16.mxu0 %v74
  %111 = vmatpush1.bf16.msra.mxu0 %v73
  %112 = vmatprep.subr.bf16.mxu0 0
  %113 = vmatpush2.bf16.msra.mxu0 0
  %114 = vmatprep.subr.bf16.mxu0 0
  %115 = vmatpush2.bf16.msra.mxu0 0
  %116 = vmatprep.subr.bf16.mxu0 0
  %117 = vmatpush2.bf16.msra.mxu0 0
  %118 = vmatprep.subr.bf16.mxu0 0
  %119 = vmatpush2.bf16.msra.mxu0 0
  %120 = vmatprep.subr.bf16.mxu0 0
  %121 = vmatpush2.bf16.msra.mxu0 0
  %122 = vmatprep.subr.bf16.mxu0 0
  %123 = vmatpush2.bf16.msra.mxu0 0
  %124 = vmatprep.subr.bf16.mxu0 0
  %125 = vmatpush2.bf16.msra.mxu0 0
  %126 = vmatprep.subr.bf16.mxu0 0
  %127 = vmatpush2.bf16.msra.mxu0 0
  %128 = vmatprep.mubr.bf16.mxu0 0
  %129 = vmatmul.mubr.bf16.gmra.mxu0 %v91
  %v130 = vpop.f32.mrf.mxu0
  %v131 = vadd.f32 0.0, %v130
  %v132 = vpop.f32.mrf.mxu0
  %v133 = vadd.f32 0.0, %v132
  %v134 = vpop.f32.mrf.mxu0
  %v135 = vadd.f32 0.0, %v134
  %v136 = vpop.f32.mrf.mxu0
  %v137 = vadd.f32 0.0, %v136
  %138 = vmatprep.mubr.bf16.mxu0 0
  %139 = vmatmul.mubr.bf16.gmra.mxu0 %v94
  %v140 = vpop.f32.mrf.mxu0
  %v141 = vadd.f32 0.0, %v140
  %v142 = vpop.f32.mrf.mxu0
  %v143 = vadd.f32 0.0, %v142
  %v144 = vpop.f32.mrf.mxu0
  %v145 = vadd.f32 0.0, %v144
  %v146 = vpop.f32.mrf.mxu0
  %v147 = vadd.f32 0.0, %v146
  %148 = vdwg.mxu0
  %v149 = vld [vmem:[%s2] sm:$0xff]
  %v150 = vld [vmem:[%s2 + $0x8] sm:$0xff]
  %v151 = vld [vmem:[%s2 + $0x10] sm:$0xff]
  %v152 = vld [vmem:[%s2 + $0x18] sm:$0xff]
  %v153 = vld [vmem:[%s2 + $0x20] sm:$0xff]
  %v154 = vld [vmem:[%s2 + $0x28] sm:$0xff]
  %v155 = vld [vmem:[%s2 + $0x30] sm:$0xff]
  %v156 = vld [vmem:[%s2 + $0x38] sm:$0xff]
  %v165 = vunpack.c.l.b16 %v149
  %v166 = vunpack.c.h.b16 %v149
  %v167 = vunpack.c.l.b16 %v150
  %v168 = vunpack.c.h.b16 %v150
  %v169 = vunpack.c.l.b16 %v151
  %v170 = vunpack.c.h.b16 %v151
  %v171 = vunpack.c.l.b16 %v152
  %v172 = vunpack.c.h.b16 %v152
  %v173 = vunpack.c.l.b16 %v153
  %v174 = vunpack.c.h.b16 %v153
  %v175 = vunpack.c.l.b16 %v154
  %v176 = vunpack.c.h.b16 %v154
  %v177 = vunpack.c.l.b16 %v155
  %v178 = vunpack.c.h.b16 %v155
  %v179 = vunpack.c.l.b16 %v156
  %v180 = vunpack.c.h.b16 %v156
  %v181 = vpack.c.b16 %v167, %v165
  %v182 = vpack.c.b16 %v168, %v166
  %v183 = vpack.c.b16 %v171, %v169
  %v184 = vpack.c.b16 %v172, %v170
  %v185 = vpack.c.b16 %v175, %v173
  %v186 = vpack.c.b16 %v176, %v174
  %v187 = vpack.c.b16 %v179, %v177
  %v188 = vpack.c.b16 %v180, %v178
  %197 = vmatprep.subr.bf16.mxu0 0
  %198 = vmatpush1.bf16.msra.mxu0 0
  %199 = vmatprep.subr.bf16.mxu0 0
  %200 = vmatpush1.bf16.msra.mxu0 0
  %201 = vmatprep.subr.bf16.mxu0 0
  %202 = vmatpush1.bf16.msra.mxu0 0
  %203 = vmatprep.subr.bf16.mxu0 0
  %204 = vmatpush1.bf16.msra.mxu0 0
  %205 = vmatprep.subr.bf16.mxu0 %v188
  %206 = vmatpush1.bf16.msra.mxu0 %v187
  %207 = vmatprep.subr.bf16.mxu0 %v186
  %208 = vmatpush1.bf16.msra.mxu0 %v185
  %209 = vmatprep.subr.bf16.mxu0 %v184
  %210 = vmatpush1.bf16.msra.mxu0 %v183
  %211 = vmatprep.subr.bf16.mxu0 %v182
  %212 = vmatpush1.bf16.msra.mxu0 %v181
  %213 = vmatprep.subr.bf16.mxu0 0
  %214 = vmatpush2.bf16.msra.mxu0 0
  %215 = vmatprep.subr.bf16.mxu0 0
  %216 = vmatpush2.bf16.msra.mxu0 0
  %217 = vmatprep.subr.bf16.mxu0 0
  %218 = vmatpush2.bf16.msra.mxu0 0
  %219 = vmatprep.subr.bf16.mxu0 0
  %220 = vmatpush2.bf16.msra.mxu0 0
  %221 = vmatprep.subr.bf16.mxu0 0
  %222 = vmatpush2.bf16.msra.mxu0 0
  %223 = vmatprep.subr.bf16.mxu0 0
  %224 = vmatpush2.bf16.msra.mxu0 0
  %225 = vmatprep.subr.bf16.mxu0 0
  %226 = vmatpush2.bf16.msra.mxu0 0
  %227 = vmatprep.subr.bf16.mxu0 0
  %228 = vmatpush2.bf16.msra.mxu0 0
  %229 = vmatprep.mubr.bf16.mxu0 0
  %230 = vmatmul.mubr.bf16.gmra.mxu0 %v91
  %v231 = vpop.f32.mrf.mxu0
  %v232 = vadd.f32 0.0, %v231
  %v233 = vpop.f32.mrf.mxu0
  %v234 = vadd.f32 0.0, %v233
  %v235 = vpop.f32.mrf.mxu0
  %v236 = vadd.f32 0.0, %v235
  %v237 = vpop.f32.mrf.mxu0
  %v238 = vadd.f32 0.0, %v237
  %239 = vmatprep.mubr.bf16.mxu0 0
  %240 = vmatmul.mubr.bf16.gmra.mxu0 %v94
  %v241 = vpop.f32.mrf.mxu0
  %v242 = vadd.f32 0.0, %v241
  %v243 = vpop.f32.mrf.mxu0
  %v244 = vadd.f32 0.0, %v243
  %v245 = vpop.f32.mrf.mxu0
  %v246 = vadd.f32 0.0, %v245
  %v247 = vpop.f32.mrf.mxu0
  %v248 = vadd.f32 0.0, %v247
  %249 = vdwg.mxu0
  %v250 = vxor.u32 %v131, 2147483648
  %v251 = vxor.u32 %v133, 2147483648
  %v252 = vxor.u32 %v135, 2147483648
  %v253 = vxor.u32 %v137, 2147483648
  %v254 = vxor.u32 %v141, 2147483648
  %v255 = vxor.u32 %v143, 2147483648
  %v256 = vxor.u32 %v145, 2147483648
  %v257 = vxor.u32 %v147, 2147483648
  %v258 = vmul.f32 %v250, 1.442695
  %v259 = vpow.pop %v258
  %v260 = vmul.f32 %v251, 1.442695
  %v261 = vpow.pop %v260
  %v262 = vmul.f32 %v252, 1.442695
  %v263 = vpow.pop %v262
  %v264 = vmul.f32 %v253, 1.442695
  %v265 = vpow.pop %v264
  %v266 = vmul.f32 %v254, 1.442695
  %v267 = vpow.pop %v266
  %v268 = vmul.f32 %v255, 1.442695
  %v269 = vpow.pop %v268
  %v270 = vmul.f32 %v256, 1.442695
  %v271 = vpow.pop %v270
  %v272 = vmul.f32 %v257, 1.442695
  %v273 = vpow.pop %v272
  %v274 = vadd.f32 %v259, 1.0
  %v275 = vadd.f32 %v261, 1.0
  %v276 = vadd.f32 %v263, 1.0
  %v277 = vadd.f32 %v265, 1.0
  %v278 = vadd.f32 %v267, 1.0
  %v279 = vadd.f32 %v269, 1.0
  %v280 = vadd.f32 %v271, 1.0
  %v281 = vadd.f32 %v273, 1.0
  %v282 = vrcp.pop %v274
  %v283 = vmul.f32 1.0, %v282
  %v284 = vrcp.pop %v275
  %v285 = vmul.f32 1.0, %v284
  %v286 = vrcp.pop %v276
  %v287 = vmul.f32 1.0, %v286
  %v288 = vrcp.pop %v277
  %v289 = vmul.f32 1.0, %v288
  %v290 = vrcp.pop %v278
  %v291 = vmul.f32 1.0, %v290
  %v292 = vrcp.pop %v279
  %v293 = vmul.f32 1.0, %v292
  %v294 = vrcp.pop %v280
  %v295 = vmul.f32 1.0, %v294
  %v296 = vrcp.pop %v281
  %v297 = vmul.f32 1.0, %v296
  %v298 = vmul.f32 %v131, %v283
  %v299 = vmul.f32 %v133, %v285
  %v300 = vmul.f32 %v135, %v287
  %v301 = vmul.f32 %v137, %v289
  %v302 = vmul.f32 %v141, %v291
  %v303 = vmul.f32 %v143, %v293
  %v304 = vmul.f32 %v145, %v295
  %v305 = vmul.f32 %v147, %v297
  %v306 = vmul.f32 %v298, %v232
  %v307 = vmul.f32 %v299, %v234
  %v308 = vmul.f32 %v300, %v236
  %v309 = vmul.f32 %v301, %v238
  %v310 = vmul.f32 %v302, %v242
  %v311 = vmul.f32 %v303, %v244
  %v312 = vmul.f32 %v304, %v246
  %v313 = vmul.f32 %v305, %v248
  %v314 = vld [vmem:[#allocation2] sm:$0xff]
  %v315 = vld [vmem:[#allocation2 + $0x8] sm:$0xff]
  %v316 = vld [vmem:[#allocation2 + $0x10] sm:$0xff]
  %v317 = vld [vmem:[#allocation2 + $0x18] sm:$0xff]
  %v318 = vpack.c.bf16 %v308, %v306
  %v319 = vpack.c.bf16 %v309, %v307
  %v320 = vpack.c.bf16 %v312, %v310
  %v321 = vpack.c.bf16 %v313, %v311
  %v322 = vld [vmem:[%s3] sm:$0xf]
  %v323 = vld [vmem:[%s3 + $0x4] sm:$0xf]
  %v324 = vld [vmem:[%s3 + $0x8] sm:$0xf]
  %v325 = vld [vmem:[%s3 + $0xc] sm:$0xf]
  %v326 = vld [vmem:[%s3 + $0x10] sm:$0xf]
  %v327 = vld [vmem:[%s3 + $0x14] sm:$0xf]
  %v328 = vld [vmem:[%s3 + $0x18] sm:$0xf]
  %v329 = vld [vmem:[%s3 + $0x1c] sm:$0xf]
  %v330 = vld [vmem:[%s3 + $0x20] sm:$0xf]
  %v331 = vld [vmem:[%s3 + $0x24] sm:$0xf]
  %v332 = vld [vmem:[%s3 + $0x28] sm:$0xf]
  %v333 = vld [vmem:[%s3 + $0x2c] sm:$0xf]
  %v334 = vld [vmem:[%s3 + $0x30] sm:$0xf]
  %v335 = vld [vmem:[%s3 + $0x34] sm:$0xf]
  %v336 = vld [vmem:[%s3 + $0x38] sm:$0xf]
  %v337 = vld [vmem:[%s3 + $0x3c] sm:$0xf]
  %v338 = vld [vmem:[%s3 + $0x40] sm:$0xf]
  %v339 = vld [vmem:[%s3 + $0x44] sm:$0xf]
  %v340 = vld [vmem:[%s3 + $0x48] sm:$0xf]
  %v341 = vld [vmem:[%s3 + $0x4c] sm:$0xf]
  %v342 = vld [vmem:[%s3 + $0x50] sm:$0xf]
  %v343 = vld [vmem:[%s3 + $0x54] sm:$0xf]
  %v344 = vld [vmem:[%s3 + $0x58] sm:$0xf]
  %v345 = vld [vmem:[%s3 + $0x5c] sm:$0xf]
  %v370 = vunpack.c.l.b16 %v322
  %v371 = vunpack.c.l.b16 %v323
  %v372 = vunpack.c.l.b16 %v324
  %v373 = vunpack.c.l.b16 %v325
  %v374 = vunpack.c.l.b16 %v326
  %v375 = vunpack.c.l.b16 %v327
  %v376 = vunpack.c.l.b16 %v328
  %v377 = vunpack.c.l.b16 %v329
  %v378 = vunpack.c.l.b16 %v330
  %v379 = vunpack.c.l.b16 %v331
  %v380 = vunpack.c.l.b16 %v332
  %v381 = vunpack.c.l.b16 %v333
  %v382 = vunpack.c.l.b16 %v334
  %v383 = vunpack.c.l.b16 %v335
  %v384 = vunpack.c.l.b16 %v336
  %v385 = vunpack.c.l.b16 %v337
  %v386 = vunpack.c.l.b16 %v338
  %v387 = vunpack.c.l.b16 %v339
  %v388 = vunpack.c.l.b16 %v340
  %v389 = vunpack.c.l.b16 %v341
  %v390 = vunpack.c.l.b16 %v342
  %v391 = vunpack.c.l.b16 %v343
  %v392 = vunpack.c.l.b16 %v344
  %v393 = vunpack.c.l.b16 %v345
  %v394 = vpack.c.b16 %v371, %v370
  %v395 = vpack.c.b16 %v373, %v372
  %v396 = vpack.c.b16 %v375, %v374
  %v397 = vpack.c.b16 %v377, %v376
  %v398 = vpack.c.b16 %v379, %v378
  %v399 = vpack.c.b16 %v381, %v380
  %v400 = vpack.c.b16 %v383, %v382
  %v401 = vpack.c.b16 %v385, %v384
  %v402 = vpack.c.b16 %v387, %v386
  %v403 = vpack.c.b16 %v389, %v388
  %v404 = vpack.c.b16 %v391, %v390
  %v405 = vpack.c.b16 %v393, %v392
  %v419 = vsel %vm89, %v319, 0
  %v422 = vsel %vm89, %v321, 0
  %424 = vmatprep.subr.bf16.mxu0 0
  %425 = vmatpush1.bf16.msra.mxu0 %v401
  %426 = vmatprep.subr.bf16.mxu0 0
  %427 = vmatpush1.bf16.msra.mxu0 %v400
  %428 = vmatprep.subr.bf16.mxu0 0
  %429 = vmatpush1.bf16.msra.mxu0 %v399
  %430 = vmatprep.subr.bf16.mxu0 0
  %431 = vmatpush1.bf16.msra.mxu0 %v398
  %432 = vmatprep.subr.bf16.mxu0 0
  %433 = vmatpush1.bf16.msra.mxu0 %v397
  %434 = vmatprep.subr.bf16.mxu0 0
  %435 = vmatpush1.bf16.msra.mxu0 %v396
  %436 = vmatprep.subr.bf16.mxu0 0
  %437 = vmatpush1.bf16.msra.mxu0 %v395
  %438 = vmatprep.subr.bf16.mxu0 0
  %439 = vmatpush1.bf16.msra.mxu0 %v394
  %440 = vmatprep.subr.bf16.mxu0 0
  %441 = vmatpush2.bf16.msra.mxu0 0
  %442 = vmatprep.subr.bf16.mxu0 0
  %443 = vmatpush2.bf16.msra.mxu0 0
  %444 = vmatprep.subr.bf16.mxu0 0
  %445 = vmatpush2.bf16.msra.mxu0 0
  %446 = vmatprep.subr.bf16.mxu0 0
  %447 = vmatpush2.bf16.msra.mxu0 0
  %448 = vmatprep.subr.bf16.mxu0 0
  %449 = vmatpush2.bf16.msra.mxu0 %v405
  %450 = vmatprep.subr.bf16.mxu0 0
  %451 = vmatpush2.bf16.msra.mxu0 %v404
  %452 = vmatprep.subr.bf16.mxu0 0
  %453 = vmatpush2.bf16.msra.mxu0 %v403
  %454 = vmatprep.subr.bf16.mxu0 0
  %455 = vmatpush2.bf16.msra.mxu0 %v402
  %456 = vmatprep.mubr.bf16.mxu0 %v419
  %457 = vmatmul.mubr.bf16.gmra.mxu0 %v318
  %v458 = vpop.f32.mrf.mxu0
  %v459 = vadd.f32 0.0, %v458
  %v460 = vpop.f32.mrf.mxu0
  %v461 = vpop.f32.mrf.mxu0
  %v462 = vadd.f32 0.0, %v461
  %v463 = vpop.f32.mrf.mxu0
  %464 = vmatprep.mubr.bf16.mxu0 %v422
  %465 = vmatmul.mubr.bf16.gmra.mxu0 %v320
  %v466 = vpop.f32.mrf.mxu0
  %v467 = vadd.f32 0.0, %v466
  %v468 = vpop.f32.mrf.mxu0
  %v469 = vpop.f32.mrf.mxu0
  %v470 = vadd.f32 0.0, %v469
  %v471 = vpop.f32.mrf.mxu0
  %472 = vdwg.mxu0
  %v473 = vadd.f32 %v314, %v459
  %v474 = vadd.f32 %v315, %v462
  %v475 = vadd.f32 %v316, %v467
  %v476 = vadd.f32 %v317, %v470
  %477 = vst.msk [vmem:[#allocation2] sm:$0xff] %vm89, %v473
  %478 = vst.msk [vmem:[#allocation2 + $0x8] sm:$0xff] %vm89, %v474
  %479 = vst.msk [vmem:[#allocation2 + $0x10] sm:$0xff] %vm89, %v475
  %480 = vst.msk [vmem:[#allocation2 + $0x18] sm:$0xff] %vm89, %v476
  // Predicated region
  $region22: #{llama_forward.19} parent=0 // pred_check
    %p481 = pneg %p18
  $region23: #{llama_forward.19} parent=0 // pred_check_branch
    %483 = sbr.rel (%p481) target = $region25
  $region24: #{llama_forward.19} parent=0 // pred_region
    %v484 = vld [vmem:[#allocation2] sm:$0xff]
    %v485 = vld [vmem:[#allocation2 + $0x8] sm:$0xff]
    %v486 = vld [vmem:[#allocation2 + $0x10] sm:$0xff]
    %v487 = vld [vmem:[#allocation2 + $0x18] sm:$0xff]
    %v488 = vpack.c.bf16 %v485, %v484
    %v489 = vpack.c.bf16 %v487, %v486
    %v492 = vunpack.c.l.b16 %v488
    %v493 = vunpack.c.h.b16 %v488
    %v494 = vunpack.c.l.b16 %v489
    %v495 = vunpack.c.h.b16 %v489
    %v496 = vpack.c.b16 %v492, %v492
    %v497 = vpack.c.b16 %v493, %v493
    %v498 = vpack.c.b16 %v494, %v494
    %v499 = vpack.c.b16 %v495, %v495
    %vm504 = vcmask 519168
    %505 = vst.msk [vmem:[%s4] sm:$0xf] %vm504, %v496
    %506 = vst.msk [vmem:[%s4 + $0x4] sm:$0xf] %vm504, %v497
    %507 = vst.msk [vmem:[%s4 + $0x8] sm:$0xf] %vm504, %v498
    %508 = vst.msk [vmem:[%s4 + $0xc] sm:$0xf] %vm504, %v499
  $region25: #{llama_forward.19} parent=0 // pred_fallthru
    _
  // Predicated region
  $region26: #{llama_forward.19} parent=0 // pred_check
    _
  $region27: #{llama_forward.19} parent=0 // pred_check_branch
    %510 = sbr.rel (0) target = $region29
  $region28: #{llama_forward.19} parent=0 // pred_region
    _
  $region29: #{llama_forward.19} parent=0 // pred_fallthru
    _
  // Predicated region
  $region30: #{llama_forward.19} parent=0 // pred_check
    _
  $region31: #{llama_forward.19} parent=0 // pred_check_branch
    %512 = sbr.rel (0) target = $region33
  $region32: #{llama_forward.19} parent=0 // pred_region
    _
  $region33: #{llama_forward.19} parent=0 // pred_fallthru
    _

</llo_original>
